<compile_context>
chip_gen: v7x
topology: tpu7x:2x2x1
jax: 0.10.0
libtpu: 0.0.40
codegen_flags: <defaults>
</compile_context>

<pallas_src>
import jax
import jax.numpy as jnp
from jax.experimental import pallas as pl
from jax.experimental.pallas import tpu as pltpu

LANE = 128
_FAST_PATH_N = 2048  # single-block path while A_hat (bf16) <= 8 MiB


def _round_up(v, m):
    return ((v + m - 1) // m) * m


def _vmem_limit_bytes():
    # ~3/4 of physical VMEM: 48 MiB on v7x (64 MiB), 96 MiB on v5e/v6e (128 MiB).
    try:
        cap = pltpu.get_tpu_info().vmem_capacity_bytes
    except Exception:
        cap = 64 * 1024 * 1024
    return int(cap) * 3 // 4


# ----------------------------------------------------------------------------
# Kernel 1: layer-1 aggregation with fused feature transforms.
#   per (i, k):  xw  = X[k] @ W1                 (tiny K, recomputed, f32)
#                acc += A[i,k] @ xw              (bf16 operands, f32 accumulate)
#   at k==last:  H = relu(acc + b1);  out = H @ W2   (f32 epilogue, once/row blk)
# ----------------------------------------------------------------------------
def _layer1_kernel(a_ref, x_ref, w1_ref, b1_ref, w2_ref, o_ref, acc_ref):
    k = pl.program_id(1)

    @pl.when(k == 0)
    def _init():
        acc_ref[...] = jnp.zeros_like(acc_ref)

    # On-the-fly feature transform of this reduction block (K = in_channels is
    # tiny, so recomputing it per (i, k) step is negligible MXU work and saves
    # a full HBM write + n_rows reads of XW1).
    xw = jnp.dot(x_ref[...], w1_ref[...], preferred_element_type=jnp.float32)
    acc_ref[...] += jnp.dot(
        a_ref[...], xw.astype(jnp.bfloat16), preferred_element_type=jnp.float32
    )

    @pl.when(k == pl.num_programs(1) - 1)
    def _finalize():
        # bias + ReLU + small-K layer-2 feature transform, all f32 (v5e has no
        # bf16 VPU path); runs once per row block, off the per-step critical path.
        h = jnp.maximum(acc_ref[...] + b1_ref[...], 0.0)
        o_ref[...] = jnp.dot(
            h, w2_ref[...], preferred_element_type=jnp.float32
        ).astype(o_ref.dtype)


# ----------------------------------------------------------------------------
# Kernel 2: layer-2 aggregation, accumulating directly into the f32 output.
#   HW2 is VMEM-resident (constant index map); its k-block is sliced in-kernel.
#   per (i, k):  out += A[i,k] @ HW2[k]
#   at k==last:  out += b2
# ----------------------------------------------------------------------------
def _layer2_kernel(a_ref, hw_ref, b2_ref, o_ref):
    k = pl.program_id(1)
    tk = a_ref.shape[1]

    @pl.when(k == 0)
    def _init():
        o_ref[...] = jnp.zeros_like(o_ref)

    start = pl.multiple_of(k * tk, tk)
    hw_blk = hw_ref[pl.ds(start, tk), :].astype(jnp.bfloat16)
    o_ref[...] += jnp.dot(a_ref[...], hw_blk, preferred_element_type=jnp.float32)

    @pl.when(k == pl.num_programs(1) - 1)
    def _finalize():
        o_ref[...] += b2_ref[...]


# ----------------------------------------------------------------------------
# Wrapper: padding, casting, two pallas_calls, final slice.
# ----------------------------------------------------------------------------
def gcn_encoder_forward(a_hat, x, w1, b1, w2, b2):
    n = a_hat.shape[0]
    in_ch = x.shape[1]
    hid = w1.shape[1]
    out_ch = w2.shape[1]

    n128 = _round_up(n, LANE)
    if n128 <= _FAST_PATH_N:
        # Single-block path: whole problem per layer in one grid step.
        n_pad = n128
        tm = tk = n_pad
    else:
        # Gridded path: 512x512 bf16 A tiles (512 KiB/buffer) streamed while the
        # 128-wide B operand stays VMEM-resident.
        tm = tk = 512
        n_pad = _round_up(n, 512)

    h_pad = _round_up(hid, LANE)
    o_pad = _round_up(out_ch, LANE)

    f32 = jnp.float32
    # Cast A to bf16 *before* padding (no padded f32 intermediate in HBM).
    a_p = jnp.pad(a_hat.astype(jnp.bfloat16), ((0, n_pad - n), (0, n_pad - n)))
    x_p = jnp.pad(x.astype(f32), ((0, n_pad - n), (0, 0)))
    w1_p = jnp.pad(w1.astype(f32), ((0, 0), (0, h_pad - hid)))
    b1_p = jnp.pad(jnp.reshape(b1, (1, -1)).astype(f32), ((0, 0), (0, h_pad - hid)))
    w2_p = jnp.pad(w2.astype(f32), ((0, h_pad - hid), (0, o_pad - out_ch)))
    b2_p = jnp.pad(
        jnp.reshape(b2, (1, -1)).astype(f32), ((0, 0), (0, o_pad - out_ch))
    )

    n_rows = n_pad // tm
    n_k = n_pad // tk
    vmem_limit = _vmem_limit_bytes()

    # (1) HW2 = relu(A @ (X @ W1) + b1) @ W2   (kept f32 in HBM; only N_pad*512 B)
    hw2 = pl.pallas_call(
        _layer1_kernel,
        out_shape=jax.ShapeDtypeStruct((n_pad, o_pad), jnp.float32),
        grid=(n_rows, n_k),
        in_specs=[
            pl.BlockSpec((tm, tk), lambda i, k: (i, k)),        # A tile (streamed)
            pl.BlockSpec((tk, in_ch), lambda i, k: (k, 0)),     # X k-tile (tiny)
            pl.BlockSpec((in_ch, h_pad), lambda i, k: (0, 0)),  # W1 (resident)
            pl.BlockSpec((1, h_pad), lambda i, k: (0, 0)),      # b1 (resident)
            pl.BlockSpec((h_pad, o_pad), lambda i, k: (0, 0)),  # W2 (resident)
        ],
        out_specs=pl.BlockSpec((tm, o_pad), lambda i, k: (i, 0)),
        scratch_shapes=[pltpu.VMEM((tm, h_pad), jnp.float32)],
        compiler_params=pltpu.CompilerParams(
            dimension_semantics=("parallel", "arbitrary"),
            vmem_limit_bytes=vmem_limit,
        ),
    )(a_p, x_p, w1_p, b1_p, w2_p)

    # (2) OUT = A @ HW2 + b2   (HW2 fully VMEM-resident; only A streamed)
    out_p = pl.pallas_call(
        _layer2_kernel,
        out_shape=jax.ShapeDtypeStruct((n_pad, o_pad), jnp.float32),
        grid=(n_rows, n_k),
        in_specs=[
            pl.BlockSpec((tm, tk), lambda i, k: (i, k)),        # A tile (streamed)
            pl.BlockSpec((n_pad, o_pad), lambda i, k: (0, 0)),  # HW2 (resident)
            pl.BlockSpec((1, o_pad), lambda i, k: (0, 0)),      # b2 (resident)
        ],
        out_specs=pl.BlockSpec((tm, o_pad), lambda i, k: (i, 0)),
        compiler_params=pltpu.CompilerParams(
            dimension_semantics=("parallel", "arbitrary"),
            vmem_limit_bytes=vmem_limit,
        ),
    )(a_p, hw2, b2_p)

    # Padded rows/cols of A are zero, so padded rows of out_p never contaminate
    # valid rows; slice them off here (do NOT reuse out_p unsliced).
    return out_p[:n, :out_ch]


# ----------------------------------------------------------------------------
# Glue: dense symmetrically-normalized adjacency from edge_index
# (PyG GCNConv semantics: add self-loops, D^{-1/2}(A+I)D^{-1/2}).
# ----------------------------------------------------------------------------
def build_normalized_adjacency(edge_index, num_nodes):
    src, dst = edge_index[0], edge_index[1]
    adj = jnp.zeros((num_nodes, num_nodes), jnp.float32)
    adj = adj.at[dst, src].add(1.0)  # messages flow source -> target
    adj = adj + jnp.eye(num_nodes, dtype=jnp.float32)
    deg = jnp.sum(adj, axis=1)
    d_inv_sqrt = jnp.where(deg > 0, 1.0 / jnp.sqrt(deg), 0.0)
    return d_inv_sqrt[:, None] * adj * d_inv_sqrt[None, :]


# ----------------------------------------------------------------------------
# Pure-JAX f32 reference for correctness checking.
# ----------------------------------------------------------------------------
def gcn_encoder_ref(a_hat, x, w1, b1, w2, b2):
    h = a_hat @ (x @ w1) + jnp.reshape(b1, (1, -1))
    h = jnp.maximum(h, 0.0)
    return a_hat @ (h @ w2) + jnp.reshape(b2, (1, -1))


def _run_case(key, num_nodes, in_channels, hidden_channels, out_channels):
    k_x, k_e, k_w1, k_w2 = jax.random.split(key, 4)
    num_edges = 2 * num_nodes

    x = jax.random.normal(k_x, (num_nodes, in_channels), jnp.float32)
    edge_index = jax.random.randint(k_e, (2, num_edges), 0, num_nodes)

    # Glorot-ish weights, zero biases (PyG GCNConv default bias init).
    w1 = jax.random.normal(k_w1, (in_channels, hidden_channels), jnp.float32)
    w1 = w1 * (1.0 / jnp.sqrt(in_channels))
    b1 = jnp.zeros((hidden_channels,), jnp.float32)
    w2 = jax.random.normal(k_w2, (hidden_channels, out_channels), jnp.float32)
    w2 = w2 * (1.0 / jnp.sqrt(hidden_channels))
    b2 = jnp.zeros((out_channels,), jnp.float32)

    a_hat = build_normalized_adjacency(edge_index, num_nodes)

    out = gcn_encoder_forward(a_hat, x, w1, b1, w2, b2)
    out = jax.block_until_ready(out)

    ref = gcn_encoder_ref(a_hat, x, w1, b1, w2, b2)
    assert out.shape == (num_nodes, out_channels)
    # Tolerance accounts for bf16 streaming of A_hat / bf16 MXU operands
    # (all accumulation and the epilogue are f32).
    assert jnp.allclose(out, ref, atol=7.5e-2, rtol=7.5e-2), (
        f"mismatch vs reference (n={num_nodes})"
    )


if __name__ == "__main__":
    key = jax.random.PRNGKey(0)
    k1, k2 = jax.random.split(key)

    # Small graph: exercises the single-block fast path (N_pad = 640, grid (1,1)).
    _run_case(k1, num_nodes=520, in_channels=8, hidden_channels=32, out_channels=16)

    # Medium graph: exercises the gridded path (N_pad = 2560, tm=tk=512, grid (5,5)),
    # including the resident-HW2 pl.ds slicing and direct-output accumulation.
    _run_case(k2, num_nodes=2100, in_channels=8, hidden_channels=32, out_channels=16)

    print("KERNEL_OK")
</pallas_src>

<mosaic_0001>
module attributes {stable_mosaic.version = 11 : i64} {
  func.func @_layer1_kernel(%arg0: i32, %arg1: i32, %arg2: memref<640x640xbf16, #tpu.memory_space<vmem>>, %arg3: memref<640x8xf32, #tpu.memory_space<vmem>>, %arg4: memref<8x128xf32, #tpu.memory_space<vmem>>, %arg5: memref<1x128xf32, #tpu.memory_space<vmem>>, %arg6: memref<128x128xf32, #tpu.memory_space<vmem>>, %arg7: memref<640x128xf32, #tpu.memory_space<vmem>>, %arg8: memref<640x128xf32, #tpu.memory_space<vmem>>) attributes {dimension_semantics = [#tpu.dimension_semantics<parallel>, #tpu.dimension_semantics<arbitrary>], iteration_bounds = array<i64: 1, 1>, scalar_prefetch = 0 : i64, scratch_operands = 1 : i64, tpu.core_type = #tpu.core_type<tc>, window_params = [{transform_indices = @transform_0, window_bounds = array<i64: 640, 640>}, {transform_indices = @transform_1, window_bounds = array<i64: 640, 8>}, {pipeline_mode = #tpu.pipeline_mode<synchronous>, transform_indices = @transform_2, window_bounds = array<i64: 8, 128>}, {pipeline_mode = #tpu.pipeline_mode<synchronous>, transform_indices = @transform_3, window_bounds = array<i64: 1, 128>}, {pipeline_mode = #tpu.pipeline_mode<synchronous>, transform_indices = @transform_4, window_bounds = array<i64: 128, 128>}, {transform_indices = @transform_5, window_bounds = array<i64: 640, 128>}]} {
    %c0_i32 = arith.constant 0 : i32
    %0 = arith.cmpi eq, %arg1, %c0_i32 : i32
    %1 = arith.extui %0 : i1 to i32
    %c0_i32_0 = arith.constant 0 : i32
    %2 = arith.cmpi ne, %1, %c0_i32_0 : i32
    scf.if %2 {
      %cst_13 = arith.constant 0.000000e+00 : f32
      %15 = vector.broadcast %cst_13 : f32 to vector<640x128xf32>
      %c0_14 = arith.constant 0 : index
      %c0_15 = arith.constant 0 : index
      %16 = vector.load %arg8[%c0_14, %c0_15] : memref<640x128xf32, #tpu.memory_space<vmem>>, vector<640x128xf32>
      tpu.vector_store %arg8[%c0_14, %c0_15], %15 {strides = array<i32>} : memref<640x128xf32, #tpu.memory_space<vmem>>, vector<640x128xf32>,
    } else {
    }
    %c0 = arith.constant 0 : index
    %c0_1 = arith.constant 0 : index
    %3 = vector.load %arg3[%c0, %c0_1] : memref<640x8xf32, #tpu.memory_space<vmem>>, vector<640x8xf32>
    %c0_2 = arith.constant 0 : index
    %c0_3 = arith.constant 0 : index
    %4 = vector.load %arg4[%c0_2, %c0_3] : memref<8x128xf32, #tpu.memory_space<vmem>>, vector<8x128xf32>
    %cst = arith.constant dense<0.000000e+00> : vector<640x128xf32>
    %5 = tpu.matmul %3, %4, %cst {dimension_numbers = #tpu.dot_dimension_numbers<[1], [0], [0], [1], [0, 0, 1, 1], [], []>} : vector<640x8xf32>, vector<8x128xf32>, vector<640x128xf32> -> vector<640x128xf32>
    %c0_4 = arith.constant 0 : index
    %c0_5 = arith.constant 0 : index
    %6 = vector.load %arg8[%c0_4, %c0_5] : memref<640x128xf32, #tpu.memory_space<vmem>>, vector<640x128xf32>
    %c0_6 = arith.constant 0 : index
    %c0_7 = arith.constant 0 : index
    %7 = vector.load %arg2[%c0_6, %c0_7] : memref<640x640xbf16, #tpu.memory_space<vmem>>, vector<640x640xbf16>
    %8 = arith.truncf %5 : vector<640x128xf32> to vector<640x128xbf16>
    %cst_8 = arith.constant dense<0.000000e+00> : vector<640x128xf32>
    %9 = tpu.matmul %7, %8, %cst_8 {dimension_numbers = #tpu.dot_dimension_numbers<[1], [0], [0], [1], [0, 0, 1, 1], [], []>} : vector<640x640xbf16>, vector<640x128xbf16>, vector<640x128xf32> -> vector<640x128xf32>
    %10 = arith.addf %6, %9 : vector<640x128xf32>
    %c0_9 = arith.constant 0 : index
    %c0_10 = arith.constant 0 : index
    %11 = vector.load %arg8[%c0_9, %c0_10] : memref<640x128xf32, #tpu.memory_space<vmem>>, vector<640x128xf32>
    tpu.vector_store %arg8[%c0_9, %c0_10], %10 {strides = array<i32>} : memref<640x128xf32, #tpu.memory_space<vmem>>, vector<640x128xf32>,
    %c0_i32_11 = arith.constant 0 : i32
    %12 = arith.cmpi eq, %arg1, %c0_i32_11 : i32
    %13 = arith.extui %12 : i1 to i32
    %c0_i32_12 = arith.constant 0 : i32
    %14 = arith.cmpi ne, %13, %c0_i32_12 : i32
    scf.if %14 {
      %c0_13 = arith.constant 0 : index
      %c0_14 = arith.constant 0 : index
      %15 = vector.load %arg8[%c0_13, %c0_14] : memref<640x128xf32, #tpu.memory_space<vmem>>, vector<640x128xf32>
      %c0_15 = arith.constant 0 : index
      %c0_16 = arith.constant 0 : index
      %16 = vector.load %arg5[%c0_15, %c0_16] : memref<1x128xf32, #tpu.memory_space<vmem>>, vector<1x128xf32>
      %17 = vector.broadcast %16 : vector<1x128xf32> to vector<640x128xf32>
      %18 = arith.addf %15, %17 : vector<640x128xf32>
      %cst_17 = arith.constant 0.000000e+00 : f32
      %19 = vector.broadcast %cst_17 : f32 to vector<640x128xf32>
      %20 = arith.maximumf %18, %19 : vector<640x128xf32>
      %c0_18 = arith.constant 0 : index
      %c0_19 = arith.constant 0 : index
      %21 = vector.load %arg6[%c0_18, %c0_19] : memref<128x128xf32, #tpu.memory_space<vmem>>, vector<128x128xf32>
      %cst_20 = arith.constant dense<0.000000e+00> : vector<640x128xf32>
      %22 = tpu.matmul %20, %21, %cst_20 {dimension_numbers = #tpu.dot_dimension_numbers<[1], [0], [0], [1], [0, 0, 1, 1], [], []>} : vector<640x128xf32>, vector<128x128xf32>, vector<640x128xf32> -> vector<640x128xf32>
      %c0_21 = arith.constant 0 : index
      %c0_22 = arith.constant 0 : index
      %23 = vector.load %arg7[%c0_21, %c0_22] : memref<640x128xf32, #tpu.memory_space<vmem>>, vector<640x128xf32>
      tpu.vector_store %arg7[%c0_21, %c0_22], %22 {strides = array<i32>} : memref<640x128xf32, #tpu.memory_space<vmem>>, vector<640x128xf32>,
    } else {
    }
    return
  }
  func.func @transform_0(%arg0: i32, %arg1: i32) -> (i32, i32) {
    %c0_i32 = arith.constant 0 : i32
    return %arg0, %arg1 : i32, i32
  }
  func.func @transform_1(%arg0: i32, %arg1: i32) -> (i32, i32) {
    %c0_i32 = arith.constant 0 : i32
    %c0_i32_0 = arith.constant 0 : i32
    return %arg1, %c0_i32 : i32, i32
  }
  func.func @transform_2(%arg0: i32, %arg1: i32) -> (i32, i32) {
    %c0_i32 = arith.constant 0 : i32
    %c0_i32_0 = arith.constant 0 : i32
    %c0_i32_1 = arith.constant 0 : i32
    return %c0_i32, %c0_i32_0 : i32, i32
  }
  func.func @transform_3(%arg0: i32, %arg1: i32) -> (i32, i32) {
    %c0_i32 = arith.constant 0 : i32
    %c0_i32_0 = arith.constant 0 : i32
    %c0_i32_1 = arith.constant 0 : i32
    return %c0_i32, %c0_i32_0 : i32, i32
  }
  func.func @transform_4(%arg0: i32, %arg1: i32) -> (i32, i32) {
    %c0_i32 = arith.constant 0 : i32
    %c0_i32_0 = arith.constant 0 : i32
    %c0_i32_1 = arith.constant 0 : i32
    return %c0_i32, %c0_i32_0 : i32, i32
  }
  func.func @transform_5(%arg0: i32, %arg1: i32) -> (i32, i32) {
    %c0_i32 = arith.constant 0 : i32
    %c0_i32_0 = arith.constant 0 : i32
    return %arg0, %c0_i32 : i32, i32
  }
}

</mosaic_0001>

<llo_original>
// kernel: tpu_custom_call.1
$region0: #{tpu_custom_call.1}
  #allocation0 [shape = 'u32[]', space=smem, size = 0x4, offset = 0x4, fixed_abs, tag = 'smem constant byte address 0x4 - core index']
  #allocation1 [shape = 'u32[144,128]{1,0:T(1,128)}', space=vmem, size = 0x12000, scoped, tag = 'internal scratch']
  #allocation2 [shape = 'f32[640,128]{1,0:T(8,128)}', space=vmem, size = 0x50000, scoped, tag = 'scratch operand']
  %s0 = inlined_call_operand.hbm [shape: bf16[640,640], index: 0, kind: input, shape index: {}]
  %s1 = inlined_call_operand.vmem [shape: f32[640,8], index: 1, kind: input, shape index: {}]
  %s2 = inlined_call_operand.vmem [shape: f32[8,128], index: 2, kind: input, shape index: {}]
  %s3 = inlined_call_operand.vmem [shape: f32[1,128], index: 3, kind: input, shape index: {}]
  %s4 = inlined_call_operand.vmem [shape: f32[128,128], index: 4, kind: input, shape index: {}]
  %s5 = inlined_call_operand.hbm [shape: f32[640,128], index: 5, kind: output, shape index: {}]
  %s6 = sld [smem:[#allocation0]]
  $region42: #{tpu_custom_call.1} parent=0
    _
  %s8 = ssub.s32 1, %s6
  %s9 = scalar_select 0, %s8, %s6
  $region1: #{tpu_custom_call.1} parent=0
    #allocation3 [shape = 'u8[819200]{0}', space=vmem, size = 0xc8000, scoped, tag = 'input window, operand 0, single buffered']
    #allocation4 [shape = 's32[1]{0}', space=sflag, size = 0x4, scoped, tag = 'scoped memory for tpu_custom_call.1']
    #allocation5 [shape = 's32[1]{0}', space=sflag, size = 0x4, scoped, tag = 'scoped memory for tpu_custom_call.1']
    #allocation6 [shape = 'u8[327680]{0}', space=vmem, size = 0x50000, scoped, tag = 'output window, operand 0, single buffered']
    %10 = vsyncpa [#allocation4], 0
    %11 = vsyncpa [#allocation5], 0
    // Predicated region
    $region2: #{tpu_custom_call.1} parent=1 // pred_check
      _
    $region3: #{tpu_custom_call.1} parent=1 // pred_check_branch
      %13 = sbr.rel (0) target = $region5
    $region4: #{tpu_custom_call.1} parent=1 // pred_region
      %s15 = ssub.s32 25600, 25600
      %16 = vsyncadd [#allocation4], %s15
      %s17 = sshll.u32 [#allocation3], 4
      %s18 = int_to_ptr.vmem [resolvable:$true] %s17
      %23 = dma.hbm_to_vmem [thread:$0]  %s0, 25600, %s18, [#allocation4], 320, 320, 20
    $region5: #{tpu_custom_call.1} parent=1 // pred_fallthru
      _
    // Predicated region
    $region6: #{tpu_custom_call.1} parent=1 // pred_check
      _
    $region7: #{tpu_custom_call.1} parent=1 // pred_check_branch
      %25 = sbr.rel (0) target = $region9
    $region8: #{tpu_custom_call.1} parent=1 // pred_region
      _
    $region9: #{tpu_custom_call.1} parent=1 // pred_fallthru
      _
    // Predicated region
    $region10: #{tpu_custom_call.1} parent=1 // pred_check
      _
    $region11: #{tpu_custom_call.1} parent=1 // pred_check_branch
      %27 = sbr.rel (0) target = $region13
    $region12: #{tpu_custom_call.1} parent=1 // pred_region
      _
    $region13: #{tpu_custom_call.1} parent=1 // pred_fallthru
      _
    // Predicated region
    $region14: #{tpu_custom_call.1} parent=1 // pred_check
      _
    $region15: #{tpu_custom_call.1} parent=1 // pred_check_branch
      %29 = sbr.rel (0) target = $region17
    $region16: #{tpu_custom_call.1} parent=1 // pred_region
      _
    $region17: #{tpu_custom_call.1} parent=1 // pred_fallthru
      _
    // Predicated region
    $region18: #{tpu_custom_call.1} parent=1 // pred_check
      _
    $region19: #{tpu_custom_call.1} parent=1 // pred_check_branch
      %31 = sbr.rel (0) target = $region21
    $region20: #{tpu_custom_call.1} parent=1 // pred_region
      _
    $region21: #{tpu_custom_call.1} parent=1 // pred_fallthru
      _
    // Predicated region
    $region22: #{tpu_custom_call.1} parent=1 // pred_check
      _
    $region23: #{tpu_custom_call.1} parent=1 // pred_check_branch
      %33 = sbr.rel (0) target = $region25
    $region24: #{tpu_custom_call.1} parent=1 // pred_region
      %34 = dma.done [#allocation4], 25600
    $region25: #{tpu_custom_call.1} parent=1 // pred_fallthru
      _
    %p36 = scmp.eq.s32.totalorder 0, 0
    // Predicated region
    $region26: #{tpu_custom_call.1} parent=1 // pred_check
      %p37 = pneg %p36
    $region27: #{tpu_custom_call.1} parent=1 // pred_check_branch
      %39 = sbr.rel (%p37) target = $region29
    $region28: #{tpu_custom_call.1} parent=1 // pred_region
      %40 = vst [vmem:[#allocation2] sm:$0xff] 0.0
      %41 = vst [vmem:[#allocation2 + $0x8] sm:$0xff] 0.0
      %42 = vst [vmem:[#allocation2 + $0x10] sm:$0xff] 0.0
      %43 = vst [vmem:[#allocation2 + $0x18] sm:$0xff] 0.0
      %44 = vst [vmem:[#allocation2 + $0x20] sm:$0xff] 0.0
      %45 = vst [vmem:[#allocation2 + $0x28] sm:$0xff] 0.0
      %46 = vst [vmem:[#allocation2 + $0x30] sm:$0xff] 0.0
      %47 = vst [vmem:[#allocation2 + $0x38] sm:$0xff] 0.0
      %48 = vst [vmem:[#allocation2 + $0x40] sm:$0xff] 0.0
      %49 = vst [vmem:[#allocation2 + $0x48] sm:$0xff] 0.0
      %50 = vst [vmem:[#allocation2 + $0x50] sm:$0xff] 0.0
      %51 = vst [vmem:[#allocation2 + $0x58] sm:$0xff] 0.0
      %52 = vst [vmem:[#allocation2 + $0x60] sm:$0xff] 0.0
      %53 = vst [vmem:[#allocation2 + $0x68] sm:$0xff] 0.0
      %54 = vst [vmem:[#allocation2 + $0x70] sm:$0xff] 0.0
      %55 = vst [vmem:[#allocation2 + $0x78] sm:$0xff] 0.0
      %56 = vst [vmem:[#allocation2 + $0x80] sm:$0xff] 0.0
      %57 = vst [vmem:[#allocation2 + $0x88] sm:$0xff] 0.0
      %58 = vst [vmem:[#allocation2 + $0x90] sm:$0xff] 0.0
      %59 = vst [vmem:[#allocation2 + $0x98] sm:$0xff] 0.0
      %60 = vst [vmem:[#allocation2 + $0xa0] sm:$0xff] 0.0
      %61 = vst [vmem:[#allocation2 + $0xa8] sm:$0xff] 0.0
      %62 = vst [vmem:[#allocation2 + $0xb0] sm:$0xff] 0.0
      %63 = vst [vmem:[#allocation2 + $0xb8] sm:$0xff] 0.0
      %64 = vst [vmem:[#allocation2 + $0xc0] sm:$0xff] 0.0
      %65 = vst [vmem:[#allocation2 + $0xc8] sm:$0xff] 0.0
      %66 = vst [vmem:[#allocation2 + $0xd0] sm:$0xff] 0.0
      %67 = vst [vmem:[#allocation2 + $0xd8] sm:$0xff] 0.0
      %68 = vst [vmem:[#allocation2 + $0xe0] sm:$0xff] 0.0
      %69 = vst [vmem:[#allocation2 + $0xe8] sm:$0xff] 0.0
      %70 = vst [vmem:[#allocation2 + $0xf0] sm:$0xff] 0.0
      %71 = vst [vmem:[#allocation2 + $0xf8] sm:$0xff] 0.0
      %72 = vst [vmem:[#allocation2 + $0x100] sm:$0xff] 0.0
      %73 = vst [vmem:[#allocation2 + $0x108] sm:$0xff] 0.0
      %74 = vst [vmem:[#allocation2 + $0x110] sm:$0xff] 0.0
      %75 = vst [vmem:[#allocation2 + $0x118] sm:$0xff] 0.0
      %76 = vst [vmem:[#allocation2 + $0x120] sm:$0xff] 0.0
      %77 = vst [vmem:[#allocation2 + $0x128] sm:$0xff] 0.0
      %78 = vst [vmem:[#allocation2 + $0x130] sm:$0xff] 0.0
      %79 = vst [vmem:[#allocation2 + $0x138] sm:$0xff] 0.0
      %80 = vst [vmem:[#allocation2 + $0x140] sm:$0xff] 0.0
      %81 = vst [vmem:[#allocation2 + $0x148] sm:$0xff] 0.0
      %82 = vst [vmem:[#allocation2 + $0x150] sm:$0xff] 0.0
      %83 = vst [vmem:[#allocation2 + $0x158] sm:$0xff] 0.0
      %84 = vst [vmem:[#allocation2 + $0x160] sm:$0xff] 0.0
      %85 = vst [vmem:[#allocation2 + $0x168] sm:$0xff] 0.0
      %86 = vst [vmem:[#allocation2 + $0x170] sm:$0xff] 0.0
      %87 = vst [vmem:[#allocation2 + $0x178] sm:$0xff] 0.0
      %88 = vst [vmem:[#allocation2 + $0x180] sm:$0xff] 0.0
      %89 = vst [vmem:[#allocation2 + $0x188] sm:$0xff] 0.0
      %90 = vst [vmem:[#allocation2 + $0x190] sm:$0xff] 0.0
      %91 = vst [vmem:[#allocation2 + $0x198] sm:$0xff] 0.0
      %92 = vst [vmem:[#allocation2 + $0x1a0] sm:$0xff] 0.0
      %93 = vst [vmem:[#allocation2 + $0x1a8] sm:$0xff] 0.0
      %94 = vst [vmem:[#allocation2 + $0x1b0] sm:$0xff] 0.0
      %95 = vst [vmem:[#allocation2 + $0x1b8] sm:$0xff] 0.0
      %96 = vst [vmem:[#allocation2 + $0x1c0] sm:$0xff] 0.0
      %97 = vst [vmem:[#allocation2 + $0x1c8] sm:$0xff] 0.0
      %98 = vst [vmem:[#allocation2 + $0x1d0] sm:$0xff] 0.0
      %99 = vst [vmem:[#allocation2 + $0x1d8] sm:$0xff] 0.0
      %100 = vst [vmem:[#allocation2 + $0x1e0] sm:$0xff] 0.0
      %101 = vst [vmem:[#allocation2 + $0x1e8] sm:$0xff] 0.0
      %102 = vst [vmem:[#allocation2 + $0x1f0] sm:$0xff] 0.0
      %103 = vst [vmem:[#allocation2 + $0x1f8] sm:$0xff] 0.0
      %104 = vst [vmem:[#allocation2 + $0x200] sm:$0xff] 0.0
      %105 = vst [vmem:[#allocation2 + $0x208] sm:$0xff] 0.0
      %106 = vst [vmem:[#allocation2 + $0x210] sm:$0xff] 0.0
      %107 = vst [vmem:[#allocation2 + $0x218] sm:$0xff] 0.0
      %108 = vst [vmem:[#allocation2 + $0x220] sm:$0xff] 0.0
      %109 = vst [vmem:[#allocation2 + $0x228] sm:$0xff] 0.0
      %110 = vst [vmem:[#allocation2 + $0x230] sm:$0xff] 0.0
      %111 = vst [vmem:[#allocation2 + $0x238] sm:$0xff] 0.0
      %112 = vst [vmem:[#allocation2 + $0x240] sm:$0xff] 0.0
      %113 = vst [vmem:[#allocation2 + $0x248] sm:$0xff] 0.0
      %114 = vst [vmem:[#allocation2 + $0x250] sm:$0xff] 0.0
      %115 = vst [vmem:[#allocation2 + $0x258] sm:$0xff] 0.0
      %116 = vst [vmem:[#allocation2 + $0x260] sm:$0xff] 0.0
      %117 = vst [vmem:[#allocation2 + $0x268] sm:$0xff] 0.0
      %118 = vst [vmem:[#allocation2 + $0x270] sm:$0xff] 0.0
      %119 = vst [vmem:[#allocation2 + $0x278] sm:$0xff] 0.0
    $region29: #{tpu_custom_call.1} parent=1 // pred_fallthru
      _
    %v120 = vld [vmem:[%s1] sm:$0xff]
    %v121 = vld [vmem:[%s1 + $0x8] sm:$0xff]
    %v122 = vld [vmem:[%s1 + $0x10] sm:$0xff]
    %v123 = vld [vmem:[%s1 + $0x18] sm:$0xff]
    %v124 = vld [vmem:[%s1 + $0x20] sm:$0xff]
    %v125 = vld [vmem:[%s1 + $0x28] sm:$0xff]
    %v126 = vld [vmem:[%s1 + $0x30] sm:$0xff]
    %v127 = vld [vmem:[%s1 + $0x38] sm:$0xff]
    %v128 = vld [vmem:[%s1 + $0x40] sm:$0xff]
    %v129 = vld [vmem:[%s1 + $0x48] sm:$0xff]
    %v130 = vld [vmem:[%s1 + $0x50] sm:$0xff]
    %v131 = vld [vmem:[%s1 + $0x58] sm:$0xff]
    %v132 = vld [vmem:[%s1 + $0x60] sm:$0xff]
    %v133 = vld [vmem:[%s1 + $0x68] sm:$0xff]
    %v134 = vld [vmem:[%s1 + $0x70] sm:$0xff]
    %v135 = vld [vmem:[%s1 + $0x78] sm:$0xff]
    %v136 = vld [vmem:[%s1 + $0x80] sm:$0xff]
    %v137 = vld [vmem:[%s1 + $0x88] sm:$0xff]
    %v138 = vld [vmem:[%s1 + $0x90] sm:$0xff]
    %v139 = vld [vmem:[%s1 + $0x98] sm:$0xff]
    %v140 = vld [vmem:[%s1 + $0xa0] sm:$0xff]
    %v141 = vld [vmem:[%s1 + $0xa8] sm:$0xff]
    %v142 = vld [vmem:[%s1 + $0xb0] sm:$0xff]
    %v143 = vld [vmem:[%s1 + $0xb8] sm:$0xff]
    %v144 = vld [vmem:[%s1 + $0xc0] sm:$0xff]
    %v145 = vld [vmem:[%s1 + $0xc8] sm:$0xff]
    %v146 = vld [vmem:[%s1 + $0xd0] sm:$0xff]
    %v147 = vld [vmem:[%s1 + $0xd8] sm:$0xff]
    %v148 = vld [vmem:[%s1 + $0xe0] sm:$0xff]
    %v149 = vld [vmem:[%s1 + $0xe8] sm:$0xff]
    %v150 = vld [vmem:[%s1 + $0xf0] sm:$0xff]
    %v151 = vld [vmem:[%s1 + $0xf8] sm:$0xff]
    %v152 = vld [vmem:[%s1 + $0x100] sm:$0xff]
    %v153 = vld [vmem:[%s1 + $0x108] sm:$0xff]
    %v154 = vld [vmem:[%s1 + $0x110] sm:$0xff]
    %v155 = vld [vmem:[%s1 + $0x118] sm:$0xff]
    %v156 = vld [vmem:[%s1 + $0x120] sm:$0xff]
    %v157 = vld [vmem:[%s1 + $0x128] sm:$0xff]
    %v158 = vld [vmem:[%s1 + $0x130] sm:$0xff]
    %v159 = vld [vmem:[%s1 + $0x138] sm:$0xff]
    %v160 = vld [vmem:[%s1 + $0x140] sm:$0xff]
    %v161 = vld [vmem:[%s1 + $0x148] sm:$0xff]
    %v162 = vld [vmem:[%s1 + $0x150] sm:$0xff]
    %v163 = vld [vmem:[%s1 + $0x158] sm:$0xff]
    %v164 = vld [vmem:[%s1 + $0x160] sm:$0xff]
    %v165 = vld [vmem:[%s1 + $0x168] sm:$0xff]
    %v166 = vld [vmem:[%s1 + $0x170] sm:$0xff]
    %v167 = vld [vmem:[%s1 + $0x178] sm:$0xff]
    %v168 = vld [vmem:[%s1 + $0x180] sm:$0xff]
    %v169 = vld [vmem:[%s1 + $0x188] sm:$0xff]
    %v170 = vld [vmem:[%s1 + $0x190] sm:$0xff]
    %v171 = vld [vmem:[%s1 + $0x198] sm:$0xff]
    %v172 = vld [vmem:[%s1 + $0x1a0] sm:$0xff]
    %v173 = vld [vmem:[%s1 + $0x1a8] sm:$0xff]
    %v174 = vld [vmem:[%s1 + $0x1b0] sm:$0xff]
    %v175 = vld [vmem:[%s1 + $0x1b8] sm:$0xff]
    %v176 = vld [vmem:[%s1 + $0x1c0] sm:$0xff]
    %v177 = vld [vmem:[%s1 + $0x1c8] sm:$0xff]
    %v178 = vld [vmem:[%s1 + $0x1d0] sm:$0xff]
    %v179 = vld [vmem:[%s1 + $0x1d8] sm:$0xff]
    %v180 = vld [vmem:[%s1 + $0x1e0] sm:$0xff]
    %v181 = vld [vmem:[%s1 + $0x1e8] sm:$0xff]
    %v182 = vld [vmem:[%s1 + $0x1f0] sm:$0xff]
    %v183 = vld [vmem:[%s1 + $0x1f8] sm:$0xff]
    %v184 = vld [vmem:[%s1 + $0x200] sm:$0xff]
    %v185 = vld [vmem:[%s1 + $0x208] sm:$0xff]
    %v186 = vld [vmem:[%s1 + $0x210] sm:$0xff]
    %v187 = vld [vmem:[%s1 + $0x218] sm:$0xff]
    %v188 = vld [vmem:[%s1 + $0x220] sm:$0xff]
    %v189 = vld [vmem:[%s1 + $0x228] sm:$0xff]
    %v190 = vld [vmem:[%s1 + $0x230] sm:$0xff]
    %v191 = vld [vmem:[%s1 + $0x238] sm:$0xff]
    %v192 = vld [vmem:[%s1 + $0x240] sm:$0xff]
    %v193 = vld [vmem:[%s1 + $0x248] sm:$0xff]
    %v194 = vld [vmem:[%s1 + $0x250] sm:$0xff]
    %v195 = vld [vmem:[%s1 + $0x258] sm:$0xff]
    %v196 = vld [vmem:[%s1 + $0x260] sm:$0xff]
    %v197 = vld [vmem:[%s1 + $0x268] sm:$0xff]
    %v198 = vld [vmem:[%s1 + $0x270] sm:$0xff]
    %v199 = vld [vmem:[%s1 + $0x278] sm:$0xff]
    %v200 = vld [vmem:[%s2] sm:$0xff]
    %vm201 = vcmask 64512
    %v203 = vsel %vm201, %v120, 0
    %v206 = vsel %vm201, %v121, 0
    %v209 = vsel %vm201, %v122, 0
    %v212 = vsel %vm201, %v123, 0
    %v215 = vsel %vm201, %v124, 0
    %v218 = vsel %vm201, %v125, 0
    %v221 = vsel %vm201, %v126, 0
    %v224 = vsel %vm201, %v127, 0
    %v227 = vsel %vm201, %v128, 0
    %v230 = vsel %vm201, %v129, 0
    %v233 = vsel %vm201, %v130, 0
    %v236 = vsel %vm201, %v131, 0
    %v239 = vsel %vm201, %v132, 0
    %v242 = vsel %vm201, %v133, 0
    %v245 = vsel %vm201, %v134, 0
    %v248 = vsel %vm201, %v135, 0
    %v251 = vsel %vm201, %v136, 0
    %v254 = vsel %vm201, %v137, 0
    %v257 = vsel %vm201, %v138, 0
    %v260 = vsel %vm201, %v139, 0
    %v263 = vsel %vm201, %v140, 0
    %v266 = vsel %vm201, %v141, 0
    %v269 = vsel %vm201, %v142, 0
    %v272 = vsel %vm201, %v143, 0
    %v275 = vsel %vm201, %v144, 0
    %v278 = vsel %vm201, %v145, 0
    %v281 = vsel %vm201, %v146, 0
    %v284 = vsel %vm201, %v147, 0
    %v287 = vsel %vm201, %v148, 0
    %v290 = vsel %vm201, %v149, 0
    %v293 = vsel %vm201, %v150, 0
    %v296 = vsel %vm201, %v151, 0
    %v299 = vsel %vm201, %v152, 0
    %v302 = vsel %vm201, %v153, 0
    %v305 = vsel %vm201, %v154, 0
    %v308 = vsel %vm201, %v155, 0
    %v311 = vsel %vm201, %v156, 0
    %v314 = vsel %vm201, %v157, 0
    %v317 = vsel %vm201, %v158, 0
    %v320 = vsel %vm201, %v159, 0
    %v323 = vsel %vm201, %v160, 0
    %v326 = vsel %vm201, %v161, 0
    %v329 = vsel %vm201, %v162, 0
    %v332 = vsel %vm201, %v163, 0
    %v335 = vsel %vm201, %v164, 0
    %v338 = vsel %vm201, %v165, 0
    %v341 = vsel %vm201, %v166, 0
    %v344 = vsel %vm201, %v167, 0
    %v347 = vsel %vm201, %v168, 0
    %v350 = vsel %vm201, %v169, 0
    %v353 = vsel %vm201, %v170, 0
    %v356 = vsel %vm201, %v171, 0
    %v359 = vsel %vm201, %v172, 0
    %v362 = vsel %vm201, %v173, 0
    %v365 = vsel %vm201, %v174, 0
    %v368 = vsel %vm201, %v175, 0
    %v371 = vsel %vm201, %v176, 0
    %v374 = vsel %vm201, %v177, 0
    %v377 = vsel %vm201, %v178, 0
    %v380 = vsel %vm201, %v179, 0
    %v383 = vsel %vm201, %v180, 0
    %v386 = vsel %vm201, %v181, 0
    %v389 = vsel %vm201, %v182, 0
    %v392 = vsel %vm201, %v183, 0
    %v395 = vsel %vm201, %v184, 0
    %v398 = vsel %vm201, %v185, 0
    %v401 = vsel %vm201, %v186, 0
    %v404 = vsel %vm201, %v187, 0
    %v407 = vsel %vm201, %v188, 0
    %v410 = vsel %vm201, %v189, 0
    %v413 = vsel %vm201, %v190, 0
    %v416 = vsel %vm201, %v191, 0
    %v419 = vsel %vm201, %v192, 0
    %v422 = vsel %vm201, %v193, 0
    %v425 = vsel %vm201, %v194, 0
    %v428 = vsel %vm201, %v195, 0
    %v431 = vsel %vm201, %v196, 0
    %v434 = vsel %vm201, %v197, 0
    %v437 = vsel %vm201, %v198, 0
    %v440 = vsel %vm201, %v199, 0
    %442 = vmatprep.subr.mxu0 0.0
    %443 = vmatpush1.msra.mxu0 %v200
    %444 = vmatprep.subr.mxu0 0.0
    %445 = vmatpush1.msra.mxu0 0.0
    %446 = vmatprep.subr.mxu0 0.0
    %447 = vmatpush1.msra.mxu0 0.0
    %448 = vmatprep.subr.mxu0 0.0
    %449 = vmatpush1.msra.mxu0 0.0
    %450 = vmatprep.subr.mxu0 0.0
    %451 = vmatpush1.msra.mxu0 0.0
    %452 = vmatprep.subr.mxu0 0.0
    %453 = vmatpush1.msra.mxu0 0.0
    %454 = vmatprep.subr.mxu0 0.0
    %455 = vmatpush1.msra.mxu0 0.0
    %456 = vmatprep.subr.mxu0 0.0
    %457 = vmatpush1.msra.mxu0 0.0
    %458 = vmatprep.subr.mxu0 0.0
    %459 = vmatpush1.msra.mxu0 0.0
    %460 = vmatprep.subr.mxu0 0.0
    %461 = vmatpush1.msra.mxu0 0.0
    %462 = vmatprep.subr.mxu0 0.0
    %463 = vmatpush1.msra.mxu0 0.0
    %464 = vmatprep.subr.mxu0 0.0
    %465 = vmatpush1.msra.mxu0 0.0
    %466 = vmatprep.subr.mxu0 0.0
    %467 = vmatpush1.msra.mxu0 0.0
    %468 = vmatprep.subr.mxu0 0.0
    %469 = vmatpush1.msra.mxu0 0.0
    %470 = vmatprep.subr.mxu0 0.0
    %471 = vmatpush1.msra.mxu0 0.0
    %472 = vmatprep.subr.mxu0 0.0
    %473 = vmatpush1.msra.mxu0 0.0
    %474 = vmatprep.subr.mxu0 0.0
    %475 = vmatpush1.msra.mxu0 0.0
    %476 = vmatprep.subr.mxu0 0.0
    %477 = vmatpush1.msra.mxu0 0.0
    %478 = vmatprep.subr.mxu0 0.0
    %479 = vmatpush1.msra.mxu0 0.0
    %480 = vmatprep.subr.mxu0 0.0
    %481 = vmatpush1.msra.mxu0 0.0
    %482 = vmatprep.subr.mxu0 0.0
    %483 = vmatpush1.msra.mxu0 0.0
    %484 = vmatprep.subr.mxu0 0.0
    %485 = vmatpush1.msra.mxu0 0.0
    %486 = vmatprep.subr.mxu0 0.0
    %487 = vmatpush1.msra.mxu0 0.0
    %488 = vmatprep.subr.mxu0 0.0
    %489 = vmatpush1.msra.mxu0 0.0
    %490 = vmatprep.subr.mxu0 0.0
    %491 = vmatpush1.msra.mxu0 0.0
    %492 = vmatprep.subr.mxu0 0.0
    %493 = vmatpush1.msra.mxu0 0.0
    %494 = vmatprep.subr.mxu0 0.0
    %495 = vmatpush1.msra.mxu0 0.0
    %496 = vmatprep.subr.mxu0 0.0
    %497 = vmatpush1.msra.mxu0 0.0
    %498 = vmatprep.subr.mxu0 0.0
    %499 = vmatpush1.msra.mxu0 0.0
    %500 = vmatprep.subr.mxu0 0.0
    %501 = vmatpush1.msra.mxu0 0.0
    %502 = vmatprep.subr.mxu0 0.0
    %503 = vmatpush1.msra.mxu0 0.0
    %504 = vmatprep.subr.mxu0 0.0
    %505 = vmatpush1.msra.mxu0 0.0
    %506 = vmatprep.mubr.f32.mxu0 0.0
    %507 = vmatmul.mubr.f32.gmra.mrb[0].mxu0 %v203
    %v508 = vpop.f32.mrb[0].mxu0
    %v509 = vadd.f32 0.0, %v508
    %v510 = vpop.f32.mrb[0].mxu0
    %511 = vmatprep.mubr.f32.mxu0 0.0
    %512 = vmatmul.mubr.f32.gmra.mrb[0].mxu0 %v206
    %v513 = vpop.f32.mrb[0].mxu0
    %v514 = vadd.f32 0.0, %v513
    %v515 = vpop.f32.mrb[0].mxu0
    %516 = vmatprep.mubr.f32.mxu0 0.0
    %517 = vmatmul.mubr.f32.gmra.mrb[0].mxu0 %v209
    %v518 = vpop.f32.mrb[0].mxu0
    %v519 = vadd.f32 0.0, %v518
    %v520 = vpop.f32.mrb[0].mxu0
    %521 = vmatprep.mubr.f32.mxu0 0.0
    %522 = vmatmul.mubr.f32.gmra.mrb[0].mxu0 %v212
    %v523 = vpop.f32.mrb[0].mxu0
    %v524 = vadd.f32 0.0, %v523
    %v525 = vpop.f32.mrb[0].mxu0
    %526 = vmatprep.mubr.f32.mxu0 0.0
    %527 = vmatmul.mubr.f32.gmra.mrb[0].mxu0 %v215
    %v528 = vpop.f32.mrb[0].mxu0
    %v529 = vadd.f32 0.0, %v528
    %v530 = vpop.f32.mrb[0].mxu0
    %531 = vmatprep.mubr.f32.mxu0 0.0
    %532 = vmatmul.mubr.f32.gmra.mrb[0].mxu0 %v218
    %v533 = vpop.f32.mrb[0].mxu0
    %v534 = vadd.f32 0.0, %v533
    %v535 = vpop.f32.mrb[0].mxu0
    %536 = vmatprep.mubr.f32.mxu0 0.0
    %537 = vmatmul.mubr.f32.gmra.mrb[0].mxu0 %v221
    %v538 = vpop.f32.mrb[0].mxu0
    %v539 = vadd.f32 0.0, %v538
    %v540 = vpop.f32.mrb[0].mxu0
    %541 = vmatprep.mubr.f32.mxu0 0.0
    %542 = vmatmul.mubr.f32.gmra.mrb[0].mxu0 %v224
    %v543 = vpop.f32.mrb[0].mxu0
    %v544 = vadd.f32 0.0, %v543
    %v545 = vpop.f32.mrb[0].mxu0
    %546 = vmatprep.mubr.f32.mxu0 0.0
    %547 = vmatmul.mubr.f32.gmra.mrb[0].mxu0 %v227
    %v548 = vpop.f32.mrb[0].mxu0
    %v549 = vadd.f32 0.0, %v548
    %v550 = vpop.f32.mrb[0].mxu0
    %551 = vmatprep.mubr.f32.mxu0 0.0
    %552 = vmatmul.mubr.f32.gmra.mrb[0].mxu0 %v230
    %v553 = vpop.f32.mrb[0].mxu0
    %v554 = vadd.f32 0.0, %v553
    %v555 = vpop.f32.mrb[0].mxu0
    %556 = vmatprep.mubr.f32.mxu0 0.0
    %557 = vmatmul.mubr.f32.gmra.mrb[0].mxu0 %v233
    %v558 = vpop.f32.mrb[0].mxu0
    %v559 = vadd.f32 0.0, %v558
    %v560 = vpop.f32.mrb[0].mxu0
    %561 = vmatprep.mubr.f32.mxu0 0.0
    %562 = vmatmul.mubr.f32.gmra.mrb[0].mxu0 %v236
    %v563 = vpop.f32.mrb[0].mxu0
    %v564 = vadd.f32 0.0, %v563
    %v565 = vpop.f32.mrb[0].mxu0
    %566 = vmatprep.mubr.f32.mxu0 0.0
    %567 = vmatmul.mubr.f32.gmra.mrb[0].mxu0 %v239
    %v568 = vpop.f32.mrb[0].mxu0
    %v569 = vadd.f32 0.0, %v568
    %v570 = vpop.f32.mrb[0].mxu0
    %571 = vmatprep.mubr.f32.mxu0 0.0
    %572 = vmatmul.mubr.f32.gmra.mrb[0].mxu0 %v242
    %v573 = vpop.f32.mrb[0].mxu0
    %v574 = vadd.f32 0.0, %v573
    %v575 = vpop.f32.mrb[0].mxu0
    %576 = vmatprep.mubr.f32.mxu0 0.0
    %577 = vmatmul.mubr.f32.gmra.mrb[0].mxu0 %v245
    %v578 = vpop.f32.mrb[0].mxu0
    %v579 = vadd.f32 0.0, %v578
    %v580 = vpop.f32.mrb[0].mxu0
    %581 = vmatprep.mubr.f32.mxu0 0.0
    %582 = vmatmul.mubr.f32.gmra.mrb[0].mxu0 %v248
    %v583 = vpop.f32.mrb[0].mxu0
    %v584 = vadd.f32 0.0, %v583
    %v585 = vpop.f32.mrb[0].mxu0
    %586 = vmatprep.mubr.f32.mxu0 0.0
    %587 = vmatmul.mubr.f32.gmra.mrb[0].mxu0 %v251
    %v588 = vpop.f32.mrb[0].mxu0
    %v589 = vadd.f32 0.0, %v588
    %v590 = vpop.f32.mrb[0].mxu0
    %591 = vmatprep.mubr.f32.mxu0 0.0
    %592 = vmatmul.mubr.f32.gmra.mrb[0].mxu0 %v254
    %v593 = vpop.f32.mrb[0].mxu0
    %v594 = vadd.f32 0.0, %v593
    %v595 = vpop.f32.mrb[0].mxu0
    %596 = vmatprep.mubr.f32.mxu0 0.0
    %597 = vmatmul.mubr.f32.gmra.mrb[0].mxu0 %v257
    %v598 = vpop.f32.mrb[0].mxu0
    %v599 = vadd.f32 0.0, %v598
    %v600 = vpop.f32.mrb[0].mxu0
    %601 = vmatprep.mubr.f32.mxu0 0.0
    %602 = vmatmul.mubr.f32.gmra.mrb[0].mxu0 %v260
    %v603 = vpop.f32.mrb[0].mxu0
    %v604 = vadd.f32 0.0, %v603
    %v605 = vpop.f32.mrb[0].mxu0
    %606 = vmatprep.mubr.f32.mxu0 0.0
    %607 = vmatmul.mubr.f32.gmra.mrb[0].mxu0 %v263
    %v608 = vpop.f32.mrb[0].mxu0
    %v609 = vadd.f32 0.0, %v608
    %v610 = vpop.f32.mrb[0].mxu0
    %611 = vmatprep.mubr.f32.mxu0 0.0
    %612 = vmatmul.mubr.f32.gmra.mrb[0].mxu0 %v266
    %v613 = vpop.f32.mrb[0].mxu0
    %v614 = vadd.f32 0.0, %v613
    %v615 = vpop.f32.mrb[0].mxu0
    %616 = vmatprep.mubr.f32.mxu0 0.0
    %617 = vmatmul.mubr.f32.gmra.mrb[0].mxu0 %v269
    %v618 = vpop.f32.mrb[0].mxu0
    %v619 = vadd.f32 0.0, %v618
    %v620 = vpop.f32.mrb[0].mxu0
    %621 = vmatprep.mubr.f32.mxu0 0.0
    %622 = vmatmul.mubr.f32.gmra.mrb[0].mxu0 %v272
    %v623 = vpop.f32.mrb[0].mxu0
    %v624 = vadd.f32 0.0, %v623
    %v625 = vpop.f32.mrb[0].mxu0
    %626 = vmatprep.mubr.f32.mxu0 0.0
    %627 = vmatmul.mubr.f32.gmra.mrb[0].mxu0 %v275
    %v628 = vpop.f32.mrb[0].mxu0
    %v629 = vadd.f32 0.0, %v628
    %v630 = vpop.f32.mrb[0].mxu0
    %631 = vmatprep.mubr.f32.mxu0 0.0
    %632 = vmatmul.mubr.f32.gmra.mrb[0].mxu0 %v278
    %v633 = vpop.f32.mrb[0].mxu0
    %v634 = vadd.f32 0.0, %v633
    %v635 = vpop.f32.mrb[0].mxu0
    %636 = vmatprep.mubr.f32.mxu0 0.0
    %637 = vmatmul.mubr.f32.gmra.mrb[0].mxu0 %v281
    %v638 = vpop.f32.mrb[0].mxu0
    %v639 = vadd.f32 0.0, %v638
    %v640 = vpop.f32.mrb[0].mxu0
    %641 = vmatprep.mubr.f32.mxu0 0.0
    %642 = vmatmul.mubr.f32.gmra.mrb[0].mxu0 %v284
    %v643 = vpop.f32.mrb[0].mxu0
    %v644 = vadd.f32 0.0, %v643
    %v645 = vpop.f32.mrb[0].mxu0
    %646 = vmatprep.mubr.f32.mxu0 0.0
    %647 = vmatmul.mubr.f32.gmra.mrb[0].mxu0 %v287
    %v648 = vpop.f32.mrb[0].mxu0
    %v649 = vadd.f32 0.0, %v648
    %v650 = vpop.f32.mrb[0].mxu0
    %651 = vmatprep.mubr.f32.mxu0 0.0
    %652 = vmatmul.mubr.f32.gmra.mrb[0].mxu0 %v290
    %v653 = vpop.f32.mrb[0].mxu0
    %v654 = vadd.f32 0.0, %v653
    %v655 = vpop.f32.mrb[0].mxu0
    %656 = vmatprep.mubr.f32.mxu0 0.0
    %657 = vmatmul.mubr.f32.gmra.mrb[0].mxu0 %v293
    %v658 = vpop.f32.mrb[0].mxu0
    %v659 = vadd.f32 0.0, %v658
    %v660 = vpop.f32.mrb[0].mxu0
    %661 = vmatprep.mubr.f32.mxu0 0.0
    %662 = vmatmul.mubr.f32.gmra.mrb[0].mxu0 %v296
    %v663 = vpop.f32.mrb[0].mxu0
    %v664 = vadd.f32 0.0, %v663
    %v665 = vpop.f32.mrb[0].mxu0
    %666 = vmatprep.mubr.f32.mxu0 0.0
    %667 = vmatmul.mubr.f32.gmra.mrb[0].mxu0 %v299
    %v668 = vpop.f32.mrb[0].mxu0
    %v669 = vadd.f32 0.0, %v668
    %v670 = vpop.f32.mrb[0].mxu0
    %671 = vmatprep.mubr.f32.mxu0 0.0
    %672 = vmatmul.mubr.f32.gmra.mrb[0].mxu0 %v302
    %v673 = vpop.f32.mrb[0].mxu0
    %v674 = vadd.f32 0.0, %v673
    %v675 = vpop.f32.mrb[0].mxu0
    %676 = vmatprep.mubr.f32.mxu0 0.0
    %677 = vmatmul.mubr.f32.gmra.mrb[0].mxu0 %v305
    %v678 = vpop.f32.mrb[0].mxu0
    %v679 = vadd.f32 0.0, %v678
    %v680 = vpop.f32.mrb[0].mxu0
    %681 = vmatprep.mubr.f32.mxu0 0.0
    %682 = vmatmul.mubr.f32.gmra.mrb[0].mxu0 %v308
    %v683 = vpop.f32.mrb[0].mxu0
    %v684 = vadd.f32 0.0, %v683
    %v685 = vpop.f32.mrb[0].mxu0
    %686 = vmatprep.mubr.f32.mxu0 0.0
    %687 = vmatmul.mubr.f32.gmra.mrb[0].mxu0 %v311
    %v688 = vpop.f32.mrb[0].mxu0
    %v689 = vadd.f32 0.0, %v688
    %v690 = vpop.f32.mrb[0].mxu0
    %691 = vmatprep.mubr.f32.mxu0 0.0
    %692 = vmatmul.mubr.f32.gmra.mrb[0].mxu0 %v314
    %v693 = vpop.f32.mrb[0].mxu0
    %v694 = vadd.f32 0.0, %v693
    %v695 = vpop.f32.mrb[0].mxu0
    %696 = vmatprep.mubr.f32.mxu0 0.0
    %697 = vmatmul.mubr.f32.gmra.mrb[0].mxu0 %v317
    %v698 = vpop.f32.mrb[0].mxu0
    %v699 = vadd.f32 0.0, %v698
    %v700 = vpop.f32.mrb[0].mxu0
    %701 = vmatprep.mubr.f32.mxu0 0.0
    %702 = vmatmul.mubr.f32.gmra.mrb[0].mxu0 %v320
    %v703 = vpop.f32.mrb[0].mxu0
    %v704 = vadd.f32 0.0, %v703
    %v705 = vpop.f32.mrb[0].mxu0
    %706 = vmatprep.mubr.f32.mxu0 0.0
    %707 = vmatmul.mubr.f32.gmra.mrb[0].mxu0 %v323
    %v708 = vpop.f32.mrb[0].mxu0
    %v709 = vadd.f32 0.0, %v708
    %v710 = vpop.f32.mrb[0].mxu0
    %711 = vmatprep.mubr.f32.mxu0 0.0
    %712 = vmatmul.mubr.f32.gmra.mrb[0].mxu0 %v326
    %v713 = vpop.f32.mrb[0].mxu0
    %v714 = vadd.f32 0.0, %v713
    %v715 = vpop.f32.mrb[0].mxu0
    %716 = vmatprep.mubr.f32.mxu0 0.0
    %717 = vmatmul.mubr.f32.gmra.mrb[0].mxu0 %v329
    %v718 = vpop.f32.mrb[0].mxu0
    %v719 = vadd.f32 0.0, %v718
    %v720 = vpop.f32.mrb[0].mxu0
    %721 = vmatprep.mubr.f32.mxu0 0.0
    %722 = vmatmul.mubr.f32.gmra.mrb[0].mxu0 %v332
    %v723 = vpop.f32.mrb[0].mxu0
    %v724 = vadd.f32 0.0, %v723
    %v725 = vpop.f32.mrb[0].mxu0
    %726 = vmatprep.mubr.f32.mxu0 0.0
    %727 = vmatmul.mubr.f32.gmra.mrb[0].mxu0 %v335
    %v728 = vpop.f32.mrb[0].mxu0
    %v729 = vadd.f32 0.0, %v728
    %v730 = vpop.f32.mrb[0].mxu0
    %731 = vmatprep.mubr.f32.mxu0 0.0
    %732 = vmatmul.mubr.f32.gmra.mrb[0].mxu0 %v338
    %v733 = vpop.f32.mrb[0].mxu0
    %v734 = vadd.f32 0.0, %v733
    %v735 = vpop.f32.mrb[0].mxu0
    %736 = vmatprep.mubr.f32.mxu0 0.0
    %737 = vmatmul.mubr.f32.gmra.mrb[0].mxu0 %v341
    %v738 = vpop.f32.mrb[0].mxu0
    %v739 = vadd.f32 0.0, %v738
    %v740 = vpop.f32.mrb[0].mxu0
    %741 = vmatprep.mubr.f32.mxu0 0.0
    %742 = vmatmul.mubr.f32.gmra.mrb[0].mxu0 %v344
    %v743 = vpop.f32.mrb[0].mxu0
    %v744 = vadd.f32 0.0, %v743
    %v745 = vpop.f32.mrb[0].mxu0
    %746 = vmatprep.mubr.f32.mxu0 0.0
    %747 = vmatmul.mubr.f32.gmra.mrb[0].mxu0 %v347
    %v748 = vpop.f32.mrb[0].mxu0
    %v749 = vadd.f32 0.0, %v748
    %v750 = vpop.f32.mrb[0].mxu0
    %751 = vmatprep.mubr.f32.mxu0 0.0
    %752 = vmatmul.mubr.f32.gmra.mrb[0].mxu0 %v350
    %v753 = vpop.f32.mrb[0].mxu0
    %v754 = vadd.f32 0.0, %v753
    %v755 = vpop.f32.mrb[0].mxu0
    %756 = vmatprep.mubr.f32.mxu0 0.0
    %757 = vmatmul.mubr.f32.gmra.mrb[0].mxu0 %v353
    %v758 = vpop.f32.mrb[0].mxu0
    %v759 = vadd.f32 0.0, %v758
    %v760 = vpop.f32.mrb[0].mxu0
    %761 = vmatprep.mubr.f32.mxu0 0.0
    %762 = vmatmul.mubr.f32.gmra.mrb[0].mxu0 %v356
    %v763 = vpop.f32.mrb[0].mxu0
    %v764 = vadd.f32 0.0, %v763
    %v765 = vpop.f32.mrb[0].mxu0
    %766 = vmatprep.mubr.f32.mxu0 0.0
    %767 = vmatmul.mubr.f32.gmra.mrb[0].mxu0 %v359
    %v768 = vpop.f32.mrb[0].mxu0
    %v769 = vadd.f32 0.0, %v768
    %v770 = vpop.f32.mrb[0].mxu0
    %771 = vmatprep.mubr.f32.mxu0 0.0
    %772 = vmatmul.mubr.f32.gmra.mrb[0].mxu0 %v362
    %v773 = vpop.f32.mrb[0].mxu0
    %v774 = vadd.f32 0.0, %v773
    %v775 = vpop.f32.mrb[0].mxu0
    %776 = vmatprep.mubr.f32.mxu0 0.0
    %777 = vmatmul.mubr.f32.gmra.mrb[0].mxu0 %v365
    %v778 = vpop.f32.mrb[0].mxu0
    %v779 = vadd.f32 0.0, %v778
    %v780 = vpop.f32.mrb[0].mxu0
    %781 = vmatprep.mubr.f32.mxu0 0.0
    %782 = vmatmul.mubr.f32.gmra.mrb[0].mxu0 %v368
    %v783 = vpop.f32.mrb[0].mxu0
    %v784 = vadd.f32 0.0, %v783
    %v785 = vpop.f32.mrb[0].mxu0
    %786 = vmatprep.mubr.f32.mxu0 0.0
    %787 = vmatmul.mubr.f32.gmra.mrb[0].mxu0 %v371
    %v788 = vpop.f32.mrb[0].mxu0
    %v789 = vadd.f32 0.0, %v788
    %v790 = vpop.f32.mrb[0].mxu0
    %791 = vmatprep.mubr.f32.mxu0 0.0
    %792 = vmatmul.mubr.f32.gmra.mrb[0].mxu0 %v374
    %v793 = vpop.f32.mrb[0].mxu0
    %v794 = vadd.f32 0.0, %v793
    %v795 = vpop.f32.mrb[0].mxu0
    %796 = vmatprep.mubr.f32.mxu0 0.0
    %797 = vmatmul.mubr.f32.gmra.mrb[0].mxu0 %v377
    %v798 = vpop.f32.mrb[0].mxu0
    %v799 = vadd.f32 0.0, %v798
    %v800 = vpop.f32.mrb[0].mxu0
    %801 = vmatprep.mubr.f32.mxu0 0.0
    %802 = vmatmul.mubr.f32.gmra.mrb[0].mxu0 %v380
    %v803 = vpop.f32.mrb[0].mxu0
    %v804 = vadd.f32 0.0, %v803
    %v805 = vpop.f32.mrb[0].mxu0
    %806 = vmatprep.mubr.f32.mxu0 0.0
    %807 = vmatmul.mubr.f32.gmra.mrb[0].mxu0 %v383
    %v808 = vpop.f32.mrb[0].mxu0
    %v809 = vadd.f32 0.0, %v808
    %v810 = vpop.f32.mrb[0].mxu0
    %811 = vmatprep.mubr.f32.mxu0 0.0
    %812 = vmatmul.mubr.f32.gmra.mrb[0].mxu0 %v386
    %v813 = vpop.f32.mrb[0].mxu0
    %v814 = vadd.f32 0.0, %v813
    %v815 = vpop.f32.mrb[0].mxu0
    %816 = vmatprep.mubr.f32.mxu0 0.0
    %817 = vmatmul.mubr.f32.gmra.mrb[0].mxu0 %v389
    %v818 = vpop.f32.mrb[0].mxu0
    %v819 = vadd.f32 0.0, %v818
    %v820 = vpop.f32.mrb[0].mxu0
    %821 = vmatprep.mubr.f32.mxu0 0.0
    %822 = vmatmul.mubr.f32.gmra.mrb[0].mxu0 %v392
    %v823 = vpop.f32.mrb[0].mxu0
    %v824 = vadd.f32 0.0, %v823
    %v825 = vpop.f32.mrb[0].mxu0
    %826 = vmatprep.mubr.f32.mxu0 0.0
    %827 = vmatmul.mubr.f32.gmra.mrb[0].mxu0 %v395
    %v828 = vpop.f32.mrb[0].mxu0
    %v829 = vadd.f32 0.0, %v828
    %v830 = vpop.f32.mrb[0].mxu0
    %831 = vmatprep.mubr.f32.mxu0 0.0
    %832 = vmatmul.mubr.f32.gmra.mrb[0].mxu0 %v398
    %v833 = vpop.f32.mrb[0].mxu0
    %v834 = vadd.f32 0.0, %v833
    %v835 = vpop.f32.mrb[0].mxu0
    %836 = vmatprep.mubr.f32.mxu0 0.0
    %837 = vmatmul.mubr.f32.gmra.mrb[0].mxu0 %v401
    %v838 = vpop.f32.mrb[0].mxu0
    %v839 = vadd.f32 0.0, %v838
    %v840 = vpop.f32.mrb[0].mxu0
    %841 = vmatprep.mubr.f32.mxu0 0.0
    %842 = vmatmul.mubr.f32.gmra.mrb[0].mxu0 %v404
    %v843 = vpop.f32.mrb[0].mxu0
    %v844 = vadd.f32 0.0, %v843
    %v845 = vpop.f32.mrb[0].mxu0
    %846 = vmatprep.mubr.f32.mxu0 0.0
    %847 = vmatmul.mubr.f32.gmra.mrb[0].mxu0 %v407
    %v848 = vpop.f32.mrb[0].mxu0
    %v849 = vadd.f32 0.0, %v848
    %v850 = vpop.f32.mrb[0].mxu0
    %851 = vmatprep.mubr.f32.mxu0 0.0
    %852 = vmatmul.mubr.f32.gmra.mrb[0].mxu0 %v410
    %v853 = vpop.f32.mrb[0].mxu0
    %v854 = vadd.f32 0.0, %v853
    %v855 = vpop.f32.mrb[0].mxu0
    %856 = vmatprep.mubr.f32.mxu0 0.0
    %857 = vmatmul.mubr.f32.gmra.mrb[0].mxu0 %v413
    %v858 = vpop.f32.mrb[0].mxu0
    %v859 = vadd.f32 0.0, %v858
    %v860 = vpop.f32.mrb[0].mxu0
    %861 = vmatprep.mubr.f32.mxu0 0.0
    %862 = vmatmul.mubr.f32.gmra.mrb[0].mxu0 %v416
    %v863 = vpop.f32.mrb[0].mxu0
    %v864 = vadd.f32 0.0, %v863
    %v865 = vpop.f32.mrb[0].mxu0
    %866 = vmatprep.mubr.f32.mxu0 0.0
    %867 = vmatmul.mubr.f32.gmra.mrb[0].mxu0 %v419
    %v868 = vpop.f32.mrb[0].mxu0
    %v869 = vadd.f32 0.0, %v868
    %v870 = vpop.f32.mrb[0].mxu0
    %871 = vmatprep.mubr.f32.mxu0 0.0
    %872 = vmatmul.mubr.f32.gmra.mrb[0].mxu0 %v422
    %v873 = vpop.f32.mrb[0].mxu0
    %v874 = vadd.f32 0.0, %v873
    %v875 = vpop.f32.mrb[0].mxu0
    %876 = vmatprep.mubr.f32.mxu0 0.0
    %877 = vmatmul.mubr.f32.gmra.mrb[0].mxu0 %v425
    %v878 = vpop.f32.mrb[0].mxu0
    %v879 = vadd.f32 0.0, %v878
    %v880 = vpop.f32.mrb[0].mxu0
    %881 = vmatprep.mubr.f32.mxu0 0.0
    %882 = vmatmul.mubr.f32.gmra.mrb[0].mxu0 %v428
    %v883 = vpop.f32.mrb[0].mxu0
    %v884 = vadd.f32 0.0, %v883
    %v885 = vpop.f32.mrb[0].mxu0
    %886 = vmatprep.mubr.f32.mxu0 0.0
    %887 = vmatmul.mubr.f32.gmra.mrb[0].mxu0 %v431
    %v888 = vpop.f32.mrb[0].mxu0
    %v889 = vadd.f32 0.0, %v888
    %v890 = vpop.f32.mrb[0].mxu0
    %891 = vmatprep.mubr.f32.mxu0 0.0
    %892 = vmatmul.mubr.f32.gmra.mrb[0].mxu0 %v434
    %v893 = vpop.f32.mrb[0].mxu0
    %v894 = vadd.f32 0.0, %v893
    %v895 = vpop.f32.mrb[0].mxu0
    %896 = vmatprep.mubr.f32.mxu0 0.0
    %897 = vmatmul.mubr.f32.gmra.mrb[0].mxu0 %v437
    %v898 = vpop.f32.mrb[0].mxu0
    %v899 = vadd.f32 0.0, %v898
    %v900 = vpop.f32.mrb[0].mxu0
    %901 = vmatprep.mubr.f32.mxu0 0.0
    %902 = vmatmul.mubr.f32.gmra.mrb[0].mxu0 %v440
    %v903 = vpop.f32.mrb[0].mxu0
    %v904 = vadd.f32 0.0, %v903
    %v905 = vpop.f32.mrb[0].mxu0
    %906 = vdwg.mxu0
    %v907 = vld [vmem:[#allocation2] sm:$0xff]
    %v908 = vld [vmem:[#allocation2 + $0x8] sm:$0xff]
    %v909 = vld [vmem:[#allocation2 + $0x10] sm:$0xff]
    %v910 = vld [vmem:[#allocation2 + $0x18] sm:$0xff]
    %v911 = vld [vmem:[#allocation2 + $0x20] sm:$0xff]
    %v912 = vld [vmem:[#allocation2 + $0x28] sm:$0xff]
    %v913 = vld [vmem:[#allocation2 + $0x30] sm:$0xff]
    %v914 = vld [vmem:[#allocation2 + $0x38] sm:$0xff]
    %v915 = vld [vmem:[#allocation2 + $0x40] sm:$0xff]
    %v916 = vld [vmem:[#allocation2 + $0x48] sm:$0xff]
    %v917 = vld [vmem:[#allocation2 + $0x50] sm:$0xff]
    %v918 = vld [vmem:[#allocation2 + $0x58] sm:$0xff]
    %v919 = vld [vmem:[#allocation2 + $0x60] sm:$0xff]
    %v920 = vld [vmem:[#allocation2 + $0x68] sm:$0xff]
    %v921 = vld [vmem:[#allocation2 + $0x70] sm:$0xff]
    %v922 = vld [vmem:[#allocation2 + $0x78] sm:$0xff]
    %v923 = vld [vmem:[#allocation2 + $0x80] sm:$0xff]
    %v924 = vld [vmem:[#allocation2 + $0x88] sm:$0xff]
    %v925 = vld [vmem:[#allocation2 + $0x90] sm:$0xff]
    %v926 = vld [vmem:[#allocation2 + $0x98] sm:$0xff]
    %v927 = vld [vmem:[#allocation2 + $0xa0] sm:$0xff]
    %v928 = vld [vmem:[#allocation2 + $0xa8] sm:$0xff]
    %v929 = vld [vmem:[#allocation2 + $0xb0] sm:$0xff]
    %v930 = vld [vmem:[#allocation2 + $0xb8] sm:$0xff]
    %v931 = vld [vmem:[#allocation2 + $0xc0] sm:$0xff]
    %v932 = vld [vmem:[#allocation2 + $0xc8] sm:$0xff]
    %v933 = vld [vmem:[#allocation2 + $0xd0] sm:$0xff]
    %v934 = vld [vmem:[#allocation2 + $0xd8] sm:$0xff]
    %v935 = vld [vmem:[#allocation2 + $0xe0] sm:$0xff]
    %v936 = vld [vmem:[#allocation2 + $0xe8] sm:$0xff]
    %v937 = vld [vmem:[#allocation2 + $0xf0] sm:$0xff]
    %v938 = vld [vmem:[#allocation2 + $0xf8] sm:$0xff]
    %v939 = vld [vmem:[#allocation2 + $0x100] sm:$0xff]
    %v940 = vld [vmem:[#allocation2 + $0x108] sm:$0xff]
    %v941 = vld [vmem:[#allocation2 + $0x110] sm:$0xff]
    %v942 = vld [vmem:[#allocation2 + $0x118] sm:$0xff]
    %v943 = vld [vmem:[#allocation2 + $0x120] sm:$0xff]
    %v944 = vld [vmem:[#allocation2 + $0x128] sm:$0xff]
    %v945 = vld [vmem:[#allocation2 + $0x130] sm:$0xff]
    %v946 = vld [vmem:[#allocation2 + $0x138] sm:$0xff]
    %v947 = vld [vmem:[#allocation2 + $0x140] sm:$0xff]
    %v948 = vld [vmem:[#allocation2 + $0x148] sm:$0xff]
    %v949 = vld [vmem:[#allocation2 + $0x150] sm:$0xff]
    %v950 = vld [vmem:[#allocation2 + $0x158] sm:$0xff]
    %v951 = vld [vmem:[#allocation2 + $0x160] sm:$0xff]
    %v952 = vld [vmem:[#allocation2 + $0x168] sm:$0xff]
    %v953 = vld [vmem:[#allocation2 + $0x170] sm:$0xff]
    %v954 = vld [vmem:[#allocation2 + $0x178] sm:$0xff]
    %v955 = vld [vmem:[#allocation2 + $0x180] sm:$0xff]
    %v956 = vld [vmem:[#allocation2 + $0x188] sm:$0xff]
    %v957 = vld [vmem:[#allocation2 + $0x190] sm:$0xff]
    %v958 = vld [vmem:[#allocation2 + $0x198] sm:$0xff]
    %v959 = vld [vmem:[#allocation2 + $0x1a0] sm:$0xff]
    %v960 = vld [vmem:[#allocation2 + $0x1a8] sm:$0xff]
    %v961 = vld [vmem:[#allocation2 + $0x1b0] sm:$0xff]
    %v962 = vld [vmem:[#allocation2 + $0x1b8] sm:$0xff]
    %v963 = vld [vmem:[#allocation2 + $0x1c0] sm:$0xff]
    %v964 = vld [vmem:[#allocation2 + $0x1c8] sm:$0xff]
    %v965 = vld [vmem:[#allocation2 + $0x1d0] sm:$0xff]
    %v966 = vld [vmem:[#allocation2 + $0x1d8] sm:$0xff]
    %v967 = vld [vmem:[#allocation2 + $0x1e0] sm:$0xff]
    %v968 = vld [vmem:[#allocation2 + $0x1e8] sm:$0xff]
    %v969 = vld [vmem:[#allocation2 + $0x1f0] sm:$0xff]
    %v970 = vld [vmem:[#allocation2 + $0x1f8] sm:$0xff]
    %v971 = vld [vmem:[#allocation2 + $0x200] sm:$0xff]
    %v972 = vld [vmem:[#allocation2 + $0x208] sm:$0xff]
    %v973 = vld [vmem:[#allocation2 + $0x210] sm:$0xff]
    %v974 = vld [vmem:[#allocation2 + $0x218] sm:$0xff]
    %v975 = vld [vmem:[#allocation2 + $0x220] sm:$0xff]
    %v976 = vld [vmem:[#allocation2 + $0x228] sm:$0xff]
    %v977 = vld [vmem:[#allocation2 + $0x230] sm:$0xff]
    %v978 = vld [vmem:[#allocation2 + $0x238] sm:$0xff]
    %v979 = vld [vmem:[#allocation2 + $0x240] sm:$0xff]
    %v980 = vld [vmem:[#allocation2 + $0x248] sm:$0xff]
    %v981 = vld [vmem:[#allocation2 + $0x250] sm:$0xff]
    %v982 = vld [vmem:[#allocation2 + $0x258] sm:$0xff]
    %v983 = vld [vmem:[#allocation2 + $0x260] sm:$0xff]
    %v984 = vld [vmem:[#allocation2 + $0x268] sm:$0xff]
    %v985 = vld [vmem:[#allocation2 + $0x270] sm:$0xff]
    %v986 = vld [vmem:[#allocation2 + $0x278] sm:$0xff]
    %v987 = vld [vmem:[#allocation3] sm:$0xff]
    %v988 = vld [vmem:[#allocation3 + $0x8] sm:$0xff]
    %v989 = vld [vmem:[#allocation3 + $0x10] sm:$0xf]
    %v990 = vld [vmem:[#allocation3 + $0x14] sm:$0xff]
    %v991 = vld [vmem:[#allocation3 + $0x1c] sm:$0xff]
    %v992 = vld [vmem:[#allocation3 + $0x24] sm:$0xf]
    %v993 = vld [vmem:[#allocation3 + $0x28] sm:$0xff]
    %v994 = vld [vmem:[#allocation3 + $0x30] sm:$0xff]
    %v995 = vld [vmem:[#allocation3 + $0x38] sm:$0xf]
    %v996 = vld [vmem:[#allocation3 + $0x3c] sm:$0xff]
    %v997 = vld [vmem:[#allocation3 + $0x44] sm:$0xff]
    %v998 = vld [vmem:[#allocation3 + $0x4c] sm:$0xf]
    %v999 = vld [vmem:[#allocation3 + $0x50] sm:$0xff]
    %v1000 = vld [vmem:[#allocation3 + $0x58] sm:$0xff]
    %v1001 = vld [vmem:[#allocation3 + $0x60] sm:$0xf]
    %v1002 = vld [vmem:[#allocation3 + $0x64] sm:$0xff]
    %v1003 = vld [vmem:[#allocation3 + $0x6c] sm:$0xff]
    %v1004 = vld [vmem:[#allocation3 + $0x74] sm:$0xf]
    %v1005 = vld [vmem:[#allocation3 + $0x78] sm:$0xff]
    %v1006 = vld [vmem:[#allocation3 + $0x80] sm:$0xff]
    %v1007 = vld [vmem:[#allocation3 + $0x88] sm:$0xf]
    %v1008 = vld [vmem:[#allocation3 + $0x8c] sm:$0xff]
    %v1009 = vld [vmem:[#allocation3 + $0x94] sm:$0xff]
    %v1010 = vld [vmem:[#allocation3 + $0x9c] sm:$0xf]
    %v1011 = vld [vmem:[#allocation3 + $0xa0] sm:$0xff]
    %v1012 = vld [vmem:[#allocation3 + $0xa8] sm:$0xff]
    %v1013 = vld [vmem:[#allocation3 + $0xb0] sm:$0xf]
    %v1014 = vld [vmem:[#allocation3 + $0xb4] sm:$0xff]
    %v1015 = vld [vmem:[#allocation3 + $0xbc] sm:$0xff]
    %v1016 = vld [vmem:[#allocation3 + $0xc4] sm:$0xf]
    %v1017 = vld [vmem:[#allocation3 + $0xc8] sm:$0xff]
    %v1018 = vld [vmem:[#allocation3 + $0xd0] sm:$0xff]
    %v1019 = vld [vmem:[#allocation3 + $0xd8] sm:$0xf]
    %v1020 = vld [vmem:[#allocation3 + $0xdc] sm:$0xff]
    %v1021 = vld [vmem:[#allocation3 + $0xe4] sm:$0xff]
    %v1022 = vld [vmem:[#allocation3 + $0xec] sm:$0xf]
    %v1023 = vld [vmem:[#allocation3 + $0xf0] sm:$0xff]
    %v1024 = vld [vmem:[#allocation3 + $0xf8] sm:$0xff]
    %v1025 = vld [vmem:[#allocation3 + $0x100] sm:$0xf]
    %v1026 = vld [vmem:[#allocation3 + $0x104] sm:$0xff]
    %v1027 = vld [vmem:[#allocation3 + $0x10c] sm:$0xff]
    %v1028 = vld [vmem:[#allocation3 + $0x114] sm:$0xf]
    %v1029 = vld [vmem:[#allocation3 + $0x118] sm:$0xff]
    %v1030 = vld [vmem:[#allocation3 + $0x120] sm:$0xff]
    %v1031 = vld [vmem:[#allocation3 + $0x128] sm:$0xf]
    %v1032 = vld [vmem:[#allocation3 + $0x12c] sm:$0xff]
    %v1033 = vld [vmem:[#allocation3 + $0x134] sm:$0xff]
    %v1034 = vld [vmem:[#allocation3 + $0x13c] sm:$0xf]
    %v1035 = vld [vmem:[#allocation3 + $0x140] sm:$0xff]
    %v1036 = vld [vmem:[#allocation3 + $0x148] sm:$0xff]
    %v1037 = vld [vmem:[#allocation3 + $0x150] sm:$0xf]
    %v1038 = vld [vmem:[#allocation3 + $0x154] sm:$0xff]
    %v1039 = vld [vmem:[#allocation3 + $0x15c] sm:$0xff]
    %v1040 = vld [vmem:[#allocation3 + $0x164] sm:$0xf]
    %v1041 = vld [vmem:[#allocation3 + $0x168] sm:$0xff]
    %v1042 = vld [vmem:[#allocation3 + $0x170] sm:$0xff]
    %v1043 = vld [vmem:[#allocation3 + $0x178] sm:$0xf]
    %v1044 = vld [vmem:[#allocation3 + $0x17c] sm:$0xff]
    %v1045 = vld [vmem:[#allocation3 + $0x184] sm:$0xff]
    %v1046 = vld [vmem:[#allocation3 + $0x18c] sm:$0xf]
    %v1047 = vld [vmem:[#allocation3 + $0x190] sm:$0xff]
    %v1048 = vld [vmem:[#allocation3 + $0x198] sm:$0xff]
    %v1049 = vld [vmem:[#allocation3 + $0x1a0] sm:$0xf]
    %v1050 = vld [vmem:[#allocation3 + $0x1a4] sm:$0xff]
    %v1051 = vld [vmem:[#allocation3 + $0x1ac] sm:$0xff]
    %v1052 = vld [vmem:[#allocation3 + $0x1b4] sm:$0xf]
    %v1053 = vld [vmem:[#allocation3 + $0x1b8] sm:$0xff]
    %v1054 = vld [vmem:[#allocation3 + $0x1c0] sm:$0xff]
    %v1055 = vld [vmem:[#allocation3 + $0x1c8] sm:$0xf]
    %v1056 = vld [vmem:[#allocation3 + $0x1cc] sm:$0xff]
    %v1057 = vld [vmem:[#allocation3 + $0x1d4] sm:$0xff]
    %v1058 = vld [vmem:[#allocation3 + $0x1dc] sm:$0xf]
    %v1059 = vld [vmem:[#allocation3 + $0x1e0] sm:$0xff]
    %v1060 = vld [vmem:[#allocation3 + $0x1e8] sm:$0xff]
    %v1061 = vld [vmem:[#allocation3 + $0x1f0] sm:$0xf]
    %v1062 = vld [vmem:[#allocation3 + $0x1f4] sm:$0xff]
    %v1063 = vld [vmem:[#allocation3 + $0x1fc] sm:$0xff]
    %v1064 = vld [vmem:[#allocation3 + $0x204] sm:$0xf]
    %v1065 = vld [vmem:[#allocation3 + $0x208] sm:$0xff]
    %v1066 = vld [vmem:[#allocation3 + $0x210] sm:$0xff]
    %v1067 = vld [vmem:[#allocation3 + $0x218] sm:$0xf]
    %v1068 = vld [vmem:[#allocation3 + $0x21c] sm:$0xff]
    %v1069 = vld [vmem:[#allocation3 + $0x224] sm:$0xff]
    %v1070 = vld [vmem:[#allocation3 + $0x22c] sm:$0xf]
    %v1071 = vld [vmem:[#allocation3 + $0x230] sm:$0xff]
    %v1072 = vld [vmem:[#allocation3 + $0x238] sm:$0xff]
    %v1073 = vld [vmem:[#allocation3 + $0x240] sm:$0xf]
    %v1074 = vld [vmem:[#allocation3 + $0x244] sm:$0xff]
    %v1075 = vld [vmem:[#allocation3 + $0x24c] sm:$0xff]
    %v1076 = vld [vmem:[#allocation3 + $0x254] sm:$0xf]
    %v1077 = vld [vmem:[#allocation3 + $0x258] sm:$0xff]
    %v1078 = vld [vmem:[#allocation3 + $0x260] sm:$0xff]
    %v1079 = vld [vmem:[#allocation3 + $0x268] sm:$0xf]
    %v1080 = vld [vmem:[#allocation3 + $0x26c] sm:$0xff]
    %v1081 = vld [vmem:[#allocation3 + $0x274] sm:$0xff]
    %v1082 = vld [vmem:[#allocation3 + $0x27c] sm:$0xf]
    %v1083 = vld [vmem:[#allocation3 + $0x280] sm:$0xff]
    %v1084 = vld [vmem:[#allocation3 + $0x288] sm:$0xff]
    %v1085 = vld [vmem:[#allocation3 + $0x290] sm:$0xf]
    %v1086 = vld [vmem:[#allocation3 + $0x294] sm:$0xff]
    %v1087 = vld [vmem:[#allocation3 + $0x29c] sm:$0xff]
    %v1088 = vld [vmem:[#allocation3 + $0x2a4] sm:$0xf]
    %v1089 = vld [vmem:[#allocation3 + $0x2a8] sm:$0xff]
    %v1090 = vld [vmem:[#allocation3 + $0x2b0] sm:$0xff]
    %v1091 = vld [vmem:[#allocation3 + $0x2b8] sm:$0xf]
    %v1092 = vld [vmem:[#allocation3 + $0x2bc] sm:$0xff]
    %v1093 = vld [vmem:[#allocation3 + $0x2c4] sm:$0xff]
    %v1094 = vld [vmem:[#allocation3 + $0x2cc] sm:$0xf]
    %v1095 = vld [vmem:[#allocation3 + $0x2d0] sm:$0xff]
    %v1096 = vld [vmem:[#allocation3 + $0x2d8] sm:$0xff]
    %v1097 = vld [vmem:[#allocation3 + $0x2e0] sm:$0xf]
    %v1098 = vld [vmem:[#allocation3 + $0x2e4] sm:$0xff]
    %v1099 = vld [vmem:[#allocation3 + $0x2ec] sm:$0xff]
    %v1100 = vld [vmem:[#allocation3 + $0x2f4] sm:$0xf]
    %v1101 = vld [vmem:[#allocation3 + $0x2f8] sm:$0xff]
    %v1102 = vld [vmem:[#allocation3 + $0x300] sm:$0xff]
    %v1103 = vld [vmem:[#allocation3 + $0x308] sm:$0xf]
    %v1104 = vld [vmem:[#allocation3 + $0x30c] sm:$0xff]
    %v1105 = vld [vmem:[#allocation3 + $0x314] sm:$0xff]
    %v1106 = vld [vmem:[#allocation3 + $0x31c] sm:$0xf]
    %v1107 = vld [vmem:[#allocation3 + $0x320] sm:$0xff]
    %v1108 = vld [vmem:[#allocation3 + $0x328] sm:$0xff]
    %v1109 = vld [vmem:[#allocation3 + $0x330] sm:$0xf]
    %v1110 = vld [vmem:[#allocation3 + $0x334] sm:$0xff]
    %v1111 = vld [vmem:[#allocation3 + $0x33c] sm:$0xff]
    %v1112 = vld [vmem:[#allocation3 + $0x344] sm:$0xf]
    %v1113 = vld [vmem:[#allocation3 + $0x348] sm:$0xff]
    %v1114 = vld [vmem:[#allocation3 + $0x350] sm:$0xff]
    %v1115 = vld [vmem:[#allocation3 + $0x358] sm:$0xf]
    %v1116 = vld [vmem:[#allocation3 + $0x35c] sm:$0xff]
    %v1117 = vld [vmem:[#allocation3 + $0x364] sm:$0xff]
    %v1118 = vld [vmem:[#allocation3 + $0x36c] sm:$0xf]
    %v1119 = vld [vmem:[#allocation3 + $0x370] sm:$0xff]
    %v1120 = vld [vmem:[#allocation3 + $0x378] sm:$0xff]
    %v1121 = vld [vmem:[#allocation3 + $0x380] sm:$0xf]
    %v1122 = vld [vmem:[#allocation3 + $0x384] sm:$0xff]
    %v1123 = vld [vmem:[#allocation3 + $0x38c] sm:$0xff]
    %v1124 = vld [vmem:[#allocation3 + $0x394] sm:$0xf]
    %v1125 = vld [vmem:[#allocation3 + $0x398] sm:$0xff]
    %v1126 = vld [vmem:[#allocation3 + $0x3a0] sm:$0xff]
    %v1127 = vld [vmem:[#allocation3 + $0x3a8] sm:$0xf]
    %v1128 = vld [vmem:[#allocation3 + $0x3ac] sm:$0xff]
    %v1129 = vld [vmem:[#allocation3 + $0x3b4] sm:$0xff]
    %v1130 = vld [vmem:[#allocation3 + $0x3bc] sm:$0xf]
    %v1131 = vld [vmem:[#allocation3 + $0x3c0] sm:$0xff]
    %v1132 = vld [vmem:[#allocation3 + $0x3c8] sm:$0xff]
    %v1133 = vld [vmem:[#allocation3 + $0x3d0] sm:$0xf]
    %v1134 = vld [vmem:[#allocation3 + $0x3d4] sm:$0xff]
    %v1135 = vld [vmem:[#allocation3 + $0x3dc] sm:$0xff]
    %v1136 = vld [vmem:[#allocation3 + $0x3e4] sm:$0xf]
    %v1137 = vld [vmem:[#allocation3 + $0x3e8] sm:$0xff]
    %v1138 = vld [vmem:[#allocation3 + $0x3f0] sm:$0xff]
    %v1139 = vld [vmem:[#allocation3 + $0x3f8] sm:$0xf]
    %v1140 = vld [vmem:[#allocation3 + $0x3fc] sm:$0xff]
    %v1141 = vld [vmem:[#allocation3 + $0x404] sm:$0xff]
    %v1142 = vld [vmem:[#allocation3 + $0x40c] sm:$0xf]
    %v1143 = vld [vmem:[#allocation3 + $0x410] sm:$0xff]
    %v1144 = vld [vmem:[#allocation3 + $0x418] sm:$0xff]
    %v1145 = vld [vmem:[#allocation3 + $0x420] sm:$0xf]
    %v1146 = vld [vmem:[#allocation3 + $0x424] sm:$0xff]
    %v1147 = vld [vmem:[#allocation3 + $0x42c] sm:$0xff]
    %v1148 = vld [vmem:[#allocation3 + $0x434] sm:$0xf]
    %v1149 = vld [vmem:[#allocation3 + $0x438] sm:$0xff]
    %v1150 = vld [vmem:[#allocation3 + $0x440] sm:$0xff]
    %v1151 = vld [vmem:[#allocation3 + $0x448] sm:$0xf]
    %v1152 = vld [vmem:[#allocation3 + $0x44c] sm:$0xff]
    %v1153 = vld [vmem:[#allocation3 + $0x454] sm:$0xff]
    %v1154 = vld [vmem:[#allocation3 + $0x45c] sm:$0xf]
    %v1155 = vld [vmem:[#allocation3 + $0x460] sm:$0xff]
    %v1156 = vld [vmem:[#allocation3 + $0x468] sm:$0xff]
    %v1157 = vld [vmem:[#allocation3 + $0x470] sm:$0xf]
    %v1158 = vld [vmem:[#allocation3 + $0x474] sm:$0xff]
    %v1159 = vld [vmem:[#allocation3 + $0x47c] sm:$0xff]
    %v1160 = vld [vmem:[#allocation3 + $0x484] sm:$0xf]
    %v1161 = vld [vmem:[#allocation3 + $0x488] sm:$0xff]
    %v1162 = vld [vmem:[#allocation3 + $0x490] sm:$0xff]
    %v1163 = vld [vmem:[#allocation3 + $0x498] sm:$0xf]
    %v1164 = vld [vmem:[#allocation3 + $0x49c] sm:$0xff]
    %v1165 = vld [vmem:[#allocation3 + $0x4a4] sm:$0xff]
    %v1166 = vld [vmem:[#allocation3 + $0x4ac] sm:$0xf]
    %v1167 = vld [vmem:[#allocation3 + $0x4b0] sm:$0xff]
    %v1168 = vld [vmem:[#allocation3 + $0x4b8] sm:$0xff]
    %v1169 = vld [vmem:[#allocation3 + $0x4c0] sm:$0xf]
    %v1170 = vld [vmem:[#allocation3 + $0x4c4] sm:$0xff]
    %v1171 = vld [vmem:[#allocation3 + $0x4cc] sm:$0xff]
    %v1172 = vld [vmem:[#allocation3 + $0x4d4] sm:$0xf]
    %v1173 = vld [vmem:[#allocation3 + $0x4d8] sm:$0xff]
    %v1174 = vld [vmem:[#allocation3 + $0x4e0] sm:$0xff]
    %v1175 = vld [vmem:[#allocation3 + $0x4e8] sm:$0xf]
    %v1176 = vld [vmem:[#allocation3 + $0x4ec] sm:$0xff]
    %v1177 = vld [vmem:[#allocation3 + $0x4f4] sm:$0xff]
    %v1178 = vld [vmem:[#allocation3 + $0x4fc] sm:$0xf]
    %v1179 = vld [vmem:[#allocation3 + $0x500] sm:$0xff]
    %v1180 = vld [vmem:[#allocation3 + $0x508] sm:$0xff]
    %v1181 = vld [vmem:[#allocation3 + $0x510] sm:$0xf]
    %v1182 = vld [vmem:[#allocation3 + $0x514] sm:$0xff]
    %v1183 = vld [vmem:[#allocation3 + $0x51c] sm:$0xff]
    %v1184 = vld [vmem:[#allocation3 + $0x524] sm:$0xf]
    %v1185 = vld [vmem:[#allocation3 + $0x528] sm:$0xff]
    %v1186 = vld [vmem:[#allocation3 + $0x530] sm:$0xff]
    %v1187 = vld [vmem:[#allocation3 + $0x538] sm:$0xf]
    %v1188 = vld [vmem:[#allocation3 + $0x53c] sm:$0xff]
    %v1189 = vld [vmem:[#allocation3 + $0x544] sm:$0xff]
    %v1190 = vld [vmem:[#allocation3 + $0x54c] sm:$0xf]
    %v1191 = vld [vmem:[#allocation3 + $0x550] sm:$0xff]
    %v1192 = vld [vmem:[#allocation3 + $0x558] sm:$0xff]
    %v1193 = vld [vmem:[#allocation3 + $0x560] sm:$0xf]
    %v1194 = vld [vmem:[#allocation3 + $0x564] sm:$0xff]
    %v1195 = vld [vmem:[#allocation3 + $0x56c] sm:$0xff]
    %v1196 = vld [vmem:[#allocation3 + $0x574] sm:$0xf]
    %v1197 = vld [vmem:[#allocation3 + $0x578] sm:$0xff]
    %v1198 = vld [vmem:[#allocation3 + $0x580] sm:$0xff]
    %v1199 = vld [vmem:[#allocation3 + $0x588] sm:$0xf]
    %v1200 = vld [vmem:[#allocation3 + $0x58c] sm:$0xff]
    %v1201 = vld [vmem:[#allocation3 + $0x594] sm:$0xff]
    %v1202 = vld [vmem:[#allocation3 + $0x59c] sm:$0xf]
    %v1203 = vld [vmem:[#allocation3 + $0x5a0] sm:$0xff]
    %v1204 = vld [vmem:[#allocation3 + $0x5a8] sm:$0xff]
    %v1205 = vld [vmem:[#allocation3 + $0x5b0] sm:$0xf]
    %v1206 = vld [vmem:[#allocation3 + $0x5b4] sm:$0xff]
    %v1207 = vld [vmem:[#allocation3 + $0x5bc] sm:$0xff]
    %v1208 = vld [vmem:[#allocation3 + $0x5c4] sm:$0xf]
    %v1209 = vld [vmem:[#allocation3 + $0x5c8] sm:$0xff]
    %v1210 = vld [vmem:[#allocation3 + $0x5d0] sm:$0xff]
    %v1211 = vld [vmem:[#allocation3 + $0x5d8] sm:$0xf]
    %v1212 = vld [vmem:[#allocation3 + $0x5dc] sm:$0xff]
    %v1213 = vld [vmem:[#allocation3 + $0x5e4] sm:$0xff]
    %v1214 = vld [vmem:[#allocation3 + $0x5ec] sm:$0xf]
    %v1215 = vld [vmem:[#allocation3 + $0x5f0] sm:$0xff]
    %v1216 = vld [vmem:[#allocation3 + $0x5f8] sm:$0xff]
    %v1217 = vld [vmem:[#allocation3 + $0x600] sm:$0xf]
    %v1218 = vld [vmem:[#allocation3 + $0x604] sm:$0xff]
    %v1219 = vld [vmem:[#allocation3 + $0x60c] sm:$0xff]
    %v1220 = vld [vmem:[#allocation3 + $0x614] sm:$0xf]
    %v1221 = vld [vmem:[#allocation3 + $0x618] sm:$0xff]
    %v1222 = vld [vmem:[#allocation3 + $0x620] sm:$0xff]
    %v1223 = vld [vmem:[#allocation3 + $0x628] sm:$0xf]
    %v1224 = vld [vmem:[#allocation3 + $0x62c] sm:$0xff]
    %v1225 = vld [vmem:[#allocation3 + $0x634] sm:$0xff]
    %v1226 = vld [vmem:[#allocation3 + $0x63c] sm:$0xf]
    %v1227 = vpack.c.bf16 %v514, %v509
    %v1228 = vpack.c.bf16 %v524, %v519
    %v1229 = vpack.c.bf16 %v534, %v529
    %v1230 = vpack.c.bf16 %v544, %v539
    %v1231 = vpack.c.bf16 %v554, %v549
    %v1232 = vpack.c.bf16 %v564, %v559
    %v1233 = vpack.c.bf16 %v574, %v569
    %v1234 = vpack.c.bf16 %v584, %v579
    %v1235 = vpack.c.bf16 %v594, %v589
    %v1236 = vpack.c.bf16 %v604, %v599
    %v1237 = vpack.c.bf16 %v614, %v609
    %v1238 = vpack.c.bf16 %v624, %v619
    %v1239 = vpack.c.bf16 %v634, %v629
    %v1240 = vpack.c.bf16 %v644, %v639
    %v1241 = vpack.c.bf16 %v654, %v649
    %v1242 = vpack.c.bf16 %v664, %v659
    %v1243 = vpack.c.bf16 %v674, %v669
    %v1244 = vpack.c.bf16 %v684, %v679
    %v1245 = vpack.c.bf16 %v694, %v689
    %v1246 = vpack.c.bf16 %v704, %v699
    %v1247 = vpack.c.bf16 %v714, %v709
    %v1248 = vpack.c.bf16 %v724, %v719
    %v1249 = vpack.c.bf16 %v734, %v729
    %v1250 = vpack.c.bf16 %v744, %v739
    %v1251 = vpack.c.bf16 %v754, %v749
    %v1252 = vpack.c.bf16 %v764, %v759
    %v1253 = vpack.c.bf16 %v774, %v769
    %v1254 = vpack.c.bf16 %v784, %v779
    %v1255 = vpack.c.bf16 %v794, %v789
    %v1256 = vpack.c.bf16 %v804, %v799
    %v1257 = vpack.c.bf16 %v814, %v809
    %v1258 = vpack.c.bf16 %v824, %v819
    %v1259 = vpack.c.bf16 %v834, %v829
    %v1260 = vpack.c.bf16 %v844, %v839
    %v1261 = vpack.c.bf16 %v854, %v849
    %v1262 = vpack.c.bf16 %v864, %v859
    %v1263 = vpack.c.bf16 %v874, %v869
    %v1264 = vpack.c.bf16 %v884, %v879
    %v1265 = vpack.c.bf16 %v894, %v889
    %v1266 = vpack.c.bf16 %v904, %v899
    %v1507 = vunpack.c.l.b16 %v987
    %v1508 = vunpack.c.h.b16 %v987
    %v1509 = vunpack.c.l.b16 %v988
    %v1510 = vunpack.c.h.b16 %v988
    %v1511 = vunpack.c.l.b16 %v989
    %v1512 = vunpack.c.l.b16 %v990
    %v1513 = vunpack.c.h.b16 %v990
    %v1514 = vunpack.c.l.b16 %v991
    %v1515 = vunpack.c.h.b16 %v991
    %v1516 = vunpack.c.l.b16 %v992
    %v1517 = vunpack.c.l.b16 %v993
    %v1518 = vunpack.c.h.b16 %v993
    %v1519 = vunpack.c.l.b16 %v994
    %v1520 = vunpack.c.h.b16 %v994
    %v1521 = vunpack.c.l.b16 %v995
    %v1522 = vunpack.c.l.b16 %v996
    %v1523 = vunpack.c.h.b16 %v996
    %v1524 = vunpack.c.l.b16 %v997
    %v1525 = vunpack.c.h.b16 %v997
    %v1526 = vunpack.c.l.b16 %v998
    %v1527 = vunpack.c.l.b16 %v999
    %v1528 = vunpack.c.h.b16 %v999
    %v1529 = vunpack.c.l.b16 %v1000
    %v1530 = vunpack.c.h.b16 %v1000
    %v1531 = vunpack.c.l.b16 %v1001
    %v1532 = vunpack.c.l.b16 %v1002
    %v1533 = vunpack.c.h.b16 %v1002
    %v1534 = vunpack.c.l.b16 %v1003
    %v1535 = vunpack.c.h.b16 %v1003
    %v1536 = vunpack.c.l.b16 %v1004
    %v1537 = vunpack.c.l.b16 %v1005
    %v1538 = vunpack.c.h.b16 %v1005
    %v1539 = vunpack.c.l.b16 %v1006
    %v1540 = vunpack.c.h.b16 %v1006
    %v1541 = vunpack.c.l.b16 %v1007
    %v1542 = vunpack.c.l.b16 %v1008
    %v1543 = vunpack.c.h.b16 %v1008
    %v1544 = vunpack.c.l.b16 %v1009
    %v1545 = vunpack.c.h.b16 %v1009
    %v1546 = vunpack.c.l.b16 %v1010
    %v1547 = vunpack.c.l.b16 %v1011
    %v1548 = vunpack.c.h.b16 %v1011
    %v1549 = vunpack.c.l.b16 %v1012
    %v1550 = vunpack.c.h.b16 %v1012
    %v1551 = vunpack.c.l.b16 %v1013
    %v1552 = vunpack.c.l.b16 %v1014
    %v1553 = vunpack.c.h.b16 %v1014
    %v1554 = vunpack.c.l.b16 %v1015
    %v1555 = vunpack.c.h.b16 %v1015
    %v1556 = vunpack.c.l.b16 %v1016
    %v1557 = vunpack.c.l.b16 %v1017
    %v1558 = vunpack.c.h.b16 %v1017
    %v1559 = vunpack.c.l.b16 %v1018
    %v1560 = vunpack.c.h.b16 %v1018
    %v1561 = vunpack.c.l.b16 %v1019
    %v1562 = vunpack.c.l.b16 %v1020
    %v1563 = vunpack.c.h.b16 %v1020
    %v1564 = vunpack.c.l.b16 %v1021
    %v1565 = vunpack.c.h.b16 %v1021
    %v1566 = vunpack.c.l.b16 %v1022
    %v1567 = vunpack.c.l.b16 %v1023
    %v1568 = vunpack.c.h.b16 %v1023
    %v1569 = vunpack.c.l.b16 %v1024
    %v1570 = vunpack.c.h.b16 %v1024
    %v1571 = vunpack.c.l.b16 %v1025
    %v1572 = vunpack.c.l.b16 %v1026
    %v1573 = vunpack.c.h.b16 %v1026
    %v1574 = vunpack.c.l.b16 %v1027
    %v1575 = vunpack.c.h.b16 %v1027
    %v1576 = vunpack.c.l.b16 %v1028
    %v1577 = vunpack.c.l.b16 %v1029
    %v1578 = vunpack.c.h.b16 %v1029
    %v1579 = vunpack.c.l.b16 %v1030
    %v1580 = vunpack.c.h.b16 %v1030
    %v1581 = vunpack.c.l.b16 %v1031
    %v1582 = vunpack.c.l.b16 %v1032
    %v1583 = vunpack.c.h.b16 %v1032
    %v1584 = vunpack.c.l.b16 %v1033
    %v1585 = vunpack.c.h.b16 %v1033
    %v1586 = vunpack.c.l.b16 %v1034
    %v1587 = vunpack.c.l.b16 %v1035
    %v1588 = vunpack.c.h.b16 %v1035
    %v1589 = vunpack.c.l.b16 %v1036
    %v1590 = vunpack.c.h.b16 %v1036
    %v1591 = vunpack.c.l.b16 %v1037
    %v1592 = vunpack.c.l.b16 %v1038
    %v1593 = vunpack.c.h.b16 %v1038
    %v1594 = vunpack.c.l.b16 %v1039
    %v1595 = vunpack.c.h.b16 %v1039
    %v1596 = vunpack.c.l.b16 %v1040
    %v1597 = vunpack.c.l.b16 %v1041
    %v1598 = vunpack.c.h.b16 %v1041
    %v1599 = vunpack.c.l.b16 %v1042
    %v1600 = vunpack.c.h.b16 %v1042
    %v1601 = vunpack.c.l.b16 %v1043
    %v1602 = vunpack.c.l.b16 %v1044
    %v1603 = vunpack.c.h.b16 %v1044
    %v1604 = vunpack.c.l.b16 %v1045
    %v1605 = vunpack.c.h.b16 %v1045
    %v1606 = vunpack.c.l.b16 %v1046
    %v1607 = vunpack.c.l.b16 %v1047
    %v1608 = vunpack.c.h.b16 %v1047
    %v1609 = vunpack.c.l.b16 %v1048
    %v1610 = vunpack.c.h.b16 %v1048
    %v1611 = vunpack.c.l.b16 %v1049
    %v1612 = vunpack.c.l.b16 %v1050
    %v1613 = vunpack.c.h.b16 %v1050
    %v1614 = vunpack.c.l.b16 %v1051
    %v1615 = vunpack.c.h.b16 %v1051
    %v1616 = vunpack.c.l.b16 %v1052
    %v1617 = vunpack.c.l.b16 %v1053
    %v1618 = vunpack.c.h.b16 %v1053
    %v1619 = vunpack.c.l.b16 %v1054
    %v1620 = vunpack.c.h.b16 %v1054
    %v1621 = vunpack.c.l.b16 %v1055
    %v1622 = vunpack.c.l.b16 %v1056
    %v1623 = vunpack.c.h.b16 %v1056
    %v1624 = vunpack.c.l.b16 %v1057
    %v1625 = vunpack.c.h.b16 %v1057
    %v1626 = vunpack.c.l.b16 %v1058
    %v1627 = vunpack.c.l.b16 %v1059
    %v1628 = vunpack.c.h.b16 %v1059
    %v1629 = vunpack.c.l.b16 %v1060
    %v1630 = vunpack.c.h.b16 %v1060
    %v1631 = vunpack.c.l.b16 %v1061
    %v1632 = vunpack.c.l.b16 %v1062
    %v1633 = vunpack.c.h.b16 %v1062
    %v1634 = vunpack.c.l.b16 %v1063
    %v1635 = vunpack.c.h.b16 %v1063
    %v1636 = vunpack.c.l.b16 %v1064
    %v1637 = vunpack.c.l.b16 %v1065
    %v1638 = vunpack.c.h.b16 %v1065
    %v1639 = vunpack.c.l.b16 %v1066
    %v1640 = vunpack.c.h.b16 %v1066
    %v1641 = vunpack.c.l.b16 %v1067
    %v1642 = vunpack.c.l.b16 %v1068
    %v1643 = vunpack.c.h.b16 %v1068
    %v1644 = vunpack.c.l.b16 %v1069
    %v1645 = vunpack.c.h.b16 %v1069
    %v1646 = vunpack.c.l.b16 %v1070
    %v1647 = vunpack.c.l.b16 %v1071
    %v1648 = vunpack.c.h.b16 %v1071
    %v1649 = vunpack.c.l.b16 %v1072
    %v1650 = vunpack.c.h.b16 %v1072
    %v1651 = vunpack.c.l.b16 %v1073
    %v1652 = vunpack.c.l.b16 %v1074
    %v1653 = vunpack.c.h.b16 %v1074
    %v1654 = vunpack.c.l.b16 %v1075
    %v1655 = vunpack.c.h.b16 %v1075
    %v1656 = vunpack.c.l.b16 %v1076
    %v1657 = vunpack.c.l.b16 %v1077
    %v1658 = vunpack.c.h.b16 %v1077
    %v1659 = vunpack.c.l.b16 %v1078
    %v1660 = vunpack.c.h.b16 %v1078
    %v1661 = vunpack.c.l.b16 %v1079
    %v1662 = vunpack.c.l.b16 %v1080
    %v1663 = vunpack.c.h.b16 %v1080
    %v1664 = vunpack.c.l.b16 %v1081
    %v1665 = vunpack.c.h.b16 %v1081
    %v1666 = vunpack.c.l.b16 %v1082
    %v1667 = vunpack.c.l.b16 %v1083
    %v1668 = vunpack.c.h.b16 %v1083
    %v1669 = vunpack.c.l.b16 %v1084
    %v1670 = vunpack.c.h.b16 %v1084
    %v1671 = vunpack.c.l.b16 %v1085
    %v1672 = vunpack.c.l.b16 %v1086
    %v1673 = vunpack.c.h.b16 %v1086
    %v1674 = vunpack.c.l.b16 %v1087
    %v1675 = vunpack.c.h.b16 %v1087
    %v1676 = vunpack.c.l.b16 %v1088
    %v1677 = vunpack.c.l.b16 %v1089
    %v1678 = vunpack.c.h.b16 %v1089
    %v1679 = vunpack.c.l.b16 %v1090
    %v1680 = vunpack.c.h.b16 %v1090
    %v1681 = vunpack.c.l.b16 %v1091
    %v1682 = vunpack.c.l.b16 %v1092
    %v1683 = vunpack.c.h.b16 %v1092
    %v1684 = vunpack.c.l.b16 %v1093
    %v1685 = vunpack.c.h.b16 %v1093
    %v1686 = vunpack.c.l.b16 %v1094
    %v1687 = vunpack.c.l.b16 %v1095
    %v1688 = vunpack.c.h.b16 %v1095
    %v1689 = vunpack.c.l.b16 %v1096
    %v1690 = vunpack.c.h.b16 %v1096
    %v1691 = vunpack.c.l.b16 %v1097
    %v1692 = vunpack.c.l.b16 %v1098
    %v1693 = vunpack.c.h.b16 %v1098
    %v1694 = vunpack.c.l.b16 %v1099
    %v1695 = vunpack.c.h.b16 %v1099
    %v1696 = vunpack.c.l.b16 %v1100
    %v1697 = vunpack.c.l.b16 %v1101
    %v1698 = vunpack.c.h.b16 %v1101
    %v1699 = vunpack.c.l.b16 %v1102
    %v1700 = vunpack.c.h.b16 %v1102
    %v1701 = vunpack.c.l.b16 %v1103
    %v1702 = vunpack.c.l.b16 %v1104
    %v1703 = vunpack.c.h.b16 %v1104
    %v1704 = vunpack.c.l.b16 %v1105
    %v1705 = vunpack.c.h.b16 %v1105
    %v1706 = vunpack.c.l.b16 %v1106
    %v1707 = vunpack.c.l.b16 %v1107
    %v1708 = vunpack.c.h.b16 %v1107
    %v1709 = vunpack.c.l.b16 %v1108
    %v1710 = vunpack.c.h.b16 %v1108
    %v1711 = vunpack.c.l.b16 %v1109
    %v1712 = vunpack.c.l.b16 %v1110
    %v1713 = vunpack.c.h.b16 %v1110
    %v1714 = vunpack.c.l.b16 %v1111
    %v1715 = vunpack.c.h.b16 %v1111
    %v1716 = vunpack.c.l.b16 %v1112
    %v1717 = vunpack.c.l.b16 %v1113
    %v1718 = vunpack.c.h.b16 %v1113
    %v1719 = vunpack.c.l.b16 %v1114
    %v1720 = vunpack.c.h.b16 %v1114
    %v1721 = vunpack.c.l.b16 %v1115
    %v1722 = vunpack.c.l.b16 %v1116
    %v1723 = vunpack.c.h.b16 %v1116
    %v1724 = vunpack.c.l.b16 %v1117
    %v1725 = vunpack.c.h.b16 %v1117
    %v1726 = vunpack.c.l.b16 %v1118
    %v1727 = vunpack.c.l.b16 %v1119
    %v1728 = vunpack.c.h.b16 %v1119
    %v1729 = vunpack.c.l.b16 %v1120
    %v1730 = vunpack.c.h.b16 %v1120
    %v1731 = vunpack.c.l.b16 %v1121
    %v1732 = vunpack.c.l.b16 %v1122
    %v1733 = vunpack.c.h.b16 %v1122
    %v1734 = vunpack.c.l.b16 %v1123
    %v1735 = vunpack.c.h.b16 %v1123
    %v1736 = vunpack.c.l.b16 %v1124
    %v1737 = vunpack.c.l.b16 %v1125
    %v1738 = vunpack.c.h.b16 %v1125
    %v1739 = vunpack.c.l.b16 %v1126
    %v1740 = vunpack.c.h.b16 %v1126
    %v1741 = vunpack.c.l.b16 %v1127
    %v1742 = vunpack.c.l.b16 %v1128
    %v1743 = vunpack.c.h.b16 %v1128
    %v1744 = vunpack.c.l.b16 %v1129
    %v1745 = vunpack.c.h.b16 %v1129
    %v1746 = vunpack.c.l.b16 %v1130
    %v1747 = vunpack.c.l.b16 %v1131
    %v1748 = vunpack.c.h.b16 %v1131
    %v1749 = vunpack.c.l.b16 %v1132
    %v1750 = vunpack.c.h.b16 %v1132
    %v1751 = vunpack.c.l.b16 %v1133
    %v1752 = vunpack.c.l.b16 %v1134
    %v1753 = vunpack.c.h.b16 %v1134
    %v1754 = vunpack.c.l.b16 %v1135
    %v1755 = vunpack.c.h.b16 %v1135
    %v1756 = vunpack.c.l.b16 %v1136
    %v1757 = vunpack.c.l.b16 %v1137
    %v1758 = vunpack.c.h.b16 %v1137
    %v1759 = vunpack.c.l.b16 %v1138
    %v1760 = vunpack.c.h.b16 %v1138
    %v1761 = vunpack.c.l.b16 %v1139
    %v1762 = vunpack.c.l.b16 %v1140
    %v1763 = vunpack.c.h.b16 %v1140
    %v1764 = vunpack.c.l.b16 %v1141
    %v1765 = vunpack.c.h.b16 %v1141
    %v1766 = vunpack.c.l.b16 %v1142
    %v1767 = vunpack.c.l.b16 %v1143
    %v1768 = vunpack.c.h.b16 %v1143
    %v1769 = vunpack.c.l.b16 %v1144
    %v1770 = vunpack.c.h.b16 %v1144
    %v1771 = vunpack.c.l.b16 %v1145
    %v1772 = vunpack.c.l.b16 %v1146
    %v1773 = vunpack.c.h.b16 %v1146
    %v1774 = vunpack.c.l.b16 %v1147
    %v1775 = vunpack.c.h.b16 %v1147
    %v1776 = vunpack.c.l.b16 %v1148
    %v1777 = vunpack.c.l.b16 %v1149
    %v1778 = vunpack.c.h.b16 %v1149
    %v1779 = vunpack.c.l.b16 %v1150
    %v1780 = vunpack.c.h.b16 %v1150
    %v1781 = vunpack.c.l.b16 %v1151
    %v1782 = vunpack.c.l.b16 %v1152
    %v1783 = vunpack.c.h.b16 %v1152
    %v1784 = vunpack.c.l.b16 %v1153
    %v1785 = vunpack.c.h.b16 %v1153
    %v1786 = vunpack.c.l.b16 %v1154
    %v1787 = vunpack.c.l.b16 %v1155
    %v1788 = vunpack.c.h.b16 %v1155
    %v1789 = vunpack.c.l.b16 %v1156
    %v1790 = vunpack.c.h.b16 %v1156
    %v1791 = vunpack.c.l.b16 %v1157
    %v1792 = vunpack.c.l.b16 %v1158
    %v1793 = vunpack.c.h.b16 %v1158
    %v1794 = vunpack.c.l.b16 %v1159
    %v1795 = vunpack.c.h.b16 %v1159
    %v1796 = vunpack.c.l.b16 %v1160
    %v1797 = vunpack.c.l.b16 %v1161
    %v1798 = vunpack.c.h.b16 %v1161
    %v1799 = vunpack.c.l.b16 %v1162
    %v1800 = vunpack.c.h.b16 %v1162
    %v1801 = vunpack.c.l.b16 %v1163
    %v1802 = vunpack.c.l.b16 %v1164
    %v1803 = vunpack.c.h.b16 %v1164
    %v1804 = vunpack.c.l.b16 %v1165
    %v1805 = vunpack.c.h.b16 %v1165
    %v1806 = vunpack.c.l.b16 %v1166
    %v1807 = vunpack.c.l.b16 %v1167
    %v1808 = vunpack.c.h.b16 %v1167
    %v1809 = vunpack.c.l.b16 %v1168
    %v1810 = vunpack.c.h.b16 %v1168
    %v1811 = vunpack.c.l.b16 %v1169
    %v1812 = vunpack.c.l.b16 %v1170
    %v1813 = vunpack.c.h.b16 %v1170
    %v1814 = vunpack.c.l.b16 %v1171
    %v1815 = vunpack.c.h.b16 %v1171
    %v1816 = vunpack.c.l.b16 %v1172
    %v1817 = vunpack.c.l.b16 %v1173
    %v1818 = vunpack.c.h.b16 %v1173
    %v1819 = vunpack.c.l.b16 %v1174
    %v1820 = vunpack.c.h.b16 %v1174
    %v1821 = vunpack.c.l.b16 %v1175
    %v1822 = vunpack.c.l.b16 %v1176
    %v1823 = vunpack.c.h.b16 %v1176
    %v1824 = vunpack.c.l.b16 %v1177
    %v1825 = vunpack.c.h.b16 %v1177
    %v1826 = vunpack.c.l.b16 %v1178
    %v1827 = vunpack.c.l.b16 %v1179
    %v1828 = vunpack.c.h.b16 %v1179
    %v1829 = vunpack.c.l.b16 %v1180
    %v1830 = vunpack.c.h.b16 %v1180
    %v1831 = vunpack.c.l.b16 %v1181
    %v1832 = vunpack.c.l.b16 %v1182
    %v1833 = vunpack.c.h.b16 %v1182
    %v1834 = vunpack.c.l.b16 %v1183
    %v1835 = vunpack.c.h.b16 %v1183
    %v1836 = vunpack.c.l.b16 %v1184
    %v1837 = vunpack.c.l.b16 %v1185
    %v1838 = vunpack.c.h.b16 %v1185
    %v1839 = vunpack.c.l.b16 %v1186
    %v1840 = vunpack.c.h.b16 %v1186
    %v1841 = vunpack.c.l.b16 %v1187
    %v1842 = vunpack.c.l.b16 %v1188
    %v1843 = vunpack.c.h.b16 %v1188
    %v1844 = vunpack.c.l.b16 %v1189
    %v1845 = vunpack.c.h.b16 %v1189
    %v1846 = vunpack.c.l.b16 %v1190
    %v1847 = vunpack.c.l.b16 %v1191
    %v1848 = vunpack.c.h.b16 %v1191
    %v1849 = vunpack.c.l.b16 %v1192
    %v1850 = vunpack.c.h.b16 %v1192
    %v1851 = vunpack.c.l.b16 %v1193
    %v1852 = vunpack.c.l.b16 %v1194
    %v1853 = vunpack.c.h.b16 %v1194
    %v1854 = vunpack.c.l.b16 %v1195
    %v1855 = vunpack.c.h.b16 %v1195
    %v1856 = vunpack.c.l.b16 %v1196
    %v1857 = vunpack.c.l.b16 %v1197
    %v1858 = vunpack.c.h.b16 %v1197
    %v1859 = vunpack.c.l.b16 %v1198
    %v1860 = vunpack.c.h.b16 %v1198
    %v1861 = vunpack.c.l.b16 %v1199
    %v1862 = vunpack.c.l.b16 %v1200
    %v1863 = vunpack.c.h.b16 %v1200
    %v1864 = vunpack.c.l.b16 %v1201
    %v1865 = vunpack.c.h.b16 %v1201
    %v1866 = vunpack.c.l.b16 %v1202
    %v1867 = vunpack.c.l.b16 %v1203
    %v1868 = vunpack.c.h.b16 %v1203
    %v1869 = vunpack.c.l.b16 %v1204
    %v1870 = vunpack.c.h.b16 %v1204
    %v1871 = vunpack.c.l.b16 %v1205
    %v1872 = vunpack.c.l.b16 %v1206
    %v1873 = vunpack.c.h.b16 %v1206
    %v1874 = vunpack.c.l.b16 %v1207
    %v1875 = vunpack.c.h.b16 %v1207
    %v1876 = vunpack.c.l.b16 %v1208
    %v1877 = vunpack.c.l.b16 %v1209
    %v1878 = vunpack.c.h.b16 %v1209
    %v1879 = vunpack.c.l.b16 %v1210
    %v1880 = vunpack.c.h.b16 %v1210
    %v1881 = vunpack.c.l.b16 %v1211
    %v1882 = vunpack.c.l.b16 %v1212
    %v1883 = vunpack.c.h.b16 %v1212
    %v1884 = vunpack.c.l.b16 %v1213
    %v1885 = vunpack.c.h.b16 %v1213
    %v1886 = vunpack.c.l.b16 %v1214
    %v1887 = vunpack.c.l.b16 %v1215
    %v1888 = vunpack.c.h.b16 %v1215
    %v1889 = vunpack.c.l.b16 %v1216
    %v1890 = vunpack.c.h.b16 %v1216
    %v1891 = vunpack.c.l.b16 %v1217
    %v1892 = vunpack.c.l.b16 %v1218
    %v1893 = vunpack.c.h.b16 %v1218
    %v1894 = vunpack.c.l.b16 %v1219
    %v1895 = vunpack.c.h.b16 %v1219
    %v1896 = vunpack.c.l.b16 %v1220
    %v1897 = vunpack.c.l.b16 %v1221
    %v1898 = vunpack.c.h.b16 %v1221
    %v1899 = vunpack.c.l.b16 %v1222
    %v1900 = vunpack.c.h.b16 %v1222
    %v1901 = vunpack.c.l.b16 %v1223
    %v1902 = vunpack.c.l.b16 %v1224
    %v1903 = vunpack.c.h.b16 %v1224
    %v1904 = vunpack.c.l.b16 %v1225
    %v1905 = vunpack.c.h.b16 %v1225
    %v1906 = vunpack.c.l.b16 %v1226
    %v1907 = vpack.c.b16 %v1512, %v1507
    %v1908 = vpack.c.b16 %v1513, %v1508
    %v1909 = vpack.c.b16 %v1514, %v1509
    %v1910 = vpack.c.b16 %v1515, %v1510
    %v1911 = vpack.c.b16 %v1516, %v1511
    %v1912 = vpack.c.b16 %v1522, %v1517
    %v1913 = vpack.c.b16 %v1523, %v1518
    %v1914 = vpack.c.b16 %v1524, %v1519
    %v1915 = vpack.c.b16 %v1525, %v1520
    %v1916 = vpack.c.b16 %v1526, %v1521
    %v1917 = vpack.c.b16 %v1532, %v1527
    %v1918 = vpack.c.b16 %v1533, %v1528
    %v1919 = vpack.c.b16 %v1534, %v1529
    %v1920 = vpack.c.b16 %v1535, %v1530
    %v1921 = vpack.c.b16 %v1536, %v1531
    %v1922 = vpack.c.b16 %v1542, %v1537
    %v1923 = vpack.c.b16 %v1543, %v1538
    %v1924 = vpack.c.b16 %v1544, %v1539
    %v1925 = vpack.c.b16 %v1545, %v1540
    %v1926 = vpack.c.b16 %v1546, %v1541
    %v1927 = vpack.c.b16 %v1552, %v1547
    %v1928 = vpack.c.b16 %v1553, %v1548
    %v1929 = vpack.c.b16 %v1554, %v1549
    %v1930 = vpack.c.b16 %v1555, %v1550
    %v1931 = vpack.c.b16 %v1556, %v1551
    %v1932 = vpack.c.b16 %v1562, %v1557
    %v1933 = vpack.c.b16 %v1563, %v1558
    %v1934 = vpack.c.b16 %v1564, %v1559
    %v1935 = vpack.c.b16 %v1565, %v1560
    %v1936 = vpack.c.b16 %v1566, %v1561
    %v1937 = vpack.c.b16 %v1572, %v1567
    %v1938 = vpack.c.b16 %v1573, %v1568
    %v1939 = vpack.c.b16 %v1574, %v1569
    %v1940 = vpack.c.b16 %v1575, %v1570
    %v1941 = vpack.c.b16 %v1576, %v1571
    %v1942 = vpack.c.b16 %v1582, %v1577
    %v1943 = vpack.c.b16 %v1583, %v1578
    %v1944 = vpack.c.b16 %v1584, %v1579
    %v1945 = vpack.c.b16 %v1585, %v1580
    %v1946 = vpack.c.b16 %v1586, %v1581
    %v1947 = vpack.c.b16 %v1592, %v1587
    %v1948 = vpack.c.b16 %v1593, %v1588
    %v1949 = vpack.c.b16 %v1594, %v1589
    %v1950 = vpack.c.b16 %v1595, %v1590
    %v1951 = vpack.c.b16 %v1596, %v1591
    %v1952 = vpack.c.b16 %v1602, %v1597
    %v1953 = vpack.c.b16 %v1603, %v1598
    %v1954 = vpack.c.b16 %v1604, %v1599
    %v1955 = vpack.c.b16 %v1605, %v1600
    %v1956 = vpack.c.b16 %v1606, %v1601
    %v1957 = vpack.c.b16 %v1612, %v1607
    %v1958 = vpack.c.b16 %v1613, %v1608
    %v1959 = vpack.c.b16 %v1614, %v1609
    %v1960 = vpack.c.b16 %v1615, %v1610
    %v1961 = vpack.c.b16 %v1616, %v1611
    %v1962 = vpack.c.b16 %v1622, %v1617
    %v1963 = vpack.c.b16 %v1623, %v1618
    %v1964 = vpack.c.b16 %v1624, %v1619
    %v1965 = vpack.c.b16 %v1625, %v1620
    %v1966 = vpack.c.b16 %v1626, %v1621
    %v1967 = vpack.c.b16 %v1632, %v1627
    %v1968 = vpack.c.b16 %v1633, %v1628
    %v1969 = vpack.c.b16 %v1634, %v1629
    %v1970 = vpack.c.b16 %v1635, %v1630
    %v1971 = vpack.c.b16 %v1636, %v1631
    %v1972 = vpack.c.b16 %v1642, %v1637
    %v1973 = vpack.c.b16 %v1643, %v1638
    %v1974 = vpack.c.b16 %v1644, %v1639
    %v1975 = vpack.c.b16 %v1645, %v1640
    %v1976 = vpack.c.b16 %v1646, %v1641
    %v1977 = vpack.c.b16 %v1652, %v1647
    %v1978 = vpack.c.b16 %v1653, %v1648
    %v1979 = vpack.c.b16 %v1654, %v1649
    %v1980 = vpack.c.b16 %v1655, %v1650
    %v1981 = vpack.c.b16 %v1656, %v1651
    %v1982 = vpack.c.b16 %v1662, %v1657
    %v1983 = vpack.c.b16 %v1663, %v1658
    %v1984 = vpack.c.b16 %v1664, %v1659
    %v1985 = vpack.c.b16 %v1665, %v1660
    %v1986 = vpack.c.b16 %v1666, %v1661
    %v1987 = vpack.c.b16 %v1672, %v1667
    %v1988 = vpack.c.b16 %v1673, %v1668
    %v1989 = vpack.c.b16 %v1674, %v1669
    %v1990 = vpack.c.b16 %v1675, %v1670
    %v1991 = vpack.c.b16 %v1676, %v1671
    %v1992 = vpack.c.b16 %v1682, %v1677
    %v1993 = vpack.c.b16 %v1683, %v1678
    %v1994 = vpack.c.b16 %v1684, %v1679
    %v1995 = vpack.c.b16 %v1685, %v1680
    %v1996 = vpack.c.b16 %v1686, %v1681
    %v1997 = vpack.c.b16 %v1692, %v1687
    %v1998 = vpack.c.b16 %v1693, %v1688
    %v1999 = vpack.c.b16 %v1694, %v1689
    %v2000 = vpack.c.b16 %v1695, %v1690
    %v2001 = vpack.c.b16 %v1696, %v1691
    %v2002 = vpack.c.b16 %v1702, %v1697
    %v2003 = vpack.c.b16 %v1703, %v1698
    %v2004 = vpack.c.b16 %v1704, %v1699
    %v2005 = vpack.c.b16 %v1705, %v1700
    %v2006 = vpack.c.b16 %v1706, %v1701
    %v2007 = vpack.c.b16 %v1712, %v1707
    %v2008 = vpack.c.b16 %v1713, %v1708
    %v2009 = vpack.c.b16 %v1714, %v1709
    %v2010 = vpack.c.b16 %v1715, %v1710
    %v2011 = vpack.c.b16 %v1716, %v1711
    %v2012 = vpack.c.b16 %v1722, %v1717
    %v2013 = vpack.c.b16 %v1723, %v1718
    %v2014 = vpack.c.b16 %v1724, %v1719
    %v2015 = vpack.c.b16 %v1725, %v1720
    %v2016 = vpack.c.b16 %v1726, %v1721
    %v2017 = vpack.c.b16 %v1732, %v1727
    %v2018 = vpack.c.b16 %v1733, %v1728
    %v2019 = vpack.c.b16 %v1734, %v1729
    %v2020 = vpack.c.b16 %v1735, %v1730
    %v2021 = vpack.c.b16 %v1736, %v1731
    %v2022 = vpack.c.b16 %v1742, %v1737
    %v2023 = vpack.c.b16 %v1743, %v1738
    %v2024 = vpack.c.b16 %v1744, %v1739
    %v2025 = vpack.c.b16 %v1745, %v1740
    %v2026 = vpack.c.b16 %v1746, %v1741
    %v2027 = vpack.c.b16 %v1752, %v1747
    %v2028 = vpack.c.b16 %v1753, %v1748
    %v2029 = vpack.c.b16 %v1754, %v1749
    %v2030 = vpack.c.b16 %v1755, %v1750
    %v2031 = vpack.c.b16 %v1756, %v1751
    %v2032 = vpack.c.b16 %v1762, %v1757
    %v2033 = vpack.c.b16 %v1763, %v1758
    %v2034 = vpack.c.b16 %v1764, %v1759
    %v2035 = vpack.c.b16 %v1765, %v1760
    %v2036 = vpack.c.b16 %v1766, %v1761
    %v2037 = vpack.c.b16 %v1772, %v1767
    %v2038 = vpack.c.b16 %v1773, %v1768
    %v2039 = vpack.c.b16 %v1774, %v1769
    %v2040 = vpack.c.b16 %v1775, %v1770
    %v2041 = vpack.c.b16 %v1776, %v1771
    %v2042 = vpack.c.b16 %v1782, %v1777
    %v2043 = vpack.c.b16 %v1783, %v1778
    %v2044 = vpack.c.b16 %v1784, %v1779
    %v2045 = vpack.c.b16 %v1785, %v1780
    %v2046 = vpack.c.b16 %v1786, %v1781
    %v2047 = vpack.c.b16 %v1792, %v1787
    %v2048 = vpack.c.b16 %v1793, %v1788
    %v2049 = vpack.c.b16 %v1794, %v1789
    %v2050 = vpack.c.b16 %v1795, %v1790
    %v2051 = vpack.c.b16 %v1796, %v1791
    %v2052 = vpack.c.b16 %v1802, %v1797
    %v2053 = vpack.c.b16 %v1803, %v1798
    %v2054 = vpack.c.b16 %v1804, %v1799
    %v2055 = vpack.c.b16 %v1805, %v1800
    %v2056 = vpack.c.b16 %v1806, %v1801
    %v2057 = vpack.c.b16 %v1812, %v1807
    %v2058 = vpack.c.b16 %v1813, %v1808
    %v2059 = vpack.c.b16 %v1814, %v1809
    %v2060 = vpack.c.b16 %v1815, %v1810
    %v2061 = vpack.c.b16 %v1816, %v1811
    %v2062 = vpack.c.b16 %v1822, %v1817
    %v2063 = vpack.c.b16 %v1823, %v1818
    %v2064 = vpack.c.b16 %v1824, %v1819
    %v2065 = vpack.c.b16 %v1825, %v1820
    %v2066 = vpack.c.b16 %v1826, %v1821
    %v2067 = vpack.c.b16 %v1832, %v1827
    %v2068 = vpack.c.b16 %v1833, %v1828
    %v2069 = vpack.c.b16 %v1834, %v1829
    %v2070 = vpack.c.b16 %v1835, %v1830
    %v2071 = vpack.c.b16 %v1836, %v1831
    %v2072 = vpack.c.b16 %v1842, %v1837
    %v2073 = vpack.c.b16 %v1843, %v1838
    %v2074 = vpack.c.b16 %v1844, %v1839
    %v2075 = vpack.c.b16 %v1845, %v1840
    %v2076 = vpack.c.b16 %v1846, %v1841
    %v2077 = vpack.c.b16 %v1852, %v1847
    %v2078 = vpack.c.b16 %v1853, %v1848
    %v2079 = vpack.c.b16 %v1854, %v1849
    %v2080 = vpack.c.b16 %v1855, %v1850
    %v2081 = vpack.c.b16 %v1856, %v1851
    %v2082 = vpack.c.b16 %v1862, %v1857
    %v2083 = vpack.c.b16 %v1863, %v1858
    %v2084 = vpack.c.b16 %v1864, %v1859
    %v2085 = vpack.c.b16 %v1865, %v1860
    %v2086 = vpack.c.b16 %v1866, %v1861
    %v2087 = vpack.c.b16 %v1872, %v1867
    %v2088 = vpack.c.b16 %v1873, %v1868
    %v2089 = vpack.c.b16 %v1874, %v1869
    %v2090 = vpack.c.b16 %v1875, %v1870
    %v2091 = vpack.c.b16 %v1876, %v1871
    %v2092 = vpack.c.b16 %v1882, %v1877
    %v2093 = vpack.c.b16 %v1883, %v1878
    %v2094 = vpack.c.b16 %v1884, %v1879
    %v2095 = vpack.c.b16 %v1885, %v1880
    %v2096 = vpack.c.b16 %v1886, %v1881
    %v2097 = vpack.c.b16 %v1892, %v1887
    %v2098 = vpack.c.b16 %v1893, %v1888
    %v2099 = vpack.c.b16 %v1894, %v1889
    %v2100 = vpack.c.b16 %v1895, %v1890
    %v2101 = vpack.c.b16 %v1896, %v1891
    %v2102 = vpack.c.b16 %v1902, %v1897
    %v2103 = vpack.c.b16 %v1903, %v1898
    %v2104 = vpack.c.b16 %v1904, %v1899
    %v2105 = vpack.c.b16 %v1905, %v1900
    %v2106 = vpack.c.b16 %v1906, %v1901
    %2307 = vmatprep.subr.bf16.mxu0 0
    %2308 = vmatpush1.bf16.msra.mxu0 %v1227
    %2309 = vmatprep.subr.bf16.mxu0 0
    %2310 = vmatpush1.bf16.msra.mxu0 %v1228
    %2311 = vmatprep.subr.bf16.mxu0 0
    %2312 = vmatpush1.bf16.msra.mxu0 %v1229
    %2313 = vmatprep.subr.bf16.mxu0 0
    %2314 = vmatpush1.bf16.msra.mxu0 %v1230
    %2315 = vmatprep.subr.bf16.mxu0 0
    %2316 = vmatpush1.bf16.msra.mxu0 %v1231
    %2317 = vmatprep.subr.bf16.mxu0 0
    %2318 = vmatpush1.bf16.msra.mxu0 %v1232
    %2319 = vmatprep.subr.bf16.mxu0 0
    %2320 = vmatpush1.bf16.msra.mxu0 %v1233
    %2321 = vmatprep.subr.bf16.mxu0 0
    %2322 = vmatpush1.bf16.msra.mxu0 %v1234
    %2323 = vmatprep.subr.bf16.mxu0 0
    %2324 = vmatpush1.bf16.msra.mxu0 %v1235
    %2325 = vmatprep.subr.bf16.mxu0 0
    %2326 = vmatpush1.bf16.msra.mxu0 %v1236
    %2327 = vmatprep.subr.bf16.mxu0 0
    %2328 = vmatpush1.bf16.msra.mxu0 %v1237
    %2329 = vmatprep.subr.bf16.mxu0 0
    %2330 = vmatpush1.bf16.msra.mxu0 %v1238
    %2331 = vmatprep.subr.bf16.mxu0 0
    %2332 = vmatpush1.bf16.msra.mxu0 %v1239
    %2333 = vmatprep.subr.bf16.mxu0 0
    %2334 = vmatpush1.bf16.msra.mxu0 %v1240
    %2335 = vmatprep.subr.bf16.mxu0 0
    %2336 = vmatpush1.bf16.msra.mxu0 %v1241
    %2337 = vmatprep.subr.bf16.mxu0 0
    %2338 = vmatpush1.bf16.msra.mxu0 %v1242
    %2339 = vmatprep.mubr.bf16.mxu0 %v1908
    %2340 = vmatmul.mubr.bf16.gmra.mrb[0].mxu0 %v1907
    %v2341 = vpop.f32.mrb[0].mxu0
    %v2342 = vadd.f32 0.0, %v2341
    %v2343 = vpop.f32.mrb[0].mxu0
    %v2344 = vpop.f32.mrb[0].mxu0
    %v2345 = vadd.f32 0.0, %v2344
    %v2346 = vpop.f32.mrb[0].mxu0
    %2347 = vmatprep.mubr.bf16.mxu0 %v1913
    %2348 = vmatmul.mubr.bf16.gmra.mrb[0].mxu0 %v1912
    %v2349 = vpop.f32.mrb[0].mxu0
    %v2350 = vadd.f32 0.0, %v2349
    %v2351 = vpop.f32.mrb[0].mxu0
    %v2352 = vpop.f32.mrb[0].mxu0
    %v2353 = vadd.f32 0.0, %v2352
    %v2354 = vpop.f32.mrb[0].mxu0
    %2355 = vmatprep.mubr.bf16.mxu0 %v1918
    %2356 = vmatmul.mubr.bf16.gmra.mrb[0].mxu0 %v1917
    %v2357 = vpop.f32.mrb[0].mxu0
    %v2358 = vadd.f32 0.0, %v2357
    %v2359 = vpop.f32.mrb[0].mxu0
    %v2360 = vpop.f32.mrb[0].mxu0
    %v2361 = vadd.f32 0.0, %v2360
    %v2362 = vpop.f32.mrb[0].mxu0
    %2363 = vmatprep.mubr.bf16.mxu0 %v1923
    %2364 = vmatmul.mubr.bf16.gmra.mrb[0].mxu0 %v1922
    %v2365 = vpop.f32.mrb[0].mxu0
    %v2366 = vadd.f32 0.0, %v2365
    %v2367 = vpop.f32.mrb[0].mxu0
    %v2368 = vpop.f32.mrb[0].mxu0
    %v2369 = vadd.f32 0.0, %v2368
    %v2370 = vpop.f32.mrb[0].mxu0
    %2371 = vmatprep.mubr.bf16.mxu0 %v1928
    %2372 = vmatmul.mubr.bf16.gmra.mrb[0].mxu0 %v1927
    %v2373 = vpop.f32.mrb[0].mxu0
    %v2374 = vadd.f32 0.0, %v2373
    %v2375 = vpop.f32.mrb[0].mxu0
    %v2376 = vpop.f32.mrb[0].mxu0
    %v2377 = vadd.f32 0.0, %v2376
    %v2378 = vpop.f32.mrb[0].mxu0
    %2379 = vmatprep.mubr.bf16.mxu0 %v1933
    %2380 = vmatmul.mubr.bf16.gmra.mrb[0].mxu0 %v1932
    %v2381 = vpop.f32.mrb[0].mxu0
    %v2382 = vadd.f32 0.0, %v2381
    %v2383 = vpop.f32.mrb[0].mxu0
    %v2384 = vpop.f32.mrb[0].mxu0
    %v2385 = vadd.f32 0.0, %v2384
    %v2386 = vpop.f32.mrb[0].mxu0
    %2387 = vmatprep.mubr.bf16.mxu0 %v1938
    %2388 = vmatmul.mubr.bf16.gmra.mrb[0].mxu0 %v1937
    %v2389 = vpop.f32.mrb[0].mxu0
    %v2390 = vadd.f32 0.0, %v2389
    %v2391 = vpop.f32.mrb[0].mxu0
    %v2392 = vpop.f32.mrb[0].mxu0
    %v2393 = vadd.f32 0.0, %v2392
    %v2394 = vpop.f32.mrb[0].mxu0
    %2395 = vmatprep.mubr.bf16.mxu0 %v1943
    %2396 = vmatmul.mubr.bf16.gmra.mrb[0].mxu0 %v1942
    %v2397 = vpop.f32.mrb[0].mxu0
    %v2398 = vadd.f32 0.0, %v2397
    %v2399 = vpop.f32.mrb[0].mxu0
    %v2400 = vpop.f32.mrb[0].mxu0
    %v2401 = vadd.f32 0.0, %v2400
    %v2402 = vpop.f32.mrb[0].mxu0
    %2403 = vmatprep.mubr.bf16.mxu0 %v1948
    %2404 = vmatmul.mubr.bf16.gmra.mrb[0].mxu0 %v1947
    %v2405 = vpop.f32.mrb[0].mxu0
    %v2406 = vadd.f32 0.0, %v2405
    %v2407 = vpop.f32.mrb[0].mxu0
    %v2408 = vpop.f32.mrb[0].mxu0
    %v2409 = vadd.f32 0.0, %v2408
    %v2410 = vpop.f32.mrb[0].mxu0
    %2411 = vmatprep.mubr.bf16.mxu0 %v1953
    %2412 = vmatmul.mubr.bf16.gmra.mrb[0].mxu0 %v1952
    %v2413 = vpop.f32.mrb[0].mxu0
    %v2414 = vadd.f32 0.0, %v2413
    %v2415 = vpop.f32.mrb[0].mxu0
    %v2416 = vpop.f32.mrb[0].mxu0
    %v2417 = vadd.f32 0.0, %v2416
    %v2418 = vpop.f32.mrb[0].mxu0
    %2419 = vmatprep.mubr.bf16.mxu0 %v1958
    %2420 = vmatmul.mubr.bf16.gmra.mrb[0].mxu0 %v1957
    %v2421 = vpop.f32.mrb[0].mxu0
    %v2422 = vadd.f32 0.0, %v2421
    %v2423 = vpop.f32.mrb[0].mxu0
    %v2424 = vpop.f32.mrb[0].mxu0
    %v2425 = vadd.f32 0.0, %v2424
    %v2426 = vpop.f32.mrb[0].mxu0
    %2427 = vmatprep.mubr.bf16.mxu0 %v1963
    %2428 = vmatmul.mubr.bf16.gmra.mrb[0].mxu0 %v1962
    %v2429 = vpop.f32.mrb[0].mxu0
    %v2430 = vadd.f32 0.0, %v2429
    %v2431 = vpop.f32.mrb[0].mxu0
    %v2432 = vpop.f32.mrb[0].mxu0
    %v2433 = vadd.f32 0.0, %v2432
    %v2434 = vpop.f32.mrb[0].mxu0
    %2435 = vmatprep.mubr.bf16.mxu0 %v1968
    %2436 = vmatmul.mubr.bf16.gmra.mrb[0].mxu0 %v1967
    %v2437 = vpop.f32.mrb[0].mxu0
    %v2438 = vadd.f32 0.0, %v2437
    %v2439 = vpop.f32.mrb[0].mxu0
    %v2440 = vpop.f32.mrb[0].mxu0
    %v2441 = vadd.f32 0.0, %v2440
    %v2442 = vpop.f32.mrb[0].mxu0
    %2443 = vmatprep.mubr.bf16.mxu0 %v1973
    %2444 = vmatmul.mubr.bf16.gmra.mrb[0].mxu0 %v1972
    %v2445 = vpop.f32.mrb[0].mxu0
    %v2446 = vadd.f32 0.0, %v2445
    %v2447 = vpop.f32.mrb[0].mxu0
    %v2448 = vpop.f32.mrb[0].mxu0
    %v2449 = vadd.f32 0.0, %v2448
    %v2450 = vpop.f32.mrb[0].mxu0
    %2451 = vmatprep.mubr.bf16.mxu0 %v1978
    %2452 = vmatmul.mubr.bf16.gmra.mrb[0].mxu0 %v1977
    %v2453 = vpop.f32.mrb[0].mxu0
    %v2454 = vadd.f32 0.0, %v2453
    %v2455 = vpop.f32.mrb[0].mxu0
    %v2456 = vpop.f32.mrb[0].mxu0
    %v2457 = vadd.f32 0.0, %v2456
    %v2458 = vpop.f32.mrb[0].mxu0
    %2459 = vmatprep.mubr.bf16.mxu0 %v1983
    %2460 = vmatmul.mubr.bf16.gmra.mrb[0].mxu0 %v1982
    %v2461 = vpop.f32.mrb[0].mxu0
    %v2462 = vadd.f32 0.0, %v2461
    %v2463 = vpop.f32.mrb[0].mxu0
    %v2464 = vpop.f32.mrb[0].mxu0
    %v2465 = vadd.f32 0.0, %v2464
    %v2466 = vpop.f32.mrb[0].mxu0
    %2467 = vmatprep.mubr.bf16.mxu0 %v1988
    %2468 = vmatmul.mubr.bf16.gmra.mrb[0].mxu0 %v1987
    %v2469 = vpop.f32.mrb[0].mxu0
    %v2470 = vadd.f32 0.0, %v2469
    %v2471 = vpop.f32.mrb[0].mxu0
    %v2472 = vpop.f32.mrb[0].mxu0
    %v2473 = vadd.f32 0.0, %v2472
    %v2474 = vpop.f32.mrb[0].mxu0
    %2475 = vmatprep.mubr.bf16.mxu0 %v1993
    %2476 = vmatmul.mubr.bf16.gmra.mrb[0].mxu0 %v1992
    %v2477 = vpop.f32.mrb[0].mxu0
    %v2478 = vadd.f32 0.0, %v2477
    %v2479 = vpop.f32.mrb[0].mxu0
    %v2480 = vpop.f32.mrb[0].mxu0
    %v2481 = vadd.f32 0.0, %v2480
    %v2482 = vpop.f32.mrb[0].mxu0
    %2483 = vmatprep.mubr.bf16.mxu0 %v1998
    %2484 = vmatmul.mubr.bf16.gmra.mrb[0].mxu0 %v1997
    %v2485 = vpop.f32.mrb[0].mxu0
    %v2486 = vadd.f32 0.0, %v2485
    %v2487 = vpop.f32.mrb[0].mxu0
    %v2488 = vpop.f32.mrb[0].mxu0
    %v2489 = vadd.f32 0.0, %v2488
    %v2490 = vpop.f32.mrb[0].mxu0
    %2491 = vmatprep.mubr.bf16.mxu0 %v2003
    %2492 = vmatmul.mubr.bf16.gmra.mrb[0].mxu0 %v2002
    %v2493 = vpop.f32.mrb[0].mxu0
    %v2494 = vadd.f32 0.0, %v2493
    %v2495 = vpop.f32.mrb[0].mxu0
    %v2496 = vpop.f32.mrb[0].mxu0
    %v2497 = vadd.f32 0.0, %v2496
    %v2498 = vpop.f32.mrb[0].mxu0
    %2499 = vmatprep.mubr.bf16.mxu0 %v2008
    %2500 = vmatmul.mubr.bf16.gmra.mrb[0].mxu0 %v2007
    %v2501 = vpop.f32.mrb[0].mxu0
    %v2502 = vadd.f32 0.0, %v2501
    %v2503 = vpop.f32.mrb[0].mxu0
    %v2504 = vpop.f32.mrb[0].mxu0
    %v2505 = vadd.f32 0.0, %v2504
    %v2506 = vpop.f32.mrb[0].mxu0
    %2507 = vmatprep.mubr.bf16.mxu0 %v2013
    %2508 = vmatmul.mubr.bf16.gmra.mrb[0].mxu0 %v2012
    %v2509 = vpop.f32.mrb[0].mxu0
    %v2510 = vadd.f32 0.0, %v2509
    %v2511 = vpop.f32.mrb[0].mxu0
    %v2512 = vpop.f32.mrb[0].mxu0
    %v2513 = vadd.f32 0.0, %v2512
    %v2514 = vpop.f32.mrb[0].mxu0
    %2515 = vmatprep.mubr.bf16.mxu0 %v2018
    %2516 = vmatmul.mubr.bf16.gmra.mrb[0].mxu0 %v2017
    %v2517 = vpop.f32.mrb[0].mxu0
    %v2518 = vadd.f32 0.0, %v2517
    %v2519 = vpop.f32.mrb[0].mxu0
    %v2520 = vpop.f32.mrb[0].mxu0
    %v2521 = vadd.f32 0.0, %v2520
    %v2522 = vpop.f32.mrb[0].mxu0
    %2523 = vmatprep.mubr.bf16.mxu0 %v2023
    %2524 = vmatmul.mubr.bf16.gmra.mrb[0].mxu0 %v2022
    %v2525 = vpop.f32.mrb[0].mxu0
    %v2526 = vadd.f32 0.0, %v2525
    %v2527 = vpop.f32.mrb[0].mxu0
    %v2528 = vpop.f32.mrb[0].mxu0
    %v2529 = vadd.f32 0.0, %v2528
    %v2530 = vpop.f32.mrb[0].mxu0
    %2531 = vmatprep.mubr.bf16.mxu0 %v2028
    %2532 = vmatmul.mubr.bf16.gmra.mrb[0].mxu0 %v2027
    %v2533 = vpop.f32.mrb[0].mxu0
    %v2534 = vadd.f32 0.0, %v2533
    %v2535 = vpop.f32.mrb[0].mxu0
    %v2536 = vpop.f32.mrb[0].mxu0
    %v2537 = vadd.f32 0.0, %v2536
    %v2538 = vpop.f32.mrb[0].mxu0
    %2539 = vmatprep.mubr.bf16.mxu0 %v2033
    %2540 = vmatmul.mubr.bf16.gmra.mrb[0].mxu0 %v2032
    %v2541 = vpop.f32.mrb[0].mxu0
    %v2542 = vadd.f32 0.0, %v2541
    %v2543 = vpop.f32.mrb[0].mxu0
    %v2544 = vpop.f32.mrb[0].mxu0
    %v2545 = vadd.f32 0.0, %v2544
    %v2546 = vpop.f32.mrb[0].mxu0
    %2547 = vmatprep.mubr.bf16.mxu0 %v2038
    %2548 = vmatmul.mubr.bf16.gmra.mrb[0].mxu0 %v2037
    %v2549 = vpop.f32.mrb[0].mxu0
    %v2550 = vadd.f32 0.0, %v2549
    %v2551 = vpop.f32.mrb[0].mxu0
    %v2552 = vpop.f32.mrb[0].mxu0
    %v2553 = vadd.f32 0.0, %v2552
    %v2554 = vpop.f32.mrb[0].mxu0
    %2555 = vmatprep.mubr.bf16.mxu0 %v2043
    %2556 = vmatmul.mubr.bf16.gmra.mrb[0].mxu0 %v2042
    %v2557 = vpop.f32.mrb[0].mxu0
    %v2558 = vadd.f32 0.0, %v2557
    %v2559 = vpop.f32.mrb[0].mxu0
    %v2560 = vpop.f32.mrb[0].mxu0
    %v2561 = vadd.f32 0.0, %v2560
    %v2562 = vpop.f32.mrb[0].mxu0
    %2563 = vmatprep.mubr.bf16.mxu0 %v2048
    %2564 = vmatmul.mubr.bf16.gmra.mrb[0].mxu0 %v2047
    %v2565 = vpop.f32.mrb[0].mxu0
    %v2566 = vadd.f32 0.0, %v2565
    %v2567 = vpop.f32.mrb[0].mxu0
    %v2568 = vpop.f32.mrb[0].mxu0
    %v2569 = vadd.f32 0.0, %v2568
    %v2570 = vpop.f32.mrb[0].mxu0
    %2571 = vmatprep.mubr.bf16.mxu0 %v2053
    %2572 = vmatmul.mubr.bf16.gmra.mrb[0].mxu0 %v2052
    %v2573 = vpop.f32.mrb[0].mxu0
    %v2574 = vadd.f32 0.0, %v2573
    %v2575 = vpop.f32.mrb[0].mxu0
    %v2576 = vpop.f32.mrb[0].mxu0
    %v2577 = vadd.f32 0.0, %v2576
    %v2578 = vpop.f32.mrb[0].mxu0
    %2579 = vmatprep.mubr.bf16.mxu0 %v2058
    %2580 = vmatmul.mubr.bf16.gmra.mrb[0].mxu0 %v2057
    %v2581 = vpop.f32.mrb[0].mxu0
    %v2582 = vadd.f32 0.0, %v2581
    %v2583 = vpop.f32.mrb[0].mxu0
    %v2584 = vpop.f32.mrb[0].mxu0
    %v2585 = vadd.f32 0.0, %v2584
    %v2586 = vpop.f32.mrb[0].mxu0
    %2587 = vmatprep.mubr.bf16.mxu0 %v2063
    %2588 = vmatmul.mubr.bf16.gmra.mrb[0].mxu0 %v2062
    %v2589 = vpop.f32.mrb[0].mxu0
    %v2590 = vadd.f32 0.0, %v2589
    %v2591 = vpop.f32.mrb[0].mxu0
    %v2592 = vpop.f32.mrb[0].mxu0
    %v2593 = vadd.f32 0.0, %v2592
    %v2594 = vpop.f32.mrb[0].mxu0
    %2595 = vmatprep.mubr.bf16.mxu0 %v2068
    %2596 = vmatmul.mubr.bf16.gmra.mrb[0].mxu0 %v2067
    %v2597 = vpop.f32.mrb[0].mxu0
    %v2598 = vadd.f32 0.0, %v2597
    %v2599 = vpop.f32.mrb[0].mxu0
    %v2600 = vpop.f32.mrb[0].mxu0
    %v2601 = vadd.f32 0.0, %v2600
    %v2602 = vpop.f32.mrb[0].mxu0
    %2603 = vmatprep.mubr.bf16.mxu0 %v2073
    %2604 = vmatmul.mubr.bf16.gmra.mrb[0].mxu0 %v2072
    %v2605 = vpop.f32.mrb[0].mxu0
    %v2606 = vadd.f32 0.0, %v2605
    %v2607 = vpop.f32.mrb[0].mxu0
    %v2608 = vpop.f32.mrb[0].mxu0
    %v2609 = vadd.f32 0.0, %v2608
    %v2610 = vpop.f32.mrb[0].mxu0
    %2611 = vmatprep.mubr.bf16.mxu0 %v2078
    %2612 = vmatmul.mubr.bf16.gmra.mrb[0].mxu0 %v2077
    %v2613 = vpop.f32.mrb[0].mxu0
    %v2614 = vadd.f32 0.0, %v2613
    %v2615 = vpop.f32.mrb[0].mxu0
    %v2616 = vpop.f32.mrb[0].mxu0
    %v2617 = vadd.f32 0.0, %v2616
    %v2618 = vpop.f32.mrb[0].mxu0
    %2619 = vmatprep.mubr.bf16.mxu0 %v2083
    %2620 = vmatmul.mubr.bf16.gmra.mrb[0].mxu0 %v2082
    %v2621 = vpop.f32.mrb[0].mxu0
    %v2622 = vadd.f32 0.0, %v2621
    %v2623 = vpop.f32.mrb[0].mxu0
    %v2624 = vpop.f32.mrb[0].mxu0
    %v2625 = vadd.f32 0.0, %v2624
    %v2626 = vpop.f32.mrb[0].mxu0
    %2627 = vmatprep.mubr.bf16.mxu0 %v2088
    %2628 = vmatmul.mubr.bf16.gmra.mrb[0].mxu0 %v2087
    %v2629 = vpop.f32.mrb[0].mxu0
    %v2630 = vadd.f32 0.0, %v2629
    %v2631 = vpop.f32.mrb[0].mxu0
    %v2632 = vpop.f32.mrb[0].mxu0
    %v2633 = vadd.f32 0.0, %v2632
    %v2634 = vpop.f32.mrb[0].mxu0
    %2635 = vmatprep.mubr.bf16.mxu0 %v2093
    %2636 = vmatmul.mubr.bf16.gmra.mrb[0].mxu0 %v2092
    %v2637 = vpop.f32.mrb[0].mxu0
    %v2638 = vadd.f32 0.0, %v2637
    %v2639 = vpop.f32.mrb[0].mxu0
    %v2640 = vpop.f32.mrb[0].mxu0
    %v2641 = vadd.f32 0.0, %v2640
    %v2642 = vpop.f32.mrb[0].mxu0
    %2643 = vmatprep.mubr.bf16.mxu0 %v2098
    %2644 = vmatmul.mubr.bf16.gmra.mrb[0].mxu0 %v2097
    %v2645 = vpop.f32.mrb[0].mxu0
    %v2646 = vadd.f32 0.0, %v2645
    %v2647 = vpop.f32.mrb[0].mxu0
    %v2648 = vpop.f32.mrb[0].mxu0
    %v2649 = vadd.f32 0.0, %v2648
    %v2650 = vpop.f32.mrb[0].mxu0
    %2651 = vmatprep.mubr.bf16.mxu0 %v2103
    %2652 = vmatmul.mubr.bf16.gmra.mrb[0].mxu0 %v2102
    %v2653 = vpop.f32.mrb[0].mxu0
    %v2654 = vadd.f32 0.0, %v2653
    %v2655 = vpop.f32.mrb[0].mxu0
    %v2656 = vpop.f32.mrb[0].mxu0
    %v2657 = vadd.f32 0.0, %v2656
    %v2658 = vpop.f32.mrb[0].mxu0
    %2659 = vdwg.mxu0
    %2660 = vmatprep.subr.bf16.mxu0 0
    %2661 = vmatpush1.bf16.msra.mxu0 %v1243
    %2662 = vmatprep.subr.bf16.mxu0 0
    %2663 = vmatpush1.bf16.msra.mxu0 %v1244
    %2664 = vmatprep.subr.bf16.mxu0 0
    %2665 = vmatpush1.bf16.msra.mxu0 %v1245
    %2666 = vmatprep.subr.bf16.mxu0 0
    %2667 = vmatpush1.bf16.msra.mxu0 %v1246
    %2668 = vmatprep.subr.bf16.mxu0 0
    %2669 = vmatpush1.bf16.msra.mxu0 %v1247
    %2670 = vmatprep.subr.bf16.mxu0 0
    %2671 = vmatpush1.bf16.msra.mxu0 %v1248
    %2672 = vmatprep.subr.bf16.mxu0 0
    %2673 = vmatpush1.bf16.msra.mxu0 %v1249
    %2674 = vmatprep.subr.bf16.mxu0 0
    %2675 = vmatpush1.bf16.msra.mxu0 %v1250
    %2676 = vmatprep.subr.bf16.mxu0 0
    %2677 = vmatpush1.bf16.msra.mxu0 %v1251
    %2678 = vmatprep.subr.bf16.mxu0 0
    %2679 = vmatpush1.bf16.msra.mxu0 %v1252
    %2680 = vmatprep.subr.bf16.mxu0 0
    %2681 = vmatpush1.bf16.msra.mxu0 %v1253
    %2682 = vmatprep.subr.bf16.mxu0 0
    %2683 = vmatpush1.bf16.msra.mxu0 %v1254
    %2684 = vmatprep.subr.bf16.mxu0 0
    %2685 = vmatpush1.bf16.msra.mxu0 %v1255
    %2686 = vmatprep.subr.bf16.mxu0 0
    %2687 = vmatpush1.bf16.msra.mxu0 %v1256
    %2688 = vmatprep.subr.bf16.mxu0 0
    %2689 = vmatpush1.bf16.msra.mxu0 %v1257
    %2690 = vmatprep.subr.bf16.mxu0 0
    %2691 = vmatpush1.bf16.msra.mxu0 %v1258
    %2692 = vmatprep.mubr.bf16.mxu0 %v1910
    %2693 = vmatmul.mubr.bf16.gmra.mrb[0].mxu0 %v1909
    %v2694 = vpop.f32.mrb[0].mxu0
    %v2695 = vadd.f32 %v2342, %v2694
    %v2696 = vpop.f32.mrb[0].mxu0
    %v2697 = vpop.f32.mrb[0].mxu0
    %v2698 = vadd.f32 %v2345, %v2697
    %v2699 = vpop.f32.mrb[0].mxu0
    %2700 = vmatprep.mubr.bf16.mxu0 %v1915
    %2701 = vmatmul.mubr.bf16.gmra.mrb[0].mxu0 %v1914
    %v2702 = vpop.f32.mrb[0].mxu0
    %v2703 = vadd.f32 %v2350, %v2702
    %v2704 = vpop.f32.mrb[0].mxu0
    %v2705 = vpop.f32.mrb[0].mxu0
    %v2706 = vadd.f32 %v2353, %v2705
    %v2707 = vpop.f32.mrb[0].mxu0
    %2708 = vmatprep.mubr.bf16.mxu0 %v1920
    %2709 = vmatmul.mubr.bf16.gmra.mrb[0].mxu0 %v1919
    %v2710 = vpop.f32.mrb[0].mxu0
    %v2711 = vadd.f32 %v2358, %v2710
    %v2712 = vpop.f32.mrb[0].mxu0
    %v2713 = vpop.f32.mrb[0].mxu0
    %v2714 = vadd.f32 %v2361, %v2713
    %v2715 = vpop.f32.mrb[0].mxu0
    %2716 = vmatprep.mubr.bf16.mxu0 %v1925
    %2717 = vmatmul.mubr.bf16.gmra.mrb[0].mxu0 %v1924
    %v2718 = vpop.f32.mrb[0].mxu0
    %v2719 = vadd.f32 %v2366, %v2718
    %v2720 = vpop.f32.mrb[0].mxu0
    %v2721 = vpop.f32.mrb[0].mxu0
    %v2722 = vadd.f32 %v2369, %v2721
    %v2723 = vpop.f32.mrb[0].mxu0
    %2724 = vmatprep.mubr.bf16.mxu0 %v1930
    %2725 = vmatmul.mubr.bf16.gmra.mrb[0].mxu0 %v1929
    %v2726 = vpop.f32.mrb[0].mxu0
    %v2727 = vadd.f32 %v2374, %v2726
    %v2728 = vpop.f32.mrb[0].mxu0
    %v2729 = vpop.f32.mrb[0].mxu0
    %v2730 = vadd.f32 %v2377, %v2729
    %v2731 = vpop.f32.mrb[0].mxu0
    %2732 = vmatprep.mubr.bf16.mxu0 %v1935
    %2733 = vmatmul.mubr.bf16.gmra.mrb[0].mxu0 %v1934
    %v2734 = vpop.f32.mrb[0].mxu0
    %v2735 = vadd.f32 %v2382, %v2734
    %v2736 = vpop.f32.mrb[0].mxu0
    %v2737 = vpop.f32.mrb[0].mxu0
    %v2738 = vadd.f32 %v2385, %v2737
    %v2739 = vpop.f32.mrb[0].mxu0
    %2740 = vmatprep.mubr.bf16.mxu0 %v1940
    %2741 = vmatmul.mubr.bf16.gmra.mrb[0].mxu0 %v1939
    %v2742 = vpop.f32.mrb[0].mxu0
    %v2743 = vadd.f32 %v2390, %v2742
    %v2744 = vpop.f32.mrb[0].mxu0
    %v2745 = vpop.f32.mrb[0].mxu0
    %v2746 = vadd.f32 %v2393, %v2745
    %v2747 = vpop.f32.mrb[0].mxu0
    %2748 = vmatprep.mubr.bf16.mxu0 %v1945
    %2749 = vmatmul.mubr.bf16.gmra.mrb[0].mxu0 %v1944
    %v2750 = vpop.f32.mrb[0].mxu0
    %v2751 = vadd.f32 %v2398, %v2750
    %v2752 = vpop.f32.mrb[0].mxu0
    %v2753 = vpop.f32.mrb[0].mxu0
    %v2754 = vadd.f32 %v2401, %v2753
    %v2755 = vpop.f32.mrb[0].mxu0
    %2756 = vmatprep.mubr.bf16.mxu0 %v1950
    %2757 = vmatmul.mubr.bf16.gmra.mrb[0].mxu0 %v1949
    %v2758 = vpop.f32.mrb[0].mxu0
    %v2759 = vadd.f32 %v2406, %v2758
    %v2760 = vpop.f32.mrb[0].mxu0
    %v2761 = vpop.f32.mrb[0].mxu0
    %v2762 = vadd.f32 %v2409, %v2761
    %v2763 = vpop.f32.mrb[0].mxu0
    %2764 = vmatprep.mubr.bf16.mxu0 %v1955
    %2765 = vmatmul.mubr.bf16.gmra.mrb[0].mxu0 %v1954
    %v2766 = vpop.f32.mrb[0].mxu0
    %v2767 = vadd.f32 %v2414, %v2766
    %v2768 = vpop.f32.mrb[0].mxu0
    %v2769 = vpop.f32.mrb[0].mxu0
    %v2770 = vadd.f32 %v2417, %v2769
    %v2771 = vpop.f32.mrb[0].mxu0
    %2772 = vmatprep.mubr.bf16.mxu0 %v1960
    %2773 = vmatmul.mubr.bf16.gmra.mrb[0].mxu0 %v1959
    %v2774 = vpop.f32.mrb[0].mxu0
    %v2775 = vadd.f32 %v2422, %v2774
    %v2776 = vpop.f32.mrb[0].mxu0
    %v2777 = vpop.f32.mrb[0].mxu0
    %v2778 = vadd.f32 %v2425, %v2777
    %v2779 = vpop.f32.mrb[0].mxu0
    %2780 = vmatprep.mubr.bf16.mxu0 %v1965
    %2781 = vmatmul.mubr.bf16.gmra.mrb[0].mxu0 %v1964
    %v2782 = vpop.f32.mrb[0].mxu0
    %v2783 = vadd.f32 %v2430, %v2782
    %v2784 = vpop.f32.mrb[0].mxu0
    %v2785 = vpop.f32.mrb[0].mxu0
    %v2786 = vadd.f32 %v2433, %v2785
    %v2787 = vpop.f32.mrb[0].mxu0
    %2788 = vmatprep.mubr.bf16.mxu0 %v1970
    %2789 = vmatmul.mubr.bf16.gmra.mrb[0].mxu0 %v1969
    %v2790 = vpop.f32.mrb[0].mxu0
    %v2791 = vadd.f32 %v2438, %v2790
    %v2792 = vpop.f32.mrb[0].mxu0
    %v2793 = vpop.f32.mrb[0].mxu0
    %v2794 = vadd.f32 %v2441, %v2793
    %v2795 = vpop.f32.mrb[0].mxu0
    %2796 = vmatprep.mubr.bf16.mxu0 %v1975
    %2797 = vmatmul.mubr.bf16.gmra.mrb[0].mxu0 %v1974
    %v2798 = vpop.f32.mrb[0].mxu0
    %v2799 = vadd.f32 %v2446, %v2798
    %v2800 = vpop.f32.mrb[0].mxu0
    %v2801 = vpop.f32.mrb[0].mxu0
    %v2802 = vadd.f32 %v2449, %v2801
    %v2803 = vpop.f32.mrb[0].mxu0
    %2804 = vmatprep.mubr.bf16.mxu0 %v1980
    %2805 = vmatmul.mubr.bf16.gmra.mrb[0].mxu0 %v1979
    %v2806 = vpop.f32.mrb[0].mxu0
    %v2807 = vadd.f32 %v2454, %v2806
    %v2808 = vpop.f32.mrb[0].mxu0
    %v2809 = vpop.f32.mrb[0].mxu0
    %v2810 = vadd.f32 %v2457, %v2809
    %v2811 = vpop.f32.mrb[0].mxu0
    %2812 = vmatprep.mubr.bf16.mxu0 %v1985
    %2813 = vmatmul.mubr.bf16.gmra.mrb[0].mxu0 %v1984
    %v2814 = vpop.f32.mrb[0].mxu0
    %v2815 = vadd.f32 %v2462, %v2814
    %v2816 = vpop.f32.mrb[0].mxu0
    %v2817 = vpop.f32.mrb[0].mxu0
    %v2818 = vadd.f32 %v2465, %v2817
    %v2819 = vpop.f32.mrb[0].mxu0
    %2820 = vmatprep.mubr.bf16.mxu0 %v1990
    %2821 = vmatmul.mubr.bf16.gmra.mrb[0].mxu0 %v1989
    %v2822 = vpop.f32.mrb[0].mxu0
    %v2823 = vadd.f32 %v2470, %v2822
    %v2824 = vpop.f32.mrb[0].mxu0
    %v2825 = vpop.f32.mrb[0].mxu0
    %v2826 = vadd.f32 %v2473, %v2825
    %v2827 = vpop.f32.mrb[0].mxu0
    %2828 = vmatprep.mubr.bf16.mxu0 %v1995
    %2829 = vmatmul.mubr.bf16.gmra.mrb[0].mxu0 %v1994
    %v2830 = vpop.f32.mrb[0].mxu0
    %v2831 = vadd.f32 %v2478, %v2830
    %v2832 = vpop.f32.mrb[0].mxu0
    %v2833 = vpop.f32.mrb[0].mxu0
    %v2834 = vadd.f32 %v2481, %v2833
    %v2835 = vpop.f32.mrb[0].mxu0
    %2836 = vmatprep.mubr.bf16.mxu0 %v2000
    %2837 = vmatmul.mubr.bf16.gmra.mrb[0].mxu0 %v1999
    %v2838 = vpop.f32.mrb[0].mxu0
    %v2839 = vadd.f32 %v2486, %v2838
    %v2840 = vpop.f32.mrb[0].mxu0
    %v2841 = vpop.f32.mrb[0].mxu0
    %v2842 = vadd.f32 %v2489, %v2841
    %v2843 = vpop.f32.mrb[0].mxu0
    %2844 = vmatprep.mubr.bf16.mxu0 %v2005
    %2845 = vmatmul.mubr.bf16.gmra.mrb[0].mxu0 %v2004
    %v2846 = vpop.f32.mrb[0].mxu0
    %v2847 = vadd.f32 %v2494, %v2846
    %v2848 = vpop.f32.mrb[0].mxu0
    %v2849 = vpop.f32.mrb[0].mxu0
    %v2850 = vadd.f32 %v2497, %v2849
    %v2851 = vpop.f32.mrb[0].mxu0
    %2852 = vmatprep.mubr.bf16.mxu0 %v2010
    %2853 = vmatmul.mubr.bf16.gmra.mrb[0].mxu0 %v2009
    %v2854 = vpop.f32.mrb[0].mxu0
    %v2855 = vadd.f32 %v2502, %v2854
    %v2856 = vpop.f32.mrb[0].mxu0
    %v2857 = vpop.f32.mrb[0].mxu0
    %v2858 = vadd.f32 %v2505, %v2857
    %v2859 = vpop.f32.mrb[0].mxu0
    %2860 = vmatprep.mubr.bf16.mxu0 %v2015
    %2861 = vmatmul.mubr.bf16.gmra.mrb[0].mxu0 %v2014
    %v2862 = vpop.f32.mrb[0].mxu0
    %v2863 = vadd.f32 %v2510, %v2862
    %v2864 = vpop.f32.mrb[0].mxu0
    %v2865 = vpop.f32.mrb[0].mxu0
    %v2866 = vadd.f32 %v2513, %v2865
    %v2867 = vpop.f32.mrb[0].mxu0
    %2868 = vmatprep.mubr.bf16.mxu0 %v2020
    %2869 = vmatmul.mubr.bf16.gmra.mrb[0].mxu0 %v2019
    %v2870 = vpop.f32.mrb[0].mxu0
    %v2871 = vadd.f32 %v2518, %v2870
    %v2872 = vpop.f32.mrb[0].mxu0
    %v2873 = vpop.f32.mrb[0].mxu0
    %v2874 = vadd.f32 %v2521, %v2873
    %v2875 = vpop.f32.mrb[0].mxu0
    %2876 = vmatprep.mubr.bf16.mxu0 %v2025
    %2877 = vmatmul.mubr.bf16.gmra.mrb[0].mxu0 %v2024
    %v2878 = vpop.f32.mrb[0].mxu0
    %v2879 = vadd.f32 %v2526, %v2878
    %v2880 = vpop.f32.mrb[0].mxu0
    %v2881 = vpop.f32.mrb[0].mxu0
    %v2882 = vadd.f32 %v2529, %v2881
    %v2883 = vpop.f32.mrb[0].mxu0
    %2884 = vmatprep.mubr.bf16.mxu0 %v2030
    %2885 = vmatmul.mubr.bf16.gmra.mrb[0].mxu0 %v2029
    %v2886 = vpop.f32.mrb[0].mxu0
    %v2887 = vadd.f32 %v2534, %v2886
    %v2888 = vpop.f32.mrb[0].mxu0
    %v2889 = vpop.f32.mrb[0].mxu0
    %v2890 = vadd.f32 %v2537, %v2889
    %v2891 = vpop.f32.mrb[0].mxu0
    %2892 = vmatprep.mubr.bf16.mxu0 %v2035
    %2893 = vmatmul.mubr.bf16.gmra.mrb[0].mxu0 %v2034
    %v2894 = vpop.f32.mrb[0].mxu0
    %v2895 = vadd.f32 %v2542, %v2894
    %v2896 = vpop.f32.mrb[0].mxu0
    %v2897 = vpop.f32.mrb[0].mxu0
    %v2898 = vadd.f32 %v2545, %v2897
    %v2899 = vpop.f32.mrb[0].mxu0
    %2900 = vmatprep.mubr.bf16.mxu0 %v2040
    %2901 = vmatmul.mubr.bf16.gmra.mrb[0].mxu0 %v2039
    %v2902 = vpop.f32.mrb[0].mxu0
    %v2903 = vadd.f32 %v2550, %v2902
    %v2904 = vpop.f32.mrb[0].mxu0
    %v2905 = vpop.f32.mrb[0].mxu0
    %v2906 = vadd.f32 %v2553, %v2905
    %v2907 = vpop.f32.mrb[0].mxu0
    %2908 = vmatprep.mubr.bf16.mxu0 %v2045
    %2909 = vmatmul.mubr.bf16.gmra.mrb[0].mxu0 %v2044
    %v2910 = vpop.f32.mrb[0].mxu0
    %v2911 = vadd.f32 %v2558, %v2910
    %v2912 = vpop.f32.mrb[0].mxu0
    %v2913 = vpop.f32.mrb[0].mxu0
    %v2914 = vadd.f32 %v2561, %v2913
    %v2915 = vpop.f32.mrb[0].mxu0
    %2916 = vmatprep.mubr.bf16.mxu0 %v2050
    %2917 = vmatmul.mubr.bf16.gmra.mrb[0].mxu0 %v2049
    %v2918 = vpop.f32.mrb[0].mxu0
    %v2919 = vadd.f32 %v2566, %v2918
    %v2920 = vpop.f32.mrb[0].mxu0
    %v2921 = vpop.f32.mrb[0].mxu0
    %v2922 = vadd.f32 %v2569, %v2921
    %v2923 = vpop.f32.mrb[0].mxu0
    %2924 = vmatprep.mubr.bf16.mxu0 %v2055
    %2925 = vmatmul.mubr.bf16.gmra.mrb[0].mxu0 %v2054
    %v2926 = vpop.f32.mrb[0].mxu0
    %v2927 = vadd.f32 %v2574, %v2926
    %v2928 = vpop.f32.mrb[0].mxu0
    %v2929 = vpop.f32.mrb[0].mxu0
    %v2930 = vadd.f32 %v2577, %v2929
    %v2931 = vpop.f32.mrb[0].mxu0
    %2932 = vmatprep.mubr.bf16.mxu0 %v2060
    %2933 = vmatmul.mubr.bf16.gmra.mrb[0].mxu0 %v2059
    %v2934 = vpop.f32.mrb[0].mxu0
    %v2935 = vadd.f32 %v2582, %v2934
    %v2936 = vpop.f32.mrb[0].mxu0
    %v2937 = vpop.f32.mrb[0].mxu0
    %v2938 = vadd.f32 %v2585, %v2937
    %v2939 = vpop.f32.mrb[0].mxu0
    %2940 = vmatprep.mubr.bf16.mxu0 %v2065
    %2941 = vmatmul.mubr.bf16.gmra.mrb[0].mxu0 %v2064
    %v2942 = vpop.f32.mrb[0].mxu0
    %v2943 = vadd.f32 %v2590, %v2942
    %v2944 = vpop.f32.mrb[0].mxu0
    %v2945 = vpop.f32.mrb[0].mxu0
    %v2946 = vadd.f32 %v2593, %v2945
    %v2947 = vpop.f32.mrb[0].mxu0
    %2948 = vmatprep.mubr.bf16.mxu0 %v2070
    %2949 = vmatmul.mubr.bf16.gmra.mrb[0].mxu0 %v2069
    %v2950 = vpop.f32.mrb[0].mxu0
    %v2951 = vadd.f32 %v2598, %v2950
    %v2952 = vpop.f32.mrb[0].mxu0
    %v2953 = vpop.f32.mrb[0].mxu0
    %v2954 = vadd.f32 %v2601, %v2953
    %v2955 = vpop.f32.mrb[0].mxu0
    %2956 = vmatprep.mubr.bf16.mxu0 %v2075
    %2957 = vmatmul.mubr.bf16.gmra.mrb[0].mxu0 %v2074
    %v2958 = vpop.f32.mrb[0].mxu0
    %v2959 = vadd.f32 %v2606, %v2958
    %v2960 = vpop.f32.mrb[0].mxu0
    %v2961 = vpop.f32.mrb[0].mxu0
    %v2962 = vadd.f32 %v2609, %v2961
    %v2963 = vpop.f32.mrb[0].mxu0
    %2964 = vmatprep.mubr.bf16.mxu0 %v2080
    %2965 = vmatmul.mubr.bf16.gmra.mrb[0].mxu0 %v2079
    %v2966 = vpop.f32.mrb[0].mxu0
    %v2967 = vadd.f32 %v2614, %v2966
    %v2968 = vpop.f32.mrb[0].mxu0
    %v2969 = vpop.f32.mrb[0].mxu0
    %v2970 = vadd.f32 %v2617, %v2969
    %v2971 = vpop.f32.mrb[0].mxu0
    %2972 = vmatprep.mubr.bf16.mxu0 %v2085
    %2973 = vmatmul.mubr.bf16.gmra.mrb[0].mxu0 %v2084
    %v2974 = vpop.f32.mrb[0].mxu0
    %v2975 = vadd.f32 %v2622, %v2974
    %v2976 = vpop.f32.mrb[0].mxu0
    %v2977 = vpop.f32.mrb[0].mxu0
    %v2978 = vadd.f32 %v2625, %v2977
    %v2979 = vpop.f32.mrb[0].mxu0
    %2980 = vmatprep.mubr.bf16.mxu0 %v2090
    %2981 = vmatmul.mubr.bf16.gmra.mrb[0].mxu0 %v2089
    %v2982 = vpop.f32.mrb[0].mxu0
    %v2983 = vadd.f32 %v2630, %v2982
    %v2984 = vpop.f32.mrb[0].mxu0
    %v2985 = vpop.f32.mrb[0].mxu0
    %v2986 = vadd.f32 %v2633, %v2985
    %v2987 = vpop.f32.mrb[0].mxu0
    %2988 = vmatprep.mubr.bf16.mxu0 %v2095
    %2989 = vmatmul.mubr.bf16.gmra.mrb[0].mxu0 %v2094
    %v2990 = vpop.f32.mrb[0].mxu0
    %v2991 = vadd.f32 %v2638, %v2990
    %v2992 = vpop.f32.mrb[0].mxu0
    %v2993 = vpop.f32.mrb[0].mxu0
    %v2994 = vadd.f32 %v2641, %v2993
    %v2995 = vpop.f32.mrb[0].mxu0
    %2996 = vmatprep.mubr.bf16.mxu0 %v2100
    %2997 = vmatmul.mubr.bf16.gmra.mrb[0].mxu0 %v2099
    %v2998 = vpop.f32.mrb[0].mxu0
    %v2999 = vadd.f32 %v2646, %v2998
    %v3000 = vpop.f32.mrb[0].mxu0
    %v3001 = vpop.f32.mrb[0].mxu0
    %v3002 = vadd.f32 %v2649, %v3001
    %v3003 = vpop.f32.mrb[0].mxu0
    %3004 = vmatprep.mubr.bf16.mxu0 %v2105
    %3005 = vmatmul.mubr.bf16.gmra.mrb[0].mxu0 %v2104
    %v3006 = vpop.f32.mrb[0].mxu0
    %v3007 = vadd.f32 %v2654, %v3006
    %v3008 = vpop.f32.mrb[0].mxu0
    %v3009 = vpop.f32.mrb[0].mxu0
    %v3010 = vadd.f32 %v2657, %v3009
    %v3011 = vpop.f32.mrb[0].mxu0
    %3012 = vdwg.mxu0
    %3013 = vmatprep.subr.bf16.mxu0 0
    %3014 = vmatpush1.bf16.msra.mxu0 %v1259
    %3015 = vmatprep.subr.bf16.mxu0 0
    %3016 = vmatpush1.bf16.msra.mxu0 %v1260
    %3017 = vmatprep.subr.bf16.mxu0 0
    %3018 = vmatpush1.bf16.msra.mxu0 %v1261
    %3019 = vmatprep.subr.bf16.mxu0 0
    %3020 = vmatpush1.bf16.msra.mxu0 %v1262
    %3021 = vmatprep.subr.bf16.mxu0 0
    %3022 = vmatpush1.bf16.msra.mxu0 %v1263
    %3023 = vmatprep.subr.bf16.mxu0 0
    %3024 = vmatpush1.bf16.msra.mxu0 %v1264
    %3025 = vmatprep.subr.bf16.mxu0 0
    %3026 = vmatpush1.bf16.msra.mxu0 %v1265
    %3027 = vmatprep.subr.bf16.mxu0 0
    %3028 = vmatpush1.bf16.msra.mxu0 %v1266
    %3029 = vmatprep.subr.bf16.mxu0 0
    %3030 = vmatpush1.bf16.msra.mxu0 0
    %3031 = vmatprep.subr.bf16.mxu0 0
    %3032 = vmatpush1.bf16.msra.mxu0 0
    %3033 = vmatprep.subr.bf16.mxu0 0
    %3034 = vmatpush1.bf16.msra.mxu0 0
    %3035 = vmatprep.subr.bf16.mxu0 0
    %3036 = vmatpush1.bf16.msra.mxu0 0
    %3037 = vmatprep.subr.bf16.mxu0 0
    %3038 = vmatpush1.bf16.msra.mxu0 0
    %3039 = vmatprep.subr.bf16.mxu0 0
    %3040 = vmatpush1.bf16.msra.mxu0 0
    %3041 = vmatprep.subr.bf16.mxu0 0
    %3042 = vmatpush1.bf16.msra.mxu0 0
    %3043 = vmatprep.subr.bf16.mxu0 0
    %3044 = vmatpush1.bf16.msra.mxu0 0
    %3045 = vmatprep.mubr.bf16.mxu0 0
    %3046 = vmatmul.mubr.bf16.gmra.mrb[0].mxu0 %v1911
    %v3047 = vpop.f32.mrb[0].mxu0
    %v3048 = vadd.f32 %v2695, %v3047
    %v3049 = vpop.f32.mrb[0].mxu0
    %v3050 = vpop.f32.mrb[0].mxu0
    %v3051 = vadd.f32 %v2698, %v3050
    %v3052 = vpop.f32.mrb[0].mxu0
    %3053 = vmatprep.mubr.bf16.mxu0 0
    %3054 = vmatmul.mubr.bf16.gmra.mrb[0].mxu0 %v1916
    %v3055 = vpop.f32.mrb[0].mxu0
    %v3056 = vadd.f32 %v2703, %v3055
    %v3057 = vpop.f32.mrb[0].mxu0
    %v3058 = vpop.f32.mrb[0].mxu0
    %v3059 = vadd.f32 %v2706, %v3058
    %v3060 = vpop.f32.mrb[0].mxu0
    %3061 = vmatprep.mubr.bf16.mxu0 0
    %3062 = vmatmul.mubr.bf16.gmra.mrb[0].mxu0 %v1921
    %v3063 = vpop.f32.mrb[0].mxu0
    %v3064 = vadd.f32 %v2711, %v3063
    %v3065 = vpop.f32.mrb[0].mxu0
    %v3066 = vpop.f32.mrb[0].mxu0
    %v3067 = vadd.f32 %v2714, %v3066
    %v3068 = vpop.f32.mrb[0].mxu0
    %3069 = vmatprep.mubr.bf16.mxu0 0
    %3070 = vmatmul.mubr.bf16.gmra.mrb[0].mxu0 %v1926
    %v3071 = vpop.f32.mrb[0].mxu0
    %v3072 = vadd.f32 %v2719, %v3071
    %v3073 = vpop.f32.mrb[0].mxu0
    %v3074 = vpop.f32.mrb[0].mxu0
    %v3075 = vadd.f32 %v2722, %v3074
    %v3076 = vpop.f32.mrb[0].mxu0
    %3077 = vmatprep.mubr.bf16.mxu0 0
    %3078 = vmatmul.mubr.bf16.gmra.mrb[0].mxu0 %v1931
    %v3079 = vpop.f32.mrb[0].mxu0
    %v3080 = vadd.f32 %v2727, %v3079
    %v3081 = vpop.f32.mrb[0].mxu0
    %v3082 = vpop.f32.mrb[0].mxu0
    %v3083 = vadd.f32 %v2730, %v3082
    %v3084 = vpop.f32.mrb[0].mxu0
    %3085 = vmatprep.mubr.bf16.mxu0 0
    %3086 = vmatmul.mubr.bf16.gmra.mrb[0].mxu0 %v1936
    %v3087 = vpop.f32.mrb[0].mxu0
    %v3088 = vadd.f32 %v2735, %v3087
    %v3089 = vpop.f32.mrb[0].mxu0
    %v3090 = vpop.f32.mrb[0].mxu0
    %v3091 = vadd.f32 %v2738, %v3090
    %v3092 = vpop.f32.mrb[0].mxu0
    %3093 = vmatprep.mubr.bf16.mxu0 0
    %3094 = vmatmul.mubr.bf16.gmra.mrb[0].mxu0 %v1941
    %v3095 = vpop.f32.mrb[0].mxu0
    %v3096 = vadd.f32 %v2743, %v3095
    %v3097 = vpop.f32.mrb[0].mxu0
    %v3098 = vpop.f32.mrb[0].mxu0
    %v3099 = vadd.f32 %v2746, %v3098
    %v3100 = vpop.f32.mrb[0].mxu0
    %3101 = vmatprep.mubr.bf16.mxu0 0
    %3102 = vmatmul.mubr.bf16.gmra.mrb[0].mxu0 %v1946
    %v3103 = vpop.f32.mrb[0].mxu0
    %v3104 = vadd.f32 %v2751, %v3103
    %v3105 = vpop.f32.mrb[0].mxu0
    %v3106 = vpop.f32.mrb[0].mxu0
    %v3107 = vadd.f32 %v2754, %v3106
    %v3108 = vpop.f32.mrb[0].mxu0
    %3109 = vmatprep.mubr.bf16.mxu0 0
    %3110 = vmatmul.mubr.bf16.gmra.mrb[0].mxu0 %v1951
    %v3111 = vpop.f32.mrb[0].mxu0
    %v3112 = vadd.f32 %v2759, %v3111
    %v3113 = vpop.f32.mrb[0].mxu0
    %v3114 = vpop.f32.mrb[0].mxu0
    %v3115 = vadd.f32 %v2762, %v3114
    %v3116 = vpop.f32.mrb[0].mxu0
    %3117 = vmatprep.mubr.bf16.mxu0 0
    %3118 = vmatmul.mubr.bf16.gmra.mrb[0].mxu0 %v1956
    %v3119 = vpop.f32.mrb[0].mxu0
    %v3120 = vadd.f32 %v2767, %v3119
    %v3121 = vpop.f32.mrb[0].mxu0
    %v3122 = vpop.f32.mrb[0].mxu0
    %v3123 = vadd.f32 %v2770, %v3122
    %v3124 = vpop.f32.mrb[0].mxu0
    %3125 = vmatprep.mubr.bf16.mxu0 0
    %3126 = vmatmul.mubr.bf16.gmra.mrb[0].mxu0 %v1961
    %v3127 = vpop.f32.mrb[0].mxu0
    %v3128 = vadd.f32 %v2775, %v3127
    %v3129 = vpop.f32.mrb[0].mxu0
    %v3130 = vpop.f32.mrb[0].mxu0
    %v3131 = vadd.f32 %v2778, %v3130
    %v3132 = vpop.f32.mrb[0].mxu0
    %3133 = vmatprep.mubr.bf16.mxu0 0
    %3134 = vmatmul.mubr.bf16.gmra.mrb[0].mxu0 %v1966
    %v3135 = vpop.f32.mrb[0].mxu0
    %v3136 = vadd.f32 %v2783, %v3135
    %v3137 = vpop.f32.mrb[0].mxu0
    %v3138 = vpop.f32.mrb[0].mxu0
    %v3139 = vadd.f32 %v2786, %v3138
    %v3140 = vpop.f32.mrb[0].mxu0
    %3141 = vmatprep.mubr.bf16.mxu0 0
    %3142 = vmatmul.mubr.bf16.gmra.mrb[0].mxu0 %v1971
    %v3143 = vpop.f32.mrb[0].mxu0
    %v3144 = vadd.f32 %v2791, %v3143
    %v3145 = vpop.f32.mrb[0].mxu0
    %v3146 = vpop.f32.mrb[0].mxu0
    %v3147 = vadd.f32 %v2794, %v3146
    %v3148 = vpop.f32.mrb[0].mxu0
    %3149 = vmatprep.mubr.bf16.mxu0 0
    %3150 = vmatmul.mubr.bf16.gmra.mrb[0].mxu0 %v1976
    %v3151 = vpop.f32.mrb[0].mxu0
    %v3152 = vadd.f32 %v2799, %v3151
    %v3153 = vpop.f32.mrb[0].mxu0
    %v3154 = vpop.f32.mrb[0].mxu0
    %v3155 = vadd.f32 %v2802, %v3154
    %v3156 = vpop.f32.mrb[0].mxu0
    %3157 = vmatprep.mubr.bf16.mxu0 0
    %3158 = vmatmul.mubr.bf16.gmra.mrb[0].mxu0 %v1981
    %v3159 = vpop.f32.mrb[0].mxu0
    %v3160 = vadd.f32 %v2807, %v3159
    %v3161 = vpop.f32.mrb[0].mxu0
    %v3162 = vpop.f32.mrb[0].mxu0
    %v3163 = vadd.f32 %v2810, %v3162
    %v3164 = vpop.f32.mrb[0].mxu0
    %3165 = vmatprep.mubr.bf16.mxu0 0
    %3166 = vmatmul.mubr.bf16.gmra.mrb[0].mxu0 %v1986
    %v3167 = vpop.f32.mrb[0].mxu0
    %v3168 = vadd.f32 %v2815, %v3167
    %v3169 = vpop.f32.mrb[0].mxu0
    %v3170 = vpop.f32.mrb[0].mxu0
    %v3171 = vadd.f32 %v2818, %v3170
    %v3172 = vpop.f32.mrb[0].mxu0
    %3173 = vmatprep.mubr.bf16.mxu0 0
    %3174 = vmatmul.mubr.bf16.gmra.mrb[0].mxu0 %v1991
    %v3175 = vpop.f32.mrb[0].mxu0
    %v3176 = vadd.f32 %v2823, %v3175
    %v3177 = vpop.f32.mrb[0].mxu0
    %v3178 = vpop.f32.mrb[0].mxu0
    %v3179 = vadd.f32 %v2826, %v3178
    %v3180 = vpop.f32.mrb[0].mxu0
    %3181 = vmatprep.mubr.bf16.mxu0 0
    %3182 = vmatmul.mubr.bf16.gmra.mrb[0].mxu0 %v1996
    %v3183 = vpop.f32.mrb[0].mxu0
    %v3184 = vadd.f32 %v2831, %v3183
    %v3185 = vpop.f32.mrb[0].mxu0
    %v3186 = vpop.f32.mrb[0].mxu0
    %v3187 = vadd.f32 %v2834, %v3186
    %v3188 = vpop.f32.mrb[0].mxu0
    %3189 = vmatprep.mubr.bf16.mxu0 0
    %3190 = vmatmul.mubr.bf16.gmra.mrb[0].mxu0 %v2001
    %v3191 = vpop.f32.mrb[0].mxu0
    %v3192 = vadd.f32 %v2839, %v3191
    %v3193 = vpop.f32.mrb[0].mxu0
    %v3194 = vpop.f32.mrb[0].mxu0
    %v3195 = vadd.f32 %v2842, %v3194
    %v3196 = vpop.f32.mrb[0].mxu0
    %3197 = vmatprep.mubr.bf16.mxu0 0
    %3198 = vmatmul.mubr.bf16.gmra.mrb[0].mxu0 %v2006
    %v3199 = vpop.f32.mrb[0].mxu0
    %v3200 = vadd.f32 %v2847, %v3199
    %v3201 = vpop.f32.mrb[0].mxu0
    %v3202 = vpop.f32.mrb[0].mxu0
    %v3203 = vadd.f32 %v2850, %v3202
    %v3204 = vpop.f32.mrb[0].mxu0
    %3205 = vmatprep.mubr.bf16.mxu0 0
    %3206 = vmatmul.mubr.bf16.gmra.mrb[0].mxu0 %v2011
    %v3207 = vpop.f32.mrb[0].mxu0
    %v3208 = vadd.f32 %v2855, %v3207
    %v3209 = vpop.f32.mrb[0].mxu0
    %v3210 = vpop.f32.mrb[0].mxu0
    %v3211 = vadd.f32 %v2858, %v3210
    %v3212 = vpop.f32.mrb[0].mxu0
    %3213 = vmatprep.mubr.bf16.mxu0 0
    %3214 = vmatmul.mubr.bf16.gmra.mrb[0].mxu0 %v2016
    %v3215 = vpop.f32.mrb[0].mxu0
    %v3216 = vadd.f32 %v2863, %v3215
    %v3217 = vpop.f32.mrb[0].mxu0
    %v3218 = vpop.f32.mrb[0].mxu0
    %v3219 = vadd.f32 %v2866, %v3218
    %v3220 = vpop.f32.mrb[0].mxu0
    %3221 = vmatprep.mubr.bf16.mxu0 0
    %3222 = vmatmul.mubr.bf16.gmra.mrb[0].mxu0 %v2021
    %v3223 = vpop.f32.mrb[0].mxu0
    %v3224 = vadd.f32 %v2871, %v3223
    %v3225 = vpop.f32.mrb[0].mxu0
    %v3226 = vpop.f32.mrb[0].mxu0
    %v3227 = vadd.f32 %v2874, %v3226
    %v3228 = vpop.f32.mrb[0].mxu0
    %3229 = vmatprep.mubr.bf16.mxu0 0
    %3230 = vmatmul.mubr.bf16.gmra.mrb[0].mxu0 %v2026
    %v3231 = vpop.f32.mrb[0].mxu0
    %v3232 = vadd.f32 %v2879, %v3231
    %v3233 = vpop.f32.mrb[0].mxu0
    %v3234 = vpop.f32.mrb[0].mxu0
    %v3235 = vadd.f32 %v2882, %v3234
    %v3236 = vpop.f32.mrb[0].mxu0
    %3237 = vmatprep.mubr.bf16.mxu0 0
    %3238 = vmatmul.mubr.bf16.gmra.mrb[0].mxu0 %v2031
    %v3239 = vpop.f32.mrb[0].mxu0
    %v3240 = vadd.f32 %v2887, %v3239
    %v3241 = vpop.f32.mrb[0].mxu0
    %v3242 = vpop.f32.mrb[0].mxu0
    %v3243 = vadd.f32 %v2890, %v3242
    %v3244 = vpop.f32.mrb[0].mxu0
    %3245 = vmatprep.mubr.bf16.mxu0 0
    %3246 = vmatmul.mubr.bf16.gmra.mrb[0].mxu0 %v2036
    %v3247 = vpop.f32.mrb[0].mxu0
    %v3248 = vadd.f32 %v2895, %v3247
    %v3249 = vpop.f32.mrb[0].mxu0
    %v3250 = vpop.f32.mrb[0].mxu0
    %v3251 = vadd.f32 %v2898, %v3250
    %v3252 = vpop.f32.mrb[0].mxu0
    %3253 = vmatprep.mubr.bf16.mxu0 0
    %3254 = vmatmul.mubr.bf16.gmra.mrb[0].mxu0 %v2041
    %v3255 = vpop.f32.mrb[0].mxu0
    %v3256 = vadd.f32 %v2903, %v3255
    %v3257 = vpop.f32.mrb[0].mxu0
    %v3258 = vpop.f32.mrb[0].mxu0
    %v3259 = vadd.f32 %v2906, %v3258
    %v3260 = vpop.f32.mrb[0].mxu0
    %3261 = vmatprep.mubr.bf16.mxu0 0
    %3262 = vmatmul.mubr.bf16.gmra.mrb[0].mxu0 %v2046
    %v3263 = vpop.f32.mrb[0].mxu0
    %v3264 = vadd.f32 %v2911, %v3263
    %v3265 = vpop.f32.mrb[0].mxu0
    %v3266 = vpop.f32.mrb[0].mxu0
    %v3267 = vadd.f32 %v2914, %v3266
    %v3268 = vpop.f32.mrb[0].mxu0
    %3269 = vmatprep.mubr.bf16.mxu0 0
    %3270 = vmatmul.mubr.bf16.gmra.mrb[0].mxu0 %v2051
    %v3271 = vpop.f32.mrb[0].mxu0
    %v3272 = vadd.f32 %v2919, %v3271
    %v3273 = vpop.f32.mrb[0].mxu0
    %v3274 = vpop.f32.mrb[0].mxu0
    %v3275 = vadd.f32 %v2922, %v3274
    %v3276 = vpop.f32.mrb[0].mxu0
    %3277 = vmatprep.mubr.bf16.mxu0 0
    %3278 = vmatmul.mubr.bf16.gmra.mrb[0].mxu0 %v2056
    %v3279 = vpop.f32.mrb[0].mxu0
    %v3280 = vadd.f32 %v2927, %v3279
    %v3281 = vpop.f32.mrb[0].mxu0
    %v3282 = vpop.f32.mrb[0].mxu0
    %v3283 = vadd.f32 %v2930, %v3282
    %v3284 = vpop.f32.mrb[0].mxu0
    %3285 = vmatprep.mubr.bf16.mxu0 0
    %3286 = vmatmul.mubr.bf16.gmra.mrb[0].mxu0 %v2061
    %v3287 = vpop.f32.mrb[0].mxu0
    %v3288 = vadd.f32 %v2935, %v3287
    %v3289 = vpop.f32.mrb[0].mxu0
    %v3290 = vpop.f32.mrb[0].mxu0
    %v3291 = vadd.f32 %v2938, %v3290
    %v3292 = vpop.f32.mrb[0].mxu0
    %3293 = vmatprep.mubr.bf16.mxu0 0
    %3294 = vmatmul.mubr.bf16.gmra.mrb[0].mxu0 %v2066
    %v3295 = vpop.f32.mrb[0].mxu0
    %v3296 = vadd.f32 %v2943, %v3295
    %v3297 = vpop.f32.mrb[0].mxu0
    %v3298 = vpop.f32.mrb[0].mxu0
    %v3299 = vadd.f32 %v2946, %v3298
    %v3300 = vpop.f32.mrb[0].mxu0
    %3301 = vmatprep.mubr.bf16.mxu0 0
    %3302 = vmatmul.mubr.bf16.gmra.mrb[0].mxu0 %v2071
    %v3303 = vpop.f32.mrb[0].mxu0
    %v3304 = vadd.f32 %v2951, %v3303
    %v3305 = vpop.f32.mrb[0].mxu0
    %v3306 = vpop.f32.mrb[0].mxu0
    %v3307 = vadd.f32 %v2954, %v3306
    %v3308 = vpop.f32.mrb[0].mxu0
    %3309 = vmatprep.mubr.bf16.mxu0 0
    %3310 = vmatmul.mubr.bf16.gmra.mrb[0].mxu0 %v2076
    %v3311 = vpop.f32.mrb[0].mxu0
    %v3312 = vadd.f32 %v2959, %v3311
    %v3313 = vpop.f32.mrb[0].mxu0
    %v3314 = vpop.f32.mrb[0].mxu0
    %v3315 = vadd.f32 %v2962, %v3314
    %v3316 = vpop.f32.mrb[0].mxu0
    %3317 = vmatprep.mubr.bf16.mxu0 0
    %3318 = vmatmul.mubr.bf16.gmra.mrb[0].mxu0 %v2081
    %v3319 = vpop.f32.mrb[0].mxu0
    %v3320 = vadd.f32 %v2967, %v3319
    %v3321 = vpop.f32.mrb[0].mxu0
    %v3322 = vpop.f32.mrb[0].mxu0
    %v3323 = vadd.f32 %v2970, %v3322
    %v3324 = vpop.f32.mrb[0].mxu0
    %3325 = vmatprep.mubr.bf16.mxu0 0
    %3326 = vmatmul.mubr.bf16.gmra.mrb[0].mxu0 %v2086
    %v3327 = vpop.f32.mrb[0].mxu0
    %v3328 = vadd.f32 %v2975, %v3327
    %v3329 = vpop.f32.mrb[0].mxu0
    %v3330 = vpop.f32.mrb[0].mxu0
    %v3331 = vadd.f32 %v2978, %v3330
    %v3332 = vpop.f32.mrb[0].mxu0
    %3333 = vmatprep.mubr.bf16.mxu0 0
    %3334 = vmatmul.mubr.bf16.gmra.mrb[0].mxu0 %v2091
    %v3335 = vpop.f32.mrb[0].mxu0
    %v3336 = vadd.f32 %v2983, %v3335
    %v3337 = vpop.f32.mrb[0].mxu0
    %v3338 = vpop.f32.mrb[0].mxu0
    %v3339 = vadd.f32 %v2986, %v3338
    %v3340 = vpop.f32.mrb[0].mxu0
    %3341 = vmatprep.mubr.bf16.mxu0 0
    %3342 = vmatmul.mubr.bf16.gmra.mrb[0].mxu0 %v2096
    %v3343 = vpop.f32.mrb[0].mxu0
    %v3344 = vadd.f32 %v2991, %v3343
    %v3345 = vpop.f32.mrb[0].mxu0
    %v3346 = vpop.f32.mrb[0].mxu0
    %v3347 = vadd.f32 %v2994, %v3346
    %v3348 = vpop.f32.mrb[0].mxu0
    %3349 = vmatprep.mubr.bf16.mxu0 0
    %3350 = vmatmul.mubr.bf16.gmra.mrb[0].mxu0 %v2101
    %v3351 = vpop.f32.mrb[0].mxu0
    %v3352 = vadd.f32 %v2999, %v3351
    %v3353 = vpop.f32.mrb[0].mxu0
    %v3354 = vpop.f32.mrb[0].mxu0
    %v3355 = vadd.f32 %v3002, %v3354
    %v3356 = vpop.f32.mrb[0].mxu0
    %3357 = vmatprep.mubr.bf16.mxu0 0
    %3358 = vmatmul.mubr.bf16.gmra.mrb[0].mxu0 %v2106
    %v3359 = vpop.f32.mrb[0].mxu0
    %v3360 = vadd.f32 %v3007, %v3359
    %v3361 = vpop.f32.mrb[0].mxu0
    %v3362 = vpop.f32.mrb[0].mxu0
    %v3363 = vadd.f32 %v3010, %v3362
    %v3364 = vpop.f32.mrb[0].mxu0
    %3365 = vdwg.mxu0
    %v3366 = vadd.f32 %v907, %v3048
    %v3367 = vadd.f32 %v908, %v3051
    %v3368 = vadd.f32 %v909, %v3056
    %v3369 = vadd.f32 %v910, %v3059
    %v3370 = vadd.f32 %v911, %v3064
    %v3371 = vadd.f32 %v912, %v3067
    %v3372 = vadd.f32 %v913, %v3072
    %v3373 = vadd.f32 %v914, %v3075
    %v3374 = vadd.f32 %v915, %v3080
    %v3375 = vadd.f32 %v916, %v3083
    %v3376 = vadd.f32 %v917, %v3088
    %v3377 = vadd.f32 %v918, %v3091
    %v3378 = vadd.f32 %v919, %v3096
    %v3379 = vadd.f32 %v920, %v3099
    %v3380 = vadd.f32 %v921, %v3104
    %v3381 = vadd.f32 %v922, %v3107
    %v3382 = vadd.f32 %v923, %v3112
    %v3383 = vadd.f32 %v924, %v3115
    %v3384 = vadd.f32 %v925, %v3120
    %v3385 = vadd.f32 %v926, %v3123
    %v3386 = vadd.f32 %v927, %v3128
    %v3387 = vadd.f32 %v928, %v3131
    %v3388 = vadd.f32 %v929, %v3136
    %v3389 = vadd.f32 %v930, %v3139
    %v3390 = vadd.f32 %v931, %v3144
    %v3391 = vadd.f32 %v932, %v3147
    %v3392 = vadd.f32 %v933, %v3152
    %v3393 = vadd.f32 %v934, %v3155
    %v3394 = vadd.f32 %v935, %v3160
    %v3395 = vadd.f32 %v936, %v3163
    %v3396 = vadd.f32 %v937, %v3168
    %v3397 = vadd.f32 %v938, %v3171
    %v3398 = vadd.f32 %v939, %v3176
    %v3399 = vadd.f32 %v940, %v3179
    %v3400 = vadd.f32 %v941, %v3184
    %v3401 = vadd.f32 %v942, %v3187
    %v3402 = vadd.f32 %v943, %v3192
    %v3403 = vadd.f32 %v944, %v3195
    %v3404 = vadd.f32 %v945, %v3200
    %v3405 = vadd.f32 %v946, %v3203
    %v3406 = vadd.f32 %v947, %v3208
    %v3407 = vadd.f32 %v948, %v3211
    %v3408 = vadd.f32 %v949, %v3216
    %v3409 = vadd.f32 %v950, %v3219
    %v3410 = vadd.f32 %v951, %v3224
    %v3411 = vadd.f32 %v952, %v3227
    %v3412 = vadd.f32 %v953, %v3232
    %v3413 = vadd.f32 %v954, %v3235
    %v3414 = vadd.f32 %v955, %v3240
    %v3415 = vadd.f32 %v956, %v3243
    %v3416 = vadd.f32 %v957, %v3248
    %v3417 = vadd.f32 %v958, %v3251
    %v3418 = vadd.f32 %v959, %v3256
    %v3419 = vadd.f32 %v960, %v3259
    %v3420 = vadd.f32 %v961, %v3264
    %v3421 = vadd.f32 %v962, %v3267
    %v3422 = vadd.f32 %v963, %v3272
    %v3423 = vadd.f32 %v964, %v3275
    %v3424 = vadd.f32 %v965, %v3280
    %v3425 = vadd.f32 %v966, %v3283
    %v3426 = vadd.f32 %v967, %v3288
    %v3427 = vadd.f32 %v968, %v3291
    %v3428 = vadd.f32 %v969, %v3296
    %v3429 = vadd.f32 %v970, %v3299
    %v3430 = vadd.f32 %v971, %v3304
    %v3431 = vadd.f32 %v972, %v3307
    %v3432 = vadd.f32 %v973, %v3312
    %v3433 = vadd.f32 %v974, %v3315
    %v3434 = vadd.f32 %v975, %v3320
    %v3435 = vadd.f32 %v976, %v3323
    %v3436 = vadd.f32 %v977, %v3328
    %v3437 = vadd.f32 %v978, %v3331
    %v3438 = vadd.f32 %v979, %v3336
    %v3439 = vadd.f32 %v980, %v3339
    %v3440 = vadd.f32 %v981, %v3344
    %v3441 = vadd.f32 %v982, %v3347
    %v3442 = vadd.f32 %v983, %v3352
    %v3443 = vadd.f32 %v984, %v3355
    %v3444 = vadd.f32 %v985, %v3360
    %v3445 = vadd.f32 %v986, %v3363
    %3446 = vst [vmem:[#allocation2] sm:$0xff] %v3366
    %3447 = vst [vmem:[#allocation2 + $0x8] sm:$0xff] %v3367
    %3448 = vst [vmem:[#allocation2 + $0x10] sm:$0xff] %v3368
    %3449 = vst [vmem:[#allocation2 + $0x18] sm:$0xff] %v3369
    %3450 = vst [vmem:[#allocation2 + $0x20] sm:$0xff] %v3370
    %3451 = vst [vmem:[#allocation2 + $0x28] sm:$0xff] %v3371
    %3452 = vst [vmem:[#allocation2 + $0x30] sm:$0xff] %v3372
    %3453 = vst [vmem:[#allocation2 + $0x38] sm:$0xff] %v3373
    %3454 = vst [vmem:[#allocation2 + $0x40] sm:$0xff] %v3374
    %3455 = vst [vmem:[#allocation2 + $0x48] sm:$0xff] %v3375
    %3456 = vst [vmem:[#allocation2 + $0x50] sm:$0xff] %v3376
    %3457 = vst [vmem:[#allocation2 + $0x58] sm:$0xff] %v3377
    %3458 = vst [vmem:[#allocation2 + $0x60] sm:$0xff] %v3378
    %3459 = vst [vmem:[#allocation2 + $0x68] sm:$0xff] %v3379
    %3460 = vst [vmem:[#allocation2 + $0x70] sm:$0xff] %v3380
    %3461 = vst [vmem:[#allocation2 + $0x78] sm:$0xff] %v3381
    %3462 = vst [vmem:[#allocation2 + $0x80] sm:$0xff] %v3382
    %3463 = vst [vmem:[#allocation2 + $0x88] sm:$0xff] %v3383
    %3464 = vst [vmem:[#allocation2 + $0x90] sm:$0xff] %v3384
    %3465 = vst [vmem:[#allocation2 + $0x98] sm:$0xff] %v3385
    %3466 = vst [vmem:[#allocation2 + $0xa0] sm:$0xff] %v3386
    %3467 = vst [vmem:[#allocation2 + $0xa8] sm:$0xff] %v3387
    %3468 = vst [vmem:[#allocation2 + $0xb0] sm:$0xff] %v3388
    %3469 = vst [vmem:[#allocation2 + $0xb8] sm:$0xff] %v3389
    %3470 = vst [vmem:[#allocation2 + $0xc0] sm:$0xff] %v3390
    %3471 = vst [vmem:[#allocation2 + $0xc8] sm:$0xff] %v3391
    %3472 = vst [vmem:[#allocation2 + $0xd0] sm:$0xff] %v3392
    %3473 = vst [vmem:[#allocation2 + $0xd8] sm:$0xff] %v3393
    %3474 = vst [vmem:[#allocation2 + $0xe0] sm:$0xff] %v3394
    %3475 = vst [vmem:[#allocation2 + $0xe8] sm:$0xff] %v3395
    %3476 = vst [vmem:[#allocation2 + $0xf0] sm:$0xff] %v3396
    %3477 = vst [vmem:[#allocation2 + $0xf8] sm:$0xff] %v3397
    %3478 = vst [vmem:[#allocation2 + $0x100] sm:$0xff] %v3398
    %3479 = vst [vmem:[#allocation2 + $0x108] sm:$0xff] %v3399
    %3480 = vst [vmem:[#allocation2 + $0x110] sm:$0xff] %v3400
    %3481 = vst [vmem:[#allocation2 + $0x118] sm:$0xff] %v3401
    %3482 = vst [vmem:[#allocation2 + $0x120] sm:$0xff] %v3402
    %3483 = vst [vmem:[#allocation2 + $0x128] sm:$0xff] %v3403
    %3484 = vst [vmem:[#allocation2 + $0x130] sm:$0xff] %v3404
    %3485 = vst [vmem:[#allocation2 + $0x138] sm:$0xff] %v3405
    %3486 = vst [vmem:[#allocation2 + $0x140] sm:$0xff] %v3406
    %3487 = vst [vmem:[#allocation2 + $0x148] sm:$0xff] %v3407
    %3488 = vst [vmem:[#allocation2 + $0x150] sm:$0xff] %v3408
    %3489 = vst [vmem:[#allocation2 + $0x158] sm:$0xff] %v3409
    %3490 = vst [vmem:[#allocation2 + $0x160] sm:$0xff] %v3410
    %3491 = vst [vmem:[#allocation2 + $0x168] sm:$0xff] %v3411
    %3492 = vst [vmem:[#allocation2 + $0x170] sm:$0xff] %v3412
    %3493 = vst [vmem:[#allocation2 + $0x178] sm:$0xff] %v3413
    %3494 = vst [vmem:[#allocation2 + $0x180] sm:$0xff] %v3414
    %3495 = vst [vmem:[#allocation2 + $0x188] sm:$0xff] %v3415
    %3496 = vst [vmem:[#allocation2 + $0x190] sm:$0xff] %v3416
    %3497 = vst [vmem:[#allocation2 + $0x198] sm:$0xff] %v3417
    %3498 = vst [vmem:[#allocation2 + $0x1a0] sm:$0xff] %v3418
    %3499 = vst [vmem:[#allocation2 + $0x1a8] sm:$0xff] %v3419
    %3500 = vst [vmem:[#allocation2 + $0x1b0] sm:$0xff] %v3420
    %3501 = vst [vmem:[#allocation2 + $0x1b8] sm:$0xff] %v3421
    %3502 = vst [vmem:[#allocation2 + $0x1c0] sm:$0xff] %v3422
    %3503 = vst [vmem:[#allocation2 + $0x1c8] sm:$0xff] %v3423
    %3504 = vst [vmem:[#allocation2 + $0x1d0] sm:$0xff] %v3424
    %3505 = vst [vmem:[#allocation2 + $0x1d8] sm:$0xff] %v3425
    %3506 = vst [vmem:[#allocation2 + $0x1e0] sm:$0xff] %v3426
    %3507 = vst [vmem:[#allocation2 + $0x1e8] sm:$0xff] %v3427
    %3508 = vst [vmem:[#allocation2 + $0x1f0] sm:$0xff] %v3428
    %3509 = vst [vmem:[#allocation2 + $0x1f8] sm:$0xff] %v3429
    %3510 = vst [vmem:[#allocation2 + $0x200] sm:$0xff] %v3430
    %3511 = vst [vmem:[#allocation2 + $0x208] sm:$0xff] %v3431
    %3512 = vst [vmem:[#allocation2 + $0x210] sm:$0xff] %v3432
    %3513 = vst [vmem:[#allocation2 + $0x218] sm:$0xff] %v3433
    %3514 = vst [vmem:[#allocation2 + $0x220] sm:$0xff] %v3434
    %3515 = vst [vmem:[#allocation2 + $0x228] sm:$0xff] %v3435
    %3516 = vst [vmem:[#allocation2 + $0x230] sm:$0xff] %v3436
    %3517 = vst [vmem:[#allocation2 + $0x238] sm:$0xff] %v3437
    %3518 = vst [vmem:[#allocation2 + $0x240] sm:$0xff] %v3438
    %3519 = vst [vmem:[#allocation2 + $0x248] sm:$0xff] %v3439
    %3520 = vst [vmem:[#allocation2 + $0x250] sm:$0xff] %v3440
    %3521 = vst [vmem:[#allocation2 + $0x258] sm:$0xff] %v3441
    %3522 = vst [vmem:[#allocation2 + $0x260] sm:$0xff] %v3442
    %3523 = vst [vmem:[#allocation2 + $0x268] sm:$0xff] %v3443
    %3524 = vst [vmem:[#allocation2 + $0x270] sm:$0xff] %v3444
    %3525 = vst [vmem:[#allocation2 + $0x278] sm:$0xff] %v3445
    // Predicated region
    $region30: #{tpu_custom_call.1} parent=1 // pred_check
      %p3526 = pneg %p36
    $region31: #{tpu_custom_call.1} parent=1 // pred_check_branch
      %3528 = sbr.rel (%p3526) target = $region33
    $region32: #{tpu_custom_call.1} parent=1 // pred_region
      %v3529 = vld [vmem:[#allocation2] sm:$0xff]
      %v3530 = vld [vmem:[#allocation2 + $0x8] sm:$0xff]
      %v3531 = vld [vmem:[#allocation2 + $0x10] sm:$0xff]
      %v3532 = vld [vmem:[#allocation2 + $0x18] sm:$0xff]
      %v3533 = vld [vmem:[#allocation2 + $0x20] sm:$0xff]
      %v3534 = vld [vmem:[#allocation2 + $0x28] sm:$0xff]
      %v3535 = vld [vmem:[#allocation2 + $0x30] sm:$0xff]
      %v3536 = vld [vmem:[#allocation2 + $0x38] sm:$0xff]
      %v3537 = vld [vmem:[#allocation2 + $0x40] sm:$0xff]
      %v3538 = vld [vmem:[#allocation2 + $0x48] sm:$0xff]
      %v3539 = vld [vmem:[#allocation2 + $0x50] sm:$0xff]
      %v3540 = vld [vmem:[#allocation2 + $0x58] sm:$0xff]
      %v3541 = vld [vmem:[#allocation2 + $0x60] sm:$0xff]
      %v3542 = vld [vmem:[#allocation2 + $0x68] sm:$0xff]
      %v3543 = vld [vmem:[#allocation2 + $0x70] sm:$0xff]
      %v3544 = vld [vmem:[#allocation2 + $0x78] sm:$0xff]
      %v3545 = vld [vmem:[#allocation2 + $0x80] sm:$0xff]
      %v3546 = vld [vmem:[#allocation2 + $0x88] sm:$0xff]
      %v3547 = vld [vmem:[#allocation2 + $0x90] sm:$0xff]
      %v3548 = vld [vmem:[#allocation2 + $0x98] sm:$0xff]
      %v3549 = vld [vmem:[#allocation2 + $0xa0] sm:$0xff]
      %v3550 = vld [vmem:[#allocation2 + $0xa8] sm:$0xff]
      %v3551 = vld [vmem:[#allocation2 + $0xb0] sm:$0xff]
      %v3552 = vld [vmem:[#allocation2 + $0xb8] sm:$0xff]
      %v3553 = vld [vmem:[#allocation2 + $0xc0] sm:$0xff]
      %v3554 = vld [vmem:[#allocation2 + $0xc8] sm:$0xff]
      %v3555 = vld [vmem:[#allocation2 + $0xd0] sm:$0xff]
      %v3556 = vld [vmem:[#allocation2 + $0xd8] sm:$0xff]
      %v3557 = vld [vmem:[#allocation2 + $0xe0] sm:$0xff]
      %v3558 = vld [vmem:[#allocation2 + $0xe8] sm:$0xff]
      %v3559 = vld [vmem:[#allocation2 + $0xf0] sm:$0xff]
      %v3560 = vld [vmem:[#allocation2 + $0xf8] sm:$0xff]
      %v3561 = vld [vmem:[#allocation2 + $0x100] sm:$0xff]
      %v3562 = vld [vmem:[#allocation2 + $0x108] sm:$0xff]
      %v3563 = vld [vmem:[#allocation2 + $0x110] sm:$0xff]
      %v3564 = vld [vmem:[#allocation2 + $0x118] sm:$0xff]
      %v3565 = vld [vmem:[#allocation2 + $0x120] sm:$0xff]
      %v3566 = vld [vmem:[#allocation2 + $0x128] sm:$0xff]
      %v3567 = vld [vmem:[#allocation2 + $0x130] sm:$0xff]
      %v3568 = vld [vmem:[#allocation2 + $0x138] sm:$0xff]
      %v3569 = vld [vmem:[#allocation2 + $0x140] sm:$0xff]
      %v3570 = vld [vmem:[#allocation2 + $0x148] sm:$0xff]
      %v3571 = vld [vmem:[#allocation2 + $0x150] sm:$0xff]
      %v3572 = vld [vmem:[#allocation2 + $0x158] sm:$0xff]
      %v3573 = vld [vmem:[#allocation2 + $0x160] sm:$0xff]
      %v3574 = vld [vmem:[#allocation2 + $0x168] sm:$0xff]
      %v3575 = vld [vmem:[#allocation2 + $0x170] sm:$0xff]
      %v3576 = vld [vmem:[#allocation2 + $0x178] sm:$0xff]
      %v3577 = vld [vmem:[#allocation2 + $0x180] sm:$0xff]
      %v3578 = vld [vmem:[#allocation2 + $0x188] sm:$0xff]
      %v3579 = vld [vmem:[#allocation2 + $0x190] sm:$0xff]
      %v3580 = vld [vmem:[#allocation2 + $0x198] sm:$0xff]
      %v3581 = vld [vmem:[#allocation2 + $0x1a0] sm:$0xff]
      %v3582 = vld [vmem:[#allocation2 + $0x1a8] sm:$0xff]
      %v3583 = vld [vmem:[#allocation2 + $0x1b0] sm:$0xff]
      %v3584 = vld [vmem:[#allocation2 + $0x1b8] sm:$0xff]
      %v3585 = vld [vmem:[#allocation2 + $0x1c0] sm:$0xff]
      %v3586 = vld [vmem:[#allocation2 + $0x1c8] sm:$0xff]
      %v3587 = vld [vmem:[#allocation2 + $0x1d0] sm:$0xff]
      %v3588 = vld [vmem:[#allocation2 + $0x1d8] sm:$0xff]
      %v3589 = vld [vmem:[#allocation2 + $0x1e0] sm:$0xff]
      %v3590 = vld [vmem:[#allocation2 + $0x1e8] sm:$0xff]
      %v3591 = vld [vmem:[#allocation2 + $0x1f0] sm:$0xff]
      %v3592 = vld [vmem:[#allocation2 + $0x1f8] sm:$0xff]
      %v3593 = vld [vmem:[#allocation2 + $0x200] sm:$0xff]
      %v3594 = vld [vmem:[#allocation2 + $0x208] sm:$0xff]
      %v3595 = vld [vmem:[#allocation2 + $0x210] sm:$0xff]
      %v3596 = vld [vmem:[#allocation2 + $0x218] sm:$0xff]
      %v3597 = vld [vmem:[#allocation2 + $0x220] sm:$0xff]
      %v3598 = vld [vmem:[#allocation2 + $0x228] sm:$0xff]
      %v3599 = vld [vmem:[#allocation2 + $0x230] sm:$0xff]
      %v3600 = vld [vmem:[#allocation2 + $0x238] sm:$0xff]
      %v3601 = vld [vmem:[#allocation2 + $0x240] sm:$0xff]
      %v3602 = vld [vmem:[#allocation2 + $0x248] sm:$0xff]
      %v3603 = vld [vmem:[#allocation2 + $0x250] sm:$0xff]
      %v3604 = vld [vmem:[#allocation2 + $0x258] sm:$0xff]
      %v3605 = vld [vmem:[#allocation2 + $0x260] sm:$0xff]
      %v3606 = vld [vmem:[#allocation2 + $0x268] sm:$0xff]
      %v3607 = vld [vmem:[#allocation2 + $0x270] sm:$0xff]
      %v3608 = vld [vmem:[#allocation2 + $0x278] sm:$0xff]
      %v3609 = vld [vmem:[%s3] sm:$0x1]
      %v3611 = vlaneseq
      %v3612 = vshrl.u32 %v3611, 7
      %v3613 = vsub.s32 0, %v3612
      %v3614 = vrot.slane %v3609, %v3613
      %v3616 = vadd.f32 %v3529, %v3614
      %v3617 = vadd.f32 %v3530, %v3614
      %v3618 = vadd.f32 %v3531, %v3614
      %v3619 = vadd.f32 %v3532, %v3614
      %v3620 = vadd.f32 %v3533, %v3614
      %v3621 = vadd.f32 %v3534, %v3614
      %v3622 = vadd.f32 %v3535, %v3614
      %v3623 = vadd.f32 %v3536, %v3614
      %v3624 = vadd.f32 %v3537, %v3614
      %v3625 = vadd.f32 %v3538, %v3614
      %v3626 = vadd.f32 %v3539, %v3614
      %v3627 = vadd.f32 %v3540, %v3614
      %v3628 = vadd.f32 %v3541, %v3614
      %v3629 = vadd.f32 %v3542, %v3614
      %v3630 = vadd.f32 %v3543, %v3614
      %v3631 = vadd.f32 %v3544, %v3614
      %v3632 = vadd.f32 %v3545, %v3614
      %v3633 = vadd.f32 %v3546, %v3614
      %v3634 = vadd.f32 %v3547, %v3614
      %v3635 = vadd.f32 %v3548, %v3614
      %v3636 = vadd.f32 %v3549, %v3614
      %v3637 = vadd.f32 %v3550, %v3614
      %v3638 = vadd.f32 %v3551, %v3614
      %v3639 = vadd.f32 %v3552, %v3614
      %v3640 = vadd.f32 %v3553, %v3614
      %v3641 = vadd.f32 %v3554, %v3614
      %v3642 = vadd.f32 %v3555, %v3614
      %v3643 = vadd.f32 %v3556, %v3614
      %v3644 = vadd.f32 %v3557, %v3614
      %v3645 = vadd.f32 %v3558, %v3614
      %v3646 = vadd.f32 %v3559, %v3614
      %v3647 = vadd.f32 %v3560, %v3614
      %v3648 = vadd.f32 %v3561, %v3614
      %v3649 = vadd.f32 %v3562, %v3614
      %v3650 = vadd.f32 %v3563, %v3614
      %v3651 = vadd.f32 %v3564, %v3614
      %v3652 = vadd.f32 %v3565, %v3614
      %v3653 = vadd.f32 %v3566, %v3614
      %v3654 = vadd.f32 %v3567, %v3614
      %v3655 = vadd.f32 %v3568, %v3614
      %v3656 = vadd.f32 %v3569, %v3614
      %v3657 = vadd.f32 %v3570, %v3614
      %v3658 = vadd.f32 %v3571, %v3614
      %v3659 = vadd.f32 %v3572, %v3614
      %v3660 = vadd.f32 %v3573, %v3614
      %v3661 = vadd.f32 %v3574, %v3614
      %v3662 = vadd.f32 %v3575, %v3614
      %v3663 = vadd.f32 %v3576, %v3614
      %v3664 = vadd.f32 %v3577, %v3614
      %v3665 = vadd.f32 %v3578, %v3614
      %v3666 = vadd.f32 %v3579, %v3614
      %v3667 = vadd.f32 %v3580, %v3614
      %v3668 = vadd.f32 %v3581, %v3614
      %v3669 = vadd.f32 %v3582, %v3614
      %v3670 = vadd.f32 %v3583, %v3614
      %v3671 = vadd.f32 %v3584, %v3614
      %v3672 = vadd.f32 %v3585, %v3614
      %v3673 = vadd.f32 %v3586, %v3614
      %v3674 = vadd.f32 %v3587, %v3614
      %v3675 = vadd.f32 %v3588, %v3614
      %v3676 = vadd.f32 %v3589, %v3614
      %v3677 = vadd.f32 %v3590, %v3614
      %v3678 = vadd.f32 %v3591, %v3614
      %v3679 = vadd.f32 %v3592, %v3614
      %v3680 = vadd.f32 %v3593, %v3614
      %v3681 = vadd.f32 %v3594, %v3614
      %v3682 = vadd.f32 %v3595, %v3614
      %v3683 = vadd.f32 %v3596, %v3614
      %v3684 = vadd.f32 %v3597, %v3614
      %v3685 = vadd.f32 %v3598, %v3614
      %v3686 = vadd.f32 %v3599, %v3614
      %v3687 = vadd.f32 %v3600, %v3614
      %v3688 = vadd.f32 %v3601, %v3614
      %v3689 = vadd.f32 %v3602, %v3614
      %v3690 = vadd.f32 %v3603, %v3614
      %v3691 = vadd.f32 %v3604, %v3614
      %v3692 = vadd.f32 %v3605, %v3614
      %v3693 = vadd.f32 %v3606, %v3614
      %v3694 = vadd.f32 %v3607, %v3614
      %v3695 = vadd.f32 %v3608, %v3614
      %v3696 = vmax.f32 %v3616, 0.0
      %v3697 = vmax.f32 %v3617, 0.0
      %v3698 = vmax.f32 %v3618, 0.0
      %v3699 = vmax.f32 %v3619, 0.0
      %v3700 = vmax.f32 %v3620, 0.0
      %v3701 = vmax.f32 %v3621, 0.0
      %v3702 = vmax.f32 %v3622, 0.0
      %v3703 = vmax.f32 %v3623, 0.0
      %v3704 = vmax.f32 %v3624, 0.0
      %v3705 = vmax.f32 %v3625, 0.0
      %v3706 = vmax.f32 %v3626, 0.0
      %v3707 = vmax.f32 %v3627, 0.0
      %v3708 = vmax.f32 %v3628, 0.0
      %v3709 = vmax.f32 %v3629, 0.0
      %v3710 = vmax.f32 %v3630, 0.0
      %v3711 = vmax.f32 %v3631, 0.0
      %v3712 = vmax.f32 %v3632, 0.0
      %v3713 = vmax.f32 %v3633, 0.0
      %v3714 = vmax.f32 %v3634, 0.0
      %v3715 = vmax.f32 %v3635, 0.0
      %v3716 = vmax.f32 %v3636, 0.0
      %v3717 = vmax.f32 %v3637, 0.0
      %v3718 = vmax.f32 %v3638, 0.0
      %v3719 = vmax.f32 %v3639, 0.0
      %v3720 = vmax.f32 %v3640, 0.0
      %v3721 = vmax.f32 %v3641, 0.0
      %v3722 = vmax.f32 %v3642, 0.0
      %v3723 = vmax.f32 %v3643, 0.0
      %v3724 = vmax.f32 %v3644, 0.0
      %v3725 = vmax.f32 %v3645, 0.0
      %v3726 = vmax.f32 %v3646, 0.0
      %v3727 = vmax.f32 %v3647, 0.0
      %v3728 = vmax.f32 %v3648, 0.0
      %v3729 = vmax.f32 %v3649, 0.0
      %v3730 = vmax.f32 %v3650, 0.0
      %v3731 = vmax.f32 %v3651, 0.0
      %v3732 = vmax.f32 %v3652, 0.0
      %v3733 = vmax.f32 %v3653, 0.0
      %v3734 = vmax.f32 %v3654, 0.0
      %v3735 = vmax.f32 %v3655, 0.0
      %v3736 = vmax.f32 %v3656, 0.0
      %v3737 = vmax.f32 %v3657, 0.0
      %v3738 = vmax.f32 %v3658, 0.0
      %v3739 = vmax.f32 %v3659, 0.0
      %v3740 = vmax.f32 %v3660, 0.0
      %v3741 = vmax.f32 %v3661, 0.0
      %v3742 = vmax.f32 %v3662, 0.0
      %v3743 = vmax.f32 %v3663, 0.0
      %v3744 = vmax.f32 %v3664, 0.0
      %v3745 = vmax.f32 %v3665, 0.0
      %v3746 = vmax.f32 %v3666, 0.0
      %v3747 = vmax.f32 %v3667, 0.0
      %v3748 = vmax.f32 %v3668, 0.0
      %v3749 = vmax.f32 %v3669, 0.0
      %v3750 = vmax.f32 %v3670, 0.0
      %v3751 = vmax.f32 %v3671, 0.0
      %v3752 = vmax.f32 %v3672, 0.0
      %v3753 = vmax.f32 %v3673, 0.0
      %v3754 = vmax.f32 %v3674, 0.0
      %v3755 = vmax.f32 %v3675, 0.0
      %v3756 = vmax.f32 %v3676, 0.0
      %v3757 = vmax.f32 %v3677, 0.0
      %v3758 = vmax.f32 %v3678, 0.0
      %v3759 = vmax.f32 %v3679, 0.0
      %v3760 = vmax.f32 %v3680, 0.0
      %v3761 = vmax.f32 %v3681, 0.0
      %v3762 = vmax.f32 %v3682, 0.0
      %v3763 = vmax.f32 %v3683, 0.0
      %v3764 = vmax.f32 %v3684, 0.0
      %v3765 = vmax.f32 %v3685, 0.0
      %v3766 = vmax.f32 %v3686, 0.0
      %v3767 = vmax.f32 %v3687, 0.0
      %v3768 = vmax.f32 %v3688, 0.0
      %v3769 = vmax.f32 %v3689, 0.0
      %v3770 = vmax.f32 %v3690, 0.0
      %v3771 = vmax.f32 %v3691, 0.0
      %v3772 = vmax.f32 %v3692, 0.0
      %v3773 = vmax.f32 %v3693, 0.0
      %v3774 = vmax.f32 %v3694, 0.0
      %v3775 = vmax.f32 %v3695, 0.0
      %v3776 = vld [vmem:[%s4] sm:$0xff]
      %v3777 = vld [vmem:[%s4 + $0x8] sm:$0xff]
      %v3778 = vld [vmem:[%s4 + $0x10] sm:$0xff]
      %v3779 = vld [vmem:[%s4 + $0x18] sm:$0xff]
      %v3780 = vld [vmem:[%s4 + $0x20] sm:$0xff]
      %v3781 = vld [vmem:[%s4 + $0x28] sm:$0xff]
      %v3782 = vld [vmem:[%s4 + $0x30] sm:$0xff]
      %v3783 = vld [vmem:[%s4 + $0x38] sm:$0xff]
      %v3784 = vld [vmem:[%s4 + $0x40] sm:$0xff]
      %v3785 = vld [vmem:[%s4 + $0x48] sm:$0xff]
      %v3786 = vld [vmem:[%s4 + $0x50] sm:$0xff]
      %v3787 = vld [vmem:[%s4 + $0x58] sm:$0xff]
      %v3788 = vld [vmem:[%s4 + $0x60] sm:$0xff]
      %v3789 = vld [vmem:[%s4 + $0x68] sm:$0xff]
      %v3790 = vld [vmem:[%s4 + $0x70] sm:$0xff]
      %v3791 = vld [vmem:[%s4 + $0x78] sm:$0xff]
      %3792 = vmatprep.subr.mxu0 0.0
      %3793 = vmatpush1.msra.mxu0 %v3776
      %3794 = vmatprep.subr.mxu0 0.0
      %3795 = vmatpush1.msra.mxu0 %v3777
      %3796 = vmatprep.subr.mxu0 0.0
      %3797 = vmatpush1.msra.mxu0 %v3778
      %3798 = vmatprep.subr.mxu0 0.0
      %3799 = vmatpush1.msra.mxu0 %v3779
      %3800 = vmatprep.subr.mxu0 0.0
      %3801 = vmatpush1.msra.mxu0 %v3780
      %3802 = vmatprep.subr.mxu0 0.0
      %3803 = vmatpush1.msra.mxu0 %v3781
      %3804 = vmatprep.subr.mxu0 0.0
      %3805 = vmatpush1.msra.mxu0 %v3782
      %3806 = vmatprep.subr.mxu0 0.0
      %3807 = vmatpush1.msra.mxu0 %v3783
      %3808 = vmatprep.subr.mxu0 0.0
      %3809 = vmatpush1.msra.mxu0 %v3784
      %3810 = vmatprep.subr.mxu0 0.0
      %3811 = vmatpush1.msra.mxu0 %v3785
      %3812 = vmatprep.subr.mxu0 0.0
      %3813 = vmatpush1.msra.mxu0 %v3786
      %3814 = vmatprep.subr.mxu0 0.0
      %3815 = vmatpush1.msra.mxu0 %v3787
      %3816 = vmatprep.subr.mxu0 0.0
      %3817 = vmatpush1.msra.mxu0 %v3788
      %3818 = vmatprep.subr.mxu0 0.0
      %3819 = vmatpush1.msra.mxu0 %v3789
      %3820 = vmatprep.subr.mxu0 0.0
      %3821 = vmatpush1.msra.mxu0 %v3790
      %3822 = vmatprep.subr.mxu0 0.0
      %3823 = vmatpush1.msra.mxu0 %v3791
      %3824 = vmatprep.subr.mxu0 0.0
      %3825 = vmatpush1.msra.mxu0 0.0
      %3826 = vmatprep.subr.mxu0 0.0
      %3827 = vmatpush1.msra.mxu0 0.0
      %3828 = vmatprep.subr.mxu0 0.0
      %3829 = vmatpush1.msra.mxu0 0.0
      %3830 = vmatprep.subr.mxu0 0.0
      %3831 = vmatpush1.msra.mxu0 0.0
      %3832 = vmatprep.subr.mxu0 0.0
      %3833 = vmatpush1.msra.mxu0 0.0
      %3834 = vmatprep.subr.mxu0 0.0
      %3835 = vmatpush1.msra.mxu0 0.0
      %3836 = vmatprep.subr.mxu0 0.0
      %3837 = vmatpush1.msra.mxu0 0.0
      %3838 = vmatprep.subr.mxu0 0.0
      %3839 = vmatpush1.msra.mxu0 0.0
      %3840 = vmatprep.subr.mxu0 0.0
      %3841 = vmatpush1.msra.mxu0 0.0
      %3842 = vmatprep.subr.mxu0 0.0
      %3843 = vmatpush1.msra.mxu0 0.0
      %3844 = vmatprep.subr.mxu0 0.0
      %3845 = vmatpush1.msra.mxu0 0.0
      %3846 = vmatprep.subr.mxu0 0.0
      %3847 = vmatpush1.msra.mxu0 0.0
      %3848 = vmatprep.subr.mxu0 0.0
      %3849 = vmatpush1.msra.mxu0 0.0
      %3850 = vmatprep.subr.mxu0 0.0
      %3851 = vmatpush1.msra.mxu0 0.0
      %3852 = vmatprep.subr.mxu0 0.0
      %3853 = vmatpush1.msra.mxu0 0.0
      %3854 = vmatprep.subr.mxu0 0.0
      %3855 = vmatpush1.msra.mxu0 0.0
      %3856 = vmatprep.mubr.f32.mxu0 0.0
      %3857 = vmatmul.mubr.f32.gmra.mrb[0].mxu0 %v3696
      %v3858 = vpop.f32.mrb[0].mxu0
      %v3859 = vadd.f32 0.0, %v3858
      %v3860 = vpop.f32.mrb[0].mxu0
      %3861 = vmatprep.mubr.f32.mxu0 0.0
      %3862 = vmatmul.mubr.f32.gmra.mrb[0].mxu0 %v3697
      %v3863 = vpop.f32.mrb[0].mxu0
      %v3864 = vadd.f32 0.0, %v3863
      %v3865 = vpop.f32.mrb[0].mxu0
      %3866 = vmatprep.mubr.f32.mxu0 0.0
      %3867 = vmatmul.mubr.f32.gmra.mrb[0].mxu0 %v3698
      %v3868 = vpop.f32.mrb[0].mxu0
      %v3869 = vadd.f32 0.0, %v3868
      %v3870 = vpop.f32.mrb[0].mxu0
      %3871 = vmatprep.mubr.f32.mxu0 0.0
      %3872 = vmatmul.mubr.f32.gmra.mrb[0].mxu0 %v3699
      %v3873 = vpop.f32.mrb[0].mxu0
      %v3874 = vadd.f32 0.0, %v3873
      %v3875 = vpop.f32.mrb[0].mxu0
      %3876 = vmatprep.mubr.f32.mxu0 0.0
      %3877 = vmatmul.mubr.f32.gmra.mrb[0].mxu0 %v3700
      %v3878 = vpop.f32.mrb[0].mxu0
      %v3879 = vadd.f32 0.0, %v3878
      %v3880 = vpop.f32.mrb[0].mxu0
      %3881 = vmatprep.mubr.f32.mxu0 0.0
      %3882 = vmatmul.mubr.f32.gmra.mrb[0].mxu0 %v3701
      %v3883 = vpop.f32.mrb[0].mxu0
      %v3884 = vadd.f32 0.0, %v3883
      %v3885 = vpop.f32.mrb[0].mxu0
      %3886 = vmatprep.mubr.f32.mxu0 0.0
      %3887 = vmatmul.mubr.f32.gmra.mrb[0].mxu0 %v3702
      %v3888 = vpop.f32.mrb[0].mxu0
      %v3889 = vadd.f32 0.0, %v3888
      %v3890 = vpop.f32.mrb[0].mxu0
      %3891 = vmatprep.mubr.f32.mxu0 0.0
      %3892 = vmatmul.mubr.f32.gmra.mrb[0].mxu0 %v3703
      %v3893 = vpop.f32.mrb[0].mxu0
      %v3894 = vadd.f32 0.0, %v3893
      %v3895 = vpop.f32.mrb[0].mxu0
      %3896 = vmatprep.mubr.f32.mxu0 0.0
      %3897 = vmatmul.mubr.f32.gmra.mrb[0].mxu0 %v3704
      %v3898 = vpop.f32.mrb[0].mxu0
      %v3899 = vadd.f32 0.0, %v3898
      %v3900 = vpop.f32.mrb[0].mxu0
      %3901 = vmatprep.mubr.f32.mxu0 0.0
      %3902 = vmatmul.mubr.f32.gmra.mrb[0].mxu0 %v3705
      %v3903 = vpop.f32.mrb[0].mxu0
      %v3904 = vadd.f32 0.0, %v3903
      %v3905 = vpop.f32.mrb[0].mxu0
      %3906 = vmatprep.mubr.f32.mxu0 0.0
      %3907 = vmatmul.mubr.f32.gmra.mrb[0].mxu0 %v3706
      %v3908 = vpop.f32.mrb[0].mxu0
      %v3909 = vadd.f32 0.0, %v3908
      %v3910 = vpop.f32.mrb[0].mxu0
      %3911 = vmatprep.mubr.f32.mxu0 0.0
      %3912 = vmatmul.mubr.f32.gmra.mrb[0].mxu0 %v3707
      %v3913 = vpop.f32.mrb[0].mxu0
      %v3914 = vadd.f32 0.0, %v3913
      %v3915 = vpop.f32.mrb[0].mxu0
      %3916 = vmatprep.mubr.f32.mxu0 0.0
      %3917 = vmatmul.mubr.f32.gmra.mrb[0].mxu0 %v3708
      %v3918 = vpop.f32.mrb[0].mxu0
      %v3919 = vadd.f32 0.0, %v3918
      %v3920 = vpop.f32.mrb[0].mxu0
      %3921 = vmatprep.mubr.f32.mxu0 0.0
      %3922 = vmatmul.mubr.f32.gmra.mrb[0].mxu0 %v3709
      %v3923 = vpop.f32.mrb[0].mxu0
      %v3924 = vadd.f32 0.0, %v3923
      %v3925 = vpop.f32.mrb[0].mxu0
      %3926 = vmatprep.mubr.f32.mxu0 0.0
      %3927 = vmatmul.mubr.f32.gmra.mrb[0].mxu0 %v3710
      %v3928 = vpop.f32.mrb[0].mxu0
      %v3929 = vadd.f32 0.0, %v3928
      %v3930 = vpop.f32.mrb[0].mxu0
      %3931 = vmatprep.mubr.f32.mxu0 0.0
      %3932 = vmatmul.mubr.f32.gmra.mrb[0].mxu0 %v3711
      %v3933 = vpop.f32.mrb[0].mxu0
      %v3934 = vadd.f32 0.0, %v3933
      %v3935 = vpop.f32.mrb[0].mxu0
      %3936 = vmatprep.mubr.f32.mxu0 0.0
      %3937 = vmatmul.mubr.f32.gmra.mrb[0].mxu0 %v3712
      %v3938 = vpop.f32.mrb[0].mxu0
      %v3939 = vadd.f32 0.0, %v3938
      %v3940 = vpop.f32.mrb[0].mxu0
      %3941 = vmatprep.mubr.f32.mxu0 0.0
      %3942 = vmatmul.mubr.f32.gmra.mrb[0].mxu0 %v3713
      %v3943 = vpop.f32.mrb[0].mxu0
      %v3944 = vadd.f32 0.0, %v3943
      %v3945 = vpop.f32.mrb[0].mxu0
      %3946 = vmatprep.mubr.f32.mxu0 0.0
      %3947 = vmatmul.mubr.f32.gmra.mrb[0].mxu0 %v3714
      %v3948 = vpop.f32.mrb[0].mxu0
      %v3949 = vadd.f32 0.0, %v3948
      %v3950 = vpop.f32.mrb[0].mxu0
      %3951 = vmatprep.mubr.f32.mxu0 0.0
      %3952 = vmatmul.mubr.f32.gmra.mrb[0].mxu0 %v3715
      %v3953 = vpop.f32.mrb[0].mxu0
      %v3954 = vadd.f32 0.0, %v3953
      %v3955 = vpop.f32.mrb[0].mxu0
      %3956 = vmatprep.mubr.f32.mxu0 0.0
      %3957 = vmatmul.mubr.f32.gmra.mrb[0].mxu0 %v3716
      %v3958 = vpop.f32.mrb[0].mxu0
      %v3959 = vadd.f32 0.0, %v3958
      %v3960 = vpop.f32.mrb[0].mxu0
      %3961 = vmatprep.mubr.f32.mxu0 0.0
      %3962 = vmatmul.mubr.f32.gmra.mrb[0].mxu0 %v3717
      %v3963 = vpop.f32.mrb[0].mxu0
      %v3964 = vadd.f32 0.0, %v3963
      %v3965 = vpop.f32.mrb[0].mxu0
      %3966 = vmatprep.mubr.f32.mxu0 0.0
      %3967 = vmatmul.mubr.f32.gmra.mrb[0].mxu0 %v3718
      %v3968 = vpop.f32.mrb[0].mxu0
      %v3969 = vadd.f32 0.0, %v3968
      %v3970 = vpop.f32.mrb[0].mxu0
      %3971 = vmatprep.mubr.f32.mxu0 0.0
      %3972 = vmatmul.mubr.f32.gmra.mrb[0].mxu0 %v3719
      %v3973 = vpop.f32.mrb[0].mxu0
      %v3974 = vadd.f32 0.0, %v3973
      %v3975 = vpop.f32.mrb[0].mxu0
      %3976 = vmatprep.mubr.f32.mxu0 0.0
      %3977 = vmatmul.mubr.f32.gmra.mrb[0].mxu0 %v3720
      %v3978 = vpop.f32.mrb[0].mxu0
      %v3979 = vadd.f32 0.0, %v3978
      %v3980 = vpop.f32.mrb[0].mxu0
      %3981 = vmatprep.mubr.f32.mxu0 0.0
      %3982 = vmatmul.mubr.f32.gmra.mrb[0].mxu0 %v3721
      %v3983 = vpop.f32.mrb[0].mxu0
      %v3984 = vadd.f32 0.0, %v3983
      %v3985 = vpop.f32.mrb[0].mxu0
      %3986 = vmatprep.mubr.f32.mxu0 0.0
      %3987 = vmatmul.mubr.f32.gmra.mrb[0].mxu0 %v3722
      %v3988 = vpop.f32.mrb[0].mxu0
      %v3989 = vadd.f32 0.0, %v3988
      %v3990 = vpop.f32.mrb[0].mxu0
      %3991 = vmatprep.mubr.f32.mxu0 0.0
      %3992 = vmatmul.mubr.f32.gmra.mrb[0].mxu0 %v3723
      %v3993 = vpop.f32.mrb[0].mxu0
      %v3994 = vadd.f32 0.0, %v3993
      %v3995 = vpop.f32.mrb[0].mxu0
      %3996 = vmatprep.mubr.f32.mxu0 0.0
      %3997 = vmatmul.mubr.f32.gmra.mrb[0].mxu0 %v3724
      %v3998 = vpop.f32.mrb[0].mxu0
      %v3999 = vadd.f32 0.0, %v3998
      %v4000 = vpop.f32.mrb[0].mxu0
      %4001 = vmatprep.mubr.f32.mxu0 0.0
      %4002 = vmatmul.mubr.f32.gmra.mrb[0].mxu0 %v3725
      %v4003 = vpop.f32.mrb[0].mxu0
      %v4004 = vadd.f32 0.0, %v4003
      %v4005 = vpop.f32.mrb[0].mxu0
      %4006 = vmatprep.mubr.f32.mxu0 0.0
      %4007 = vmatmul.mubr.f32.gmra.mrb[0].mxu0 %v3726
      %v4008 = vpop.f32.mrb[0].mxu0
      %v4009 = vadd.f32 0.0, %v4008
      %v4010 = vpop.f32.mrb[0].mxu0
      %4011 = vmatprep.mubr.f32.mxu0 0.0
      %4012 = vmatmul.mubr.f32.gmra.mrb[0].mxu0 %v3727
      %v4013 = vpop.f32.mrb[0].mxu0
      %v4014 = vadd.f32 0.0, %v4013
      %v4015 = vpop.f32.mrb[0].mxu0
      %4016 = vmatprep.mubr.f32.mxu0 0.0
      %4017 = vmatmul.mubr.f32.gmra.mrb[0].mxu0 %v3728
      %v4018 = vpop.f32.mrb[0].mxu0
      %v4019 = vadd.f32 0.0, %v4018
      %v4020 = vpop.f32.mrb[0].mxu0
      %4021 = vmatprep.mubr.f32.mxu0 0.0
      %4022 = vmatmul.mubr.f32.gmra.mrb[0].mxu0 %v3729
      %v4023 = vpop.f32.mrb[0].mxu0
      %v4024 = vadd.f32 0.0, %v4023
      %v4025 = vpop.f32.mrb[0].mxu0
      %4026 = vmatprep.mubr.f32.mxu0 0.0
      %4027 = vmatmul.mubr.f32.gmra.mrb[0].mxu0 %v3730
      %v4028 = vpop.f32.mrb[0].mxu0
      %v4029 = vadd.f32 0.0, %v4028
      %v4030 = vpop.f32.mrb[0].mxu0
      %4031 = vmatprep.mubr.f32.mxu0 0.0
      %4032 = vmatmul.mubr.f32.gmra.mrb[0].mxu0 %v3731
      %v4033 = vpop.f32.mrb[0].mxu0
      %v4034 = vadd.f32 0.0, %v4033
      %v4035 = vpop.f32.mrb[0].mxu0
      %4036 = vmatprep.mubr.f32.mxu0 0.0
      %4037 = vmatmul.mubr.f32.gmra.mrb[0].mxu0 %v3732
      %v4038 = vpop.f32.mrb[0].mxu0
      %v4039 = vadd.f32 0.0, %v4038
      %v4040 = vpop.f32.mrb[0].mxu0
      %4041 = vmatprep.mubr.f32.mxu0 0.0
      %4042 = vmatmul.mubr.f32.gmra.mrb[0].mxu0 %v3733
      %v4043 = vpop.f32.mrb[0].mxu0
      %v4044 = vadd.f32 0.0, %v4043
      %v4045 = vpop.f32.mrb[0].mxu0
      %4046 = vmatprep.mubr.f32.mxu0 0.0
      %4047 = vmatmul.mubr.f32.gmra.mrb[0].mxu0 %v3734
      %v4048 = vpop.f32.mrb[0].mxu0
      %v4049 = vadd.f32 0.0, %v4048
      %v4050 = vpop.f32.mrb[0].mxu0
      %4051 = vmatprep.mubr.f32.mxu0 0.0
      %4052 = vmatmul.mubr.f32.gmra.mrb[0].mxu0 %v3735
      %v4053 = vpop.f32.mrb[0].mxu0
      %v4054 = vadd.f32 0.0, %v4053
      %v4055 = vpop.f32.mrb[0].mxu0
      %4056 = vmatprep.mubr.f32.mxu0 0.0
      %4057 = vmatmul.mubr.f32.gmra.mrb[0].mxu0 %v3736
      %v4058 = vpop.f32.mrb[0].mxu0
      %v4059 = vadd.f32 0.0, %v4058
      %v4060 = vpop.f32.mrb[0].mxu0
      %4061 = vmatprep.mubr.f32.mxu0 0.0
      %4062 = vmatmul.mubr.f32.gmra.mrb[0].mxu0 %v3737
      %v4063 = vpop.f32.mrb[0].mxu0
      %v4064 = vadd.f32 0.0, %v4063
      %v4065 = vpop.f32.mrb[0].mxu0
      %4066 = vmatprep.mubr.f32.mxu0 0.0
      %4067 = vmatmul.mubr.f32.gmra.mrb[0].mxu0 %v3738
      %v4068 = vpop.f32.mrb[0].mxu0
      %v4069 = vadd.f32 0.0, %v4068
      %v4070 = vpop.f32.mrb[0].mxu0
      %4071 = vmatprep.mubr.f32.mxu0 0.0
      %4072 = vmatmul.mubr.f32.gmra.mrb[0].mxu0 %v3739
      %v4073 = vpop.f32.mrb[0].mxu0
      %v4074 = vadd.f32 0.0, %v4073
      %v4075 = vpop.f32.mrb[0].mxu0
      %4076 = vmatprep.mubr.f32.mxu0 0.0
      %4077 = vmatmul.mubr.f32.gmra.mrb[0].mxu0 %v3740
      %v4078 = vpop.f32.mrb[0].mxu0
      %v4079 = vadd.f32 0.0, %v4078
      %v4080 = vpop.f32.mrb[0].mxu0
      %4081 = vmatprep.mubr.f32.mxu0 0.0
      %4082 = vmatmul.mubr.f32.gmra.mrb[0].mxu0 %v3741
      %v4083 = vpop.f32.mrb[0].mxu0
      %v4084 = vadd.f32 0.0, %v4083
      %v4085 = vpop.f32.mrb[0].mxu0
      %4086 = vmatprep.mubr.f32.mxu0 0.0
      %4087 = vmatmul.mubr.f32.gmra.mrb[0].mxu0 %v3742
      %v4088 = vpop.f32.mrb[0].mxu0
      %v4089 = vadd.f32 0.0, %v4088
      %v4090 = vpop.f32.mrb[0].mxu0
      %4091 = vmatprep.mubr.f32.mxu0 0.0
      %4092 = vmatmul.mubr.f32.gmra.mrb[0].mxu0 %v3743
      %v4093 = vpop.f32.mrb[0].mxu0
      %v4094 = vadd.f32 0.0, %v4093
      %v4095 = vpop.f32.mrb[0].mxu0
      %4096 = vmatprep.mubr.f32.mxu0 0.0
      %4097 = vmatmul.mubr.f32.gmra.mrb[0].mxu0 %v3744
      %v4098 = vpop.f32.mrb[0].mxu0
      %v4099 = vadd.f32 0.0, %v4098
      %v4100 = vpop.f32.mrb[0].mxu0
      %4101 = vmatprep.mubr.f32.mxu0 0.0
      %4102 = vmatmul.mubr.f32.gmra.mrb[0].mxu0 %v3745
      %v4103 = vpop.f32.mrb[0].mxu0
      %v4104 = vadd.f32 0.0, %v4103
      %v4105 = vpop.f32.mrb[0].mxu0
      %4106 = vmatprep.mubr.f32.mxu0 0.0
      %4107 = vmatmul.mubr.f32.gmra.mrb[0].mxu0 %v3746
      %v4108 = vpop.f32.mrb[0].mxu0
      %v4109 = vadd.f32 0.0, %v4108
      %v4110 = vpop.f32.mrb[0].mxu0
      %4111 = vmatprep.mubr.f32.mxu0 0.0
      %4112 = vmatmul.mubr.f32.gmra.mrb[0].mxu0 %v3747
      %v4113 = vpop.f32.mrb[0].mxu0
      %v4114 = vadd.f32 0.0, %v4113
      %v4115 = vpop.f32.mrb[0].mxu0
      %4116 = vmatprep.mubr.f32.mxu0 0.0
      %4117 = vmatmul.mubr.f32.gmra.mrb[0].mxu0 %v3748
      %v4118 = vpop.f32.mrb[0].mxu0
      %v4119 = vadd.f32 0.0, %v4118
      %v4120 = vpop.f32.mrb[0].mxu0
      %4121 = vmatprep.mubr.f32.mxu0 0.0
      %4122 = vmatmul.mubr.f32.gmra.mrb[0].mxu0 %v3749
      %v4123 = vpop.f32.mrb[0].mxu0
      %v4124 = vadd.f32 0.0, %v4123
      %v4125 = vpop.f32.mrb[0].mxu0
      %4126 = vmatprep.mubr.f32.mxu0 0.0
      %4127 = vmatmul.mubr.f32.gmra.mrb[0].mxu0 %v3750
      %v4128 = vpop.f32.mrb[0].mxu0
      %v4129 = vadd.f32 0.0, %v4128
      %v4130 = vpop.f32.mrb[0].mxu0
      %4131 = vmatprep.mubr.f32.mxu0 0.0
      %4132 = vmatmul.mubr.f32.gmra.mrb[0].mxu0 %v3751
      %v4133 = vpop.f32.mrb[0].mxu0
      %v4134 = vadd.f32 0.0, %v4133
      %v4135 = vpop.f32.mrb[0].mxu0
      %4136 = vmatprep.mubr.f32.mxu0 0.0
      %4137 = vmatmul.mubr.f32.gmra.mrb[0].mxu0 %v3752
      %v4138 = vpop.f32.mrb[0].mxu0
      %v4139 = vadd.f32 0.0, %v4138
      %v4140 = vpop.f32.mrb[0].mxu0
      %4141 = vmatprep.mubr.f32.mxu0 0.0
      %4142 = vmatmul.mubr.f32.gmra.mrb[0].mxu0 %v3753
      %v4143 = vpop.f32.mrb[0].mxu0
      %v4144 = vadd.f32 0.0, %v4143
      %v4145 = vpop.f32.mrb[0].mxu0
      %4146 = vmatprep.mubr.f32.mxu0 0.0
      %4147 = vmatmul.mubr.f32.gmra.mrb[0].mxu0 %v3754
      %v4148 = vpop.f32.mrb[0].mxu0
      %v4149 = vadd.f32 0.0, %v4148
      %v4150 = vpop.f32.mrb[0].mxu0
      %4151 = vmatprep.mubr.f32.mxu0 0.0
      %4152 = vmatmul.mubr.f32.gmra.mrb[0].mxu0 %v3755
      %v4153 = vpop.f32.mrb[0].mxu0
      %v4154 = vadd.f32 0.0, %v4153
      %v4155 = vpop.f32.mrb[0].mxu0
      %4156 = vmatprep.mubr.f32.mxu0 0.0
      %4157 = vmatmul.mubr.f32.gmra.mrb[0].mxu0 %v3756
      %v4158 = vpop.f32.mrb[0].mxu0
      %v4159 = vadd.f32 0.0, %v4158
      %v4160 = vpop.f32.mrb[0].mxu0
      %4161 = vmatprep.mubr.f32.mxu0 0.0
      %4162 = vmatmul.mubr.f32.gmra.mrb[0].mxu0 %v3757
      %v4163 = vpop.f32.mrb[0].mxu0
      %v4164 = vadd.f32 0.0, %v4163
      %v4165 = vpop.f32.mrb[0].mxu0
      %4166 = vmatprep.mubr.f32.mxu0 0.0
      %4167 = vmatmul.mubr.f32.gmra.mrb[0].mxu0 %v3758
      %v4168 = vpop.f32.mrb[0].mxu0
      %v4169 = vadd.f32 0.0, %v4168
      %v4170 = vpop.f32.mrb[0].mxu0
      %4171 = vmatprep.mubr.f32.mxu0 0.0
      %4172 = vmatmul.mubr.f32.gmra.mrb[0].mxu0 %v3759
      %v4173 = vpop.f32.mrb[0].mxu0
      %v4174 = vadd.f32 0.0, %v4173
      %v4175 = vpop.f32.mrb[0].mxu0
      %4176 = vmatprep.mubr.f32.mxu0 0.0
      %4177 = vmatmul.mubr.f32.gmra.mrb[0].mxu0 %v3760
      %v4178 = vpop.f32.mrb[0].mxu0
      %v4179 = vadd.f32 0.0, %v4178
      %v4180 = vpop.f32.mrb[0].mxu0
      %4181 = vmatprep.mubr.f32.mxu0 0.0
      %4182 = vmatmul.mubr.f32.gmra.mrb[0].mxu0 %v3761
      %v4183 = vpop.f32.mrb[0].mxu0
      %v4184 = vadd.f32 0.0, %v4183
      %v4185 = vpop.f32.mrb[0].mxu0
      %4186 = vmatprep.mubr.f32.mxu0 0.0
      %4187 = vmatmul.mubr.f32.gmra.mrb[0].mxu0 %v3762
      %v4188 = vpop.f32.mrb[0].mxu0
      %v4189 = vadd.f32 0.0, %v4188
      %v4190 = vpop.f32.mrb[0].mxu0
      %4191 = vmatprep.mubr.f32.mxu0 0.0
      %4192 = vmatmul.mubr.f32.gmra.mrb[0].mxu0 %v3763
      %v4193 = vpop.f32.mrb[0].mxu0
      %v4194 = vadd.f32 0.0, %v4193
      %v4195 = vpop.f32.mrb[0].mxu0
      %4196 = vmatprep.mubr.f32.mxu0 0.0
      %4197 = vmatmul.mubr.f32.gmra.mrb[0].mxu0 %v3764
      %v4198 = vpop.f32.mrb[0].mxu0
      %v4199 = vadd.f32 0.0, %v4198
      %v4200 = vpop.f32.mrb[0].mxu0
      %4201 = vmatprep.mubr.f32.mxu0 0.0
      %4202 = vmatmul.mubr.f32.gmra.mrb[0].mxu0 %v3765
      %v4203 = vpop.f32.mrb[0].mxu0
      %v4204 = vadd.f32 0.0, %v4203
      %v4205 = vpop.f32.mrb[0].mxu0
      %4206 = vmatprep.mubr.f32.mxu0 0.0
      %4207 = vmatmul.mubr.f32.gmra.mrb[0].mxu0 %v3766
      %v4208 = vpop.f32.mrb[0].mxu0
      %v4209 = vadd.f32 0.0, %v4208
      %v4210 = vpop.f32.mrb[0].mxu0
      %4211 = vmatprep.mubr.f32.mxu0 0.0
      %4212 = vmatmul.mubr.f32.gmra.mrb[0].mxu0 %v3767
      %v4213 = vpop.f32.mrb[0].mxu0
      %v4214 = vadd.f32 0.0, %v4213
      %v4215 = vpop.f32.mrb[0].mxu0
      %4216 = vmatprep.mubr.f32.mxu0 0.0
      %4217 = vmatmul.mubr.f32.gmra.mrb[0].mxu0 %v3768
      %v4218 = vpop.f32.mrb[0].mxu0
      %v4219 = vadd.f32 0.0, %v4218
      %v4220 = vpop.f32.mrb[0].mxu0
      %4221 = vmatprep.mubr.f32.mxu0 0.0
      %4222 = vmatmul.mubr.f32.gmra.mrb[0].mxu0 %v3769
      %v4223 = vpop.f32.mrb[0].mxu0
      %v4224 = vadd.f32 0.0, %v4223
      %v4225 = vpop.f32.mrb[0].mxu0
      %4226 = vmatprep.mubr.f32.mxu0 0.0
      %4227 = vmatmul.mubr.f32.gmra.mrb[0].mxu0 %v3770
      %v4228 = vpop.f32.mrb[0].mxu0
      %v4229 = vadd.f32 0.0, %v4228
      %v4230 = vpop.f32.mrb[0].mxu0
      %4231 = vmatprep.mubr.f32.mxu0 0.0
      %4232 = vmatmul.mubr.f32.gmra.mrb[0].mxu0 %v3771
      %v4233 = vpop.f32.mrb[0].mxu0
      %v4234 = vadd.f32 0.0, %v4233
      %v4235 = vpop.f32.mrb[0].mxu0
      %4236 = vmatprep.mubr.f32.mxu0 0.0
      %4237 = vmatmul.mubr.f32.gmra.mrb[0].mxu0 %v3772
      %v4238 = vpop.f32.mrb[0].mxu0
      %v4239 = vadd.f32 0.0, %v4238
      %v4240 = vpop.f32.mrb[0].mxu0
      %4241 = vmatprep.mubr.f32.mxu0 0.0
      %4242 = vmatmul.mubr.f32.gmra.mrb[0].mxu0 %v3773
      %v4243 = vpop.f32.mrb[0].mxu0
      %v4244 = vadd.f32 0.0, %v4243
      %v4245 = vpop.f32.mrb[0].mxu0
      %4246 = vmatprep.mubr.f32.mxu0 0.0
      %4247 = vmatmul.mubr.f32.gmra.mrb[0].mxu0 %v3774
      %v4248 = vpop.f32.mrb[0].mxu0
      %v4249 = vadd.f32 0.0, %v4248
      %v4250 = vpop.f32.mrb[0].mxu0
      %4251 = vmatprep.mubr.f32.mxu0 0.0
      %4252 = vmatmul.mubr.f32.gmra.mrb[0].mxu0 %v3775
      %v4253 = vpop.f32.mrb[0].mxu0
      %v4254 = vadd.f32 0.0, %v4253
      %v4255 = vpop.f32.mrb[0].mxu0
      %4256 = vdwg.mxu0
      %4257 = vst [vmem:[#allocation6] sm:$0xff] %v3859
      %4258 = vst [vmem:[#allocation6 + $0x8] sm:$0xff] %v3864
      %4259 = vst [vmem:[#allocation6 + $0x10] sm:$0xff] %v3869
      %4260 = vst [vmem:[#allocation6 + $0x18] sm:$0xff] %v3874
      %4261 = vst [vmem:[#allocation6 + $0x20] sm:$0xff] %v3879
      %4262 = vst [vmem:[#allocation6 + $0x28] sm:$0xff] %v3884
      %4263 = vst [vmem:[#allocation6 + $0x30] sm:$0xff] %v3889
      %4264 = vst [vmem:[#allocation6 + $0x38] sm:$0xff] %v3894
      %4265 = vst [vmem:[#allocation6 + $0x40] sm:$0xff] %v3899
      %4266 = vst [vmem:[#allocation6 + $0x48] sm:$0xff] %v3904
      %4267 = vst [vmem:[#allocation6 + $0x50] sm:$0xff] %v3909
      %4268 = vst [vmem:[#allocation6 + $0x58] sm:$0xff] %v3914
      %4269 = vst [vmem:[#allocation6 + $0x60] sm:$0xff] %v3919
      %4270 = vst [vmem:[#allocation6 + $0x68] sm:$0xff] %v3924
      %4271 = vst [vmem:[#allocation6 + $0x70] sm:$0xff] %v3929
      %4272 = vst [vmem:[#allocation6 + $0x78] sm:$0xff] %v3934
      %4273 = vst [vmem:[#allocation6 + $0x80] sm:$0xff] %v3939
      %4274 = vst [vmem:[#allocation6 + $0x88] sm:$0xff] %v3944
      %4275 = vst [vmem:[#allocation6 + $0x90] sm:$0xff] %v3949
      %4276 = vst [vmem:[#allocation6 + $0x98] sm:$0xff] %v3954
      %4277 = vst [vmem:[#allocation6 + $0xa0] sm:$0xff] %v3959
      %4278 = vst [vmem:[#allocation6 + $0xa8] sm:$0xff] %v3964
      %4279 = vst [vmem:[#allocation6 + $0xb0] sm:$0xff] %v3969
      %4280 = vst [vmem:[#allocation6 + $0xb8] sm:$0xff] %v3974
      %4281 = vst [vmem:[#allocation6 + $0xc0] sm:$0xff] %v3979
      %4282 = vst [vmem:[#allocation6 + $0xc8] sm:$0xff] %v3984
      %4283 = vst [vmem:[#allocation6 + $0xd0] sm:$0xff] %v3989
      %4284 = vst [vmem:[#allocation6 + $0xd8] sm:$0xff] %v3994
      %4285 = vst [vmem:[#allocation6 + $0xe0] sm:$0xff] %v3999
      %4286 = vst [vmem:[#allocation6 + $0xe8] sm:$0xff] %v4004
      %4287 = vst [vmem:[#allocation6 + $0xf0] sm:$0xff] %v4009
      %4288 = vst [vmem:[#allocation6 + $0xf8] sm:$0xff] %v4014
      %4289 = vst [vmem:[#allocation6 + $0x100] sm:$0xff] %v4019
      %4290 = vst [vmem:[#allocation6 + $0x108] sm:$0xff] %v4024
      %4291 = vst [vmem:[#allocation6 + $0x110] sm:$0xff] %v4029
      %4292 = vst [vmem:[#allocation6 + $0x118] sm:$0xff] %v4034
      %4293 = vst [vmem:[#allocation6 + $0x120] sm:$0xff] %v4039
      %4294 = vst [vmem:[#allocation6 + $0x128] sm:$0xff] %v4044
      %4295 = vst [vmem:[#allocation6 + $0x130] sm:$0xff] %v4049
      %4296 = vst [vmem:[#allocation6 + $0x138] sm:$0xff] %v4054
      %4297 = vst [vmem:[#allocation6 + $0x140] sm:$0xff] %v4059
      %4298 = vst [vmem:[#allocation6 + $0x148] sm:$0xff] %v4064
      %4299 = vst [vmem:[#allocation6 + $0x150] sm:$0xff] %v4069
      %4300 = vst [vmem:[#allocation6 + $0x158] sm:$0xff] %v4074
      %4301 = vst [vmem:[#allocation6 + $0x160] sm:$0xff] %v4079
      %4302 = vst [vmem:[#allocation6 + $0x168] sm:$0xff] %v4084
      %4303 = vst [vmem:[#allocation6 + $0x170] sm:$0xff] %v4089
      %4304 = vst [vmem:[#allocation6 + $0x178] sm:$0xff] %v4094
      %4305 = vst [vmem:[#allocation6 + $0x180] sm:$0xff] %v4099
      %4306 = vst [vmem:[#allocation6 + $0x188] sm:$0xff] %v4104
      %4307 = vst [vmem:[#allocation6 + $0x190] sm:$0xff] %v4109
      %4308 = vst [vmem:[#allocation6 + $0x198] sm:$0xff] %v4114
      %4309 = vst [vmem:[#allocation6 + $0x1a0] sm:$0xff] %v4119
      %4310 = vst [vmem:[#allocation6 + $0x1a8] sm:$0xff] %v4124
      %4311 = vst [vmem:[#allocation6 + $0x1b0] sm:$0xff] %v4129
      %4312 = vst [vmem:[#allocation6 + $0x1b8] sm:$0xff] %v4134
      %4313 = vst [vmem:[#allocation6 + $0x1c0] sm:$0xff] %v4139
      %4314 = vst [vmem:[#allocation6 + $0x1c8] sm:$0xff] %v4144
      %4315 = vst [vmem:[#allocation6 + $0x1d0] sm:$0xff] %v4149
      %4316 = vst [vmem:[#allocation6 + $0x1d8] sm:$0xff] %v4154
      %4317 = vst [vmem:[#allocation6 + $0x1e0] sm:$0xff] %v4159
      %4318 = vst [vmem:[#allocation6 + $0x1e8] sm:$0xff] %v4164
      %4319 = vst [vmem:[#allocation6 + $0x1f0] sm:$0xff] %v4169
      %4320 = vst [vmem:[#allocation6 + $0x1f8] sm:$0xff] %v4174
      %4321 = vst [vmem:[#allocation6 + $0x200] sm:$0xff] %v4179
      %4322 = vst [vmem:[#allocation6 + $0x208] sm:$0xff] %v4184
      %4323 = vst [vmem:[#allocation6 + $0x210] sm:$0xff] %v4189
      %4324 = vst [vmem:[#allocation6 + $0x218] sm:$0xff] %v4194
      %4325 = vst [vmem:[#allocation6 + $0x220] sm:$0xff] %v4199
      %4326 = vst [vmem:[#allocation6 + $0x228] sm:$0xff] %v4204
      %4327 = vst [vmem:[#allocation6 + $0x230] sm:$0xff] %v4209
      %4328 = vst [vmem:[#allocation6 + $0x238] sm:$0xff] %v4214
      %4329 = vst [vmem:[#allocation6 + $0x240] sm:$0xff] %v4219
      %4330 = vst [vmem:[#allocation6 + $0x248] sm:$0xff] %v4224
      %4331 = vst [vmem:[#allocation6 + $0x250] sm:$0xff] %v4229
      %4332 = vst [vmem:[#allocation6 + $0x258] sm:$0xff] %v4234
      %4333 = vst [vmem:[#allocation6 + $0x260] sm:$0xff] %v4239
      %4334 = vst [vmem:[#allocation6 + $0x268] sm:$0xff] %v4244
      %4335 = vst [vmem:[#allocation6 + $0x270] sm:$0xff] %v4249
      %4336 = vst [vmem:[#allocation6 + $0x278] sm:$0xff] %v4254
    $region33: #{tpu_custom_call.1} parent=1 // pred_fallthru
      _
    // Predicated region
    $region34: #{tpu_custom_call.1} parent=1 // pred_check
      _
    $region35: #{tpu_custom_call.1} parent=1 // pred_check_branch
      %4338 = sbr.rel (0) target = $region37
    $region36: #{tpu_custom_call.1} parent=1 // pred_region
      %s4340 = ssub.s32 10240, 10240
      %4341 = vsyncadd [#allocation5], %s4340
      %s4342 = sshll.u32 [#allocation6], 4
      %s4343 = int_to_ptr.vmem [resolvable:$true] %s4342
      %4348 = dma.vmem_to_hbm [thread:$0]  %s4343, 10240, %s5, [#allocation5], 128, 128, 8
    $region37: #{tpu_custom_call.1} parent=1 // pred_fallthru
      _
    // Predicated region
    $region38: #{tpu_custom_call.1} parent=1 // pred_check
      _
    $region39: #{tpu_custom_call.1} parent=1 // pred_check_branch
      %4350 = sbr.rel (0) target = $region41
    $region40: #{tpu_custom_call.1} parent=1 // pred_region
      %4351 = dma.done [#allocation5], 10240
    $region41: #{tpu_custom_call.1} parent=1 // pred_fallthru
      _
    %4352 = vsyncpa [#allocation4], 1
    %4353 = vsyncpa [#allocation5], 1

</llo_original>
